<compile_context>
chip_gen: v5e
topology: v5e:2x2
jax: 0.10.0
libtpu: 0.0.40
codegen_flags: <defaults>
</compile_context>

<pallas_src>
import numpy as np
import jax
import jax.numpy as jnp
from jax.experimental import pallas as pl
from jax.experimental.pallas import tpu as pltpu

# ----------------------------------------------------------------------------
# Model dimensions (small shapes consistent with the module: batch=2, 4x16x16 images)
# ----------------------------------------------------------------------------
NC = 4       # image channels
NF = 8       # base feature width
NZ = 32      # latent dim
IMG = 16     # spatial size
K, S, P = 4, 2, 1                 # every conv / deconv: 4x4 kernel, stride 2, pad 1

HW0 = IMG * IMG                   # 256  (16x16)
HW1 = (IMG // 2) ** 2             # 64   (8x8)
HW2 = (IMG // 4) ** 2             # 16   (4x4)
C1, C2 = NF, 2 * NF               # 8, 16
F_IN = NC * HW0                   # 1024 flattened input image
F_H1 = C1 * HW1                   # 512
F_H2 = C2 * HW2                   # 256  (encoder flatten width)


# ----------------------------------------------------------------------------
# Parameters (PyTorch layouts) + one-time packing into kernel-friendly dense matrices
# ----------------------------------------------------------------------------
def init_params(key):
    def nrm(k, shape, scale=0.05):
        return scale * jax.random.normal(k, shape, dtype=jnp.float32)

    ks = jax.random.split(key, 14)
    return {
        # Encoder: conv(4->8) -> conv(8->16) -> flatten -> fc_mu / fc_logvar
        "enc_conv1_w": nrm(ks[0], (C1, NC, K, K)),    "enc_conv1_b": nrm(ks[1], (C1,)),
        "enc_conv2_w": nrm(ks[2], (C2, C1, K, K)),    "enc_conv2_b": nrm(ks[3], (C2,)),
        "enc_fc_mu_w": nrm(ks[4], (F_H2, NZ)),        "enc_fc_mu_b": nrm(ks[5], (NZ,)),
        "enc_fc_lv_w": nrm(ks[6], (F_H2, NZ)),        "enc_fc_lv_b": nrm(ks[7], (NZ,)),
        # Decoder: fc(nz->256) -> deconv(16->8) -> deconv(8->4) -> tanh
        "dec_fc_w": nrm(ks[8], (NZ, F_H2)),           "dec_fc_b": nrm(ks[9], (F_H2,)),
        "dec_deconv1_w": nrm(ks[10], (C2, C1, K, K)), "dec_deconv1_b": nrm(ks[11], (C1,)),
        "dec_deconv2_w": nrm(ks[12], (C1, NC, K, K)), "dec_deconv2_b": nrm(ks[13], (NC,)),
    }


def _conv_structure(h_in, w_in, h_out, w_out):
    """T[kh*K+kw, h*w_in+w, ho*w_out+wo] = 1  iff  (h, w) == (ho*S+kh-P, wo*S+kw-P)."""
    t = np.zeros((K * K, h_in * w_in, h_out * w_out), np.float32)
    for kh in range(K):
        for kw in range(K):
            kk = kh * K + kw
            for ho in range(h_out):
                h = ho * S + kh - P
                if not 0 <= h < h_in:
                    continue
                for wo in range(w_out):
                    w = wo * S + kw - P
                    if not 0 <= w < w_in:
                        continue
                    t[kk, h * w_in + w, ho * w_out + wo] = 1.0
    return t


def _deconv_structure(h_in, w_in, h_out, w_out):
    """T[kh*K+kw, ih*w_in+iw, oh*w_out+ow] = 1  iff  (oh, ow) == (ih*S-P+kh, iw*S-P+kw)."""
    t = np.zeros((K * K, h_in * w_in, h_out * w_out), np.float32)
    for kh in range(K):
        for kw in range(K):
            kk = kh * K + kw
            for ih in range(h_in):
                oh = ih * S - P + kh
                if not 0 <= oh < h_out:
                    continue
                for iw in range(w_in):
                    ow = iw * S - P + kw
                    if not 0 <= ow < w_out:
                        continue
                    t[kk, ih * w_in + iw, oh * w_out + ow] = 1.0
    return t


def _fold(w_kk, structure):
    """w_kk: [K*K, C_out, C_in]; structure: [K*K, HW_in, HW_out]
       -> dense [C_in*HW_in, C_out*HW_out] acting on (c,h,w)-flattened row vectors."""
    m = jnp.einsum("koi,khq->ihoq", w_kk, jnp.asarray(structure),
                   precision=jax.lax.Precision.HIGHEST)
    c_out, c_in = w_kk.shape[1], w_kk.shape[2]
    return m.reshape(c_in * structure.shape[1], c_out * structure.shape[2])


def _bias_row(b, hw_out):
    # bias per output channel broadcast over its spatial block: index = oc*hw_out + s
    return jnp.repeat(b, hw_out)[None, :].astype(jnp.float32)


def pack_params(p):
    """One-time packing: fold conv/deconv weights (exact linear maps) into dense per-layer
    matrices so the fused kernel is a plain chain of lane-dense matmuls."""
    def conv_w(w):    # PyTorch Conv2d weight [oc, ic, K, K] -> [K*K, oc, ic]
        return jnp.transpose(w, (2, 3, 0, 1)).reshape(K * K, w.shape[0], w.shape[1])

    def deconv_w(w):  # PyTorch ConvTranspose2d weight [ic, oc, K, K] -> [K*K, oc, ic]
        return jnp.transpose(w, (2, 3, 1, 0)).reshape(K * K, w.shape[1], w.shape[0])

    s_c1 = _conv_structure(IMG, IMG, IMG // 2, IMG // 2)              # [16, 256, 64]
    s_c2 = _conv_structure(IMG // 2, IMG // 2, IMG // 4, IMG // 4)    # [16, 64, 16]
    s_d1 = _deconv_structure(IMG // 4, IMG // 4, IMG // 2, IMG // 2)  # [16, 16, 64]
    s_d2 = _deconv_structure(IMG // 2, IMG // 2, IMG, IMG)            # [16, 64, 256]

    f32 = jnp.float32
    return {
        "m1": _fold(conv_w(p["enc_conv1_w"]), s_c1).astype(f32),      # [1024, 512]
        "b1": _bias_row(p["enc_conv1_b"], HW1),                       # [1, 512]
        "m2": _fold(conv_w(p["enc_conv2_w"]), s_c2).astype(f32),      # [512, 256]
        "b2": _bias_row(p["enc_conv2_b"], HW2),                       # [1, 256]
        "wmu": p["enc_fc_mu_w"].astype(f32),                          # [256, 32]
        "bmu": p["enc_fc_mu_b"][None, :].astype(f32),                 # [1, 32]
        "wlv": p["enc_fc_lv_w"].astype(f32),                          # [256, 32]
        "blv": p["enc_fc_lv_b"][None, :].astype(f32),                 # [1, 32]
        "wdf": p["dec_fc_w"].astype(f32),                             # [32, 256]
        "bdf": p["dec_fc_b"][None, :].astype(f32),                    # [1, 256]
        "m3": _fold(deconv_w(p["dec_deconv1_w"]), s_d1).astype(f32),  # [256, 512]
        "b3": _bias_row(p["dec_deconv1_b"], HW1),                     # [1, 512]
        "m4": _fold(deconv_w(p["dec_deconv2_w"]), s_d2).astype(f32),  # [512, 1024]
        "b4": _bias_row(p["dec_deconv2_b"], HW0),                     # [1, 1024]
    }


# ----------------------------------------------------------------------------
# The single fused Pallas kernel: full Generator forward for one image per grid step
# ----------------------------------------------------------------------------
def _generator_kernel(x_ref, eps_ref,
                      m1_ref, b1_ref, m2_ref, b2_ref,
                      wmu_ref, bmu_ref, wlv_ref, blv_ref,
                      wdf_ref, bdf_ref,
                      m3_ref, b3_ref, m4_ref, b4_ref,
                      out_ref, z_ref, mu_ref, lv_ref):
    f32 = jnp.float32

    def dot(a, b):
        return jnp.dot(a, b, preferred_element_type=f32)

    def lrelu(a):
        return jnp.where(a > 0, a, 0.2 * a)

    x = x_ref[0]                                               # [1, 1024] (c,h,w)-flattened image

    # ---------------- Encoder ----------------
    h1 = lrelu(dot(x, m1_ref[...]) + b1_ref[...])              # [1, 512]  conv1 (folded) + LeakyReLU
    h2 = lrelu(dot(h1, m2_ref[...]) + b2_ref[...])             # [1, 256]  conv2 (folded) + LeakyReLU
    mu = dot(h2, wmu_ref[...]) + bmu_ref[...]                  # [1, 32]
    lv = dot(h2, wlv_ref[...]) + blv_ref[...]                  # [1, 32]

    # ------------- Reparameterization (exp -> EUP, effectively free) -------------
    z = mu + eps_ref[0] * jnp.exp(0.5 * lv)                    # [1, 32]

    # ---------------- Decoder ----------------
    d0 = jnp.maximum(dot(z, wdf_ref[...]) + bdf_ref[...], 0.0)  # [1, 256]  fc + ReLU
    d1 = jnp.maximum(dot(d0, m3_ref[...]) + b3_ref[...], 0.0)   # [1, 512]  deconv1 (folded) + ReLU
    y = jnp.tanh(dot(d1, m4_ref[...]) + b4_ref[...])            # [1, 1024] deconv2 (folded) + tanh

    out_ref[0] = y
    z_ref[0] = z
    mu_ref[0] = mu
    lv_ref[0] = lv


def _param_spec(arr):
    ndim = arr.ndim
    return pl.BlockSpec(arr.shape, lambda n: (0,) * ndim)


_P_ORDER = ("m1", "b1", "m2", "b2", "wmu", "bmu", "wlv", "blv",
            "wdf", "bdf", "m3", "b3", "m4", "b4")


@jax.jit
def generator_forward(packed, x, eps):
    """Returns (output, latent_z, mu, log_var) — same tuple as the PyTorch module."""
    n = x.shape[0]
    x_rows = x.reshape(n, 1, F_IN).astype(jnp.float32)          # one (c,h,w)-flattened row / image
    eps_rows = eps.reshape(n, 1, NZ).astype(jnp.float32)
    p_args = [packed[k] for k in _P_ORDER]

    row_spec = pl.BlockSpec((1, 1, F_IN), lambda i: (i, 0, 0))
    lat_spec = pl.BlockSpec((1, 1, NZ), lambda i: (i, 0, 0))

    out, z, mu, lv = pl.pallas_call(
        _generator_kernel,
        out_shape=(
            jax.ShapeDtypeStruct((n, 1, F_IN), jnp.float32),
            jax.ShapeDtypeStruct((n, 1, NZ), jnp.float32),
            jax.ShapeDtypeStruct((n, 1, NZ), jnp.float32),
            jax.ShapeDtypeStruct((n, 1, NZ), jnp.float32),
        ),
        grid=(n,),
        in_specs=[row_spec, lat_spec] + [_param_spec(a) for a in p_args],
        out_specs=(row_spec, lat_spec, lat_spec, lat_spec),
        compiler_params=pltpu.CompilerParams(
            dimension_semantics=("parallel",),        # v7x: one image per TensorCore
            vmem_limit_bytes=32 * 1024 * 1024,
        ),
    )(x_rows, eps_rows, *p_args)

    return (out.reshape(n, NC, IMG, IMG),
            z.reshape(n, NZ), mu.reshape(n, NZ), lv.reshape(n, NZ))


# ----------------------------------------------------------------------------
# Pure-JAX reference (lax convs) used once to validate the fused kernel
# ----------------------------------------------------------------------------
def _ref_forward(params, x, eps):
    hi = jax.lax.Precision.HIGHEST

    def conv(v, w, b):
        y = jax.lax.conv_general_dilated(
            v, w, window_strides=(S, S), padding=((P, P), (P, P)),
            dimension_numbers=("NCHW", "OIHW", "NCHW"), precision=hi)
        return y + b[None, :, None, None]

    def deconv(v, w, b):
        w_t = jnp.flip(w, (2, 3)).transpose(1, 0, 2, 3)
        y = jax.lax.conv_general_dilated(
            v, w_t, window_strides=(1, 1),
            padding=((K - 1 - P,) * 2, (K - 1 - P,) * 2),
            lhs_dilation=(S, S),
            dimension_numbers=("NCHW", "OIHW", "NCHW"), precision=hi)
        return y + b[None, :, None, None]

    lrelu = lambda a: jnp.where(a > 0, a, 0.2 * a)
    n = x.shape[0]
    h = lrelu(conv(x, params["enc_conv1_w"], params["enc_conv1_b"]))
    h = lrelu(conv(h, params["enc_conv2_w"], params["enc_conv2_b"]))
    hf = h.reshape(n, -1)
    mu = jnp.dot(hf, params["enc_fc_mu_w"], precision=hi) + params["enc_fc_mu_b"]
    lv = jnp.dot(hf, params["enc_fc_lv_w"], precision=hi) + params["enc_fc_lv_b"]
    z = mu + eps * jnp.exp(0.5 * lv)
    d = jnp.maximum(jnp.dot(z, params["dec_fc_w"], precision=hi) + params["dec_fc_b"], 0.0)
    d = d.reshape(n, C2, IMG // 4, IMG // 4)
    d = jnp.maximum(deconv(d, params["dec_deconv1_w"], params["dec_deconv1_b"]), 0.0)
    y = jnp.tanh(deconv(d, params["dec_deconv2_w"], params["dec_deconv2_b"]))
    return y, z, mu, lv


if __name__ == "__main__":
    key = jax.random.PRNGKey(0)
    k_param, k_x, k_eps = jax.random.split(key, 3)

    params = init_params(k_param)
    packed = pack_params(params)        # one-time weight folding (not on the per-call path)

    x = jax.random.normal(k_x, (2, NC, IMG, IMG), dtype=jnp.float32)   # NCHW input
    eps = jax.random.normal(k_eps, (2, NZ), dtype=jnp.float32)         # ~ torch.randn_like(std)

    out, z, mu, lv = jax.block_until_ready(generator_forward(packed, x, eps))

    assert out.shape == (2, NC, IMG, IMG)
    assert z.shape == (2, NZ) and mu.shape == (2, NZ) and lv.shape == (2, NZ)
    assert bool(jnp.all(jnp.isfinite(out)))

    # Validate the fused kernel against a pure-JAX reference of the same module.
    ref_out, ref_z, ref_mu, ref_lv = _ref_forward(params, x, eps)
    for got, ref in ((out, ref_out), (z, ref_z), (mu, ref_mu), (lv, ref_lv)):
        assert float(jnp.max(jnp.abs(got - ref))) < 2e-2

    print("KERNEL_OK")
</pallas_src>

<mosaic_0001>
module attributes {stable_mosaic.version = 11 : i64} {
  func.func @_generator_kernel(%arg0: i32, %arg1: memref<1x1x1024xf32, #tpu.memory_space<vmem>>, %arg2: memref<1x1x32xf32, #tpu.memory_space<vmem>>, %arg3: memref<1024x512xf32, #tpu.memory_space<vmem>>, %arg4: memref<1x512xf32, #tpu.memory_space<vmem>>, %arg5: memref<512x256xf32, #tpu.memory_space<vmem>>, %arg6: memref<1x256xf32, #tpu.memory_space<vmem>>, %arg7: memref<256x32xf32, #tpu.memory_space<vmem>>, %arg8: memref<1x32xf32, #tpu.memory_space<vmem>>, %arg9: memref<256x32xf32, #tpu.memory_space<vmem>>, %arg10: memref<1x32xf32, #tpu.memory_space<vmem>>, %arg11: memref<32x256xf32, #tpu.memory_space<vmem>>, %arg12: memref<1x256xf32, #tpu.memory_space<vmem>>, %arg13: memref<256x512xf32, #tpu.memory_space<vmem>>, %arg14: memref<1x512xf32, #tpu.memory_space<vmem>>, %arg15: memref<512x1024xf32, #tpu.memory_space<vmem>>, %arg16: memref<1x1024xf32, #tpu.memory_space<vmem>>, %arg17: memref<1x1x1024xf32, #tpu.memory_space<vmem>>, %arg18: memref<1x1x32xf32, #tpu.memory_space<vmem>>, %arg19: memref<1x1x32xf32, #tpu.memory_space<vmem>>, %arg20: memref<1x1x32xf32, #tpu.memory_space<vmem>>) attributes {dimension_semantics = [#tpu.dimension_semantics<parallel>], iteration_bounds = array<i64: 2>, scalar_prefetch = 0 : i64, scratch_operands = 0 : i64, tpu.core_type = #tpu.core_type<tc>, window_params = [{transform_indices = @transform_0, window_bounds = array<i64: 1, 1, 1024>}, {transform_indices = @transform_1, window_bounds = array<i64: 1, 1, 32>}, {pipeline_mode = #tpu.pipeline_mode<synchronous>, transform_indices = @transform_2, window_bounds = array<i64: 1024, 512>}, {pipeline_mode = #tpu.pipeline_mode<synchronous>, transform_indices = @transform_3, window_bounds = array<i64: 1, 512>}, {pipeline_mode = #tpu.pipeline_mode<synchronous>, transform_indices = @transform_4, window_bounds = array<i64: 512, 256>}, {pipeline_mode = #tpu.pipeline_mode<synchronous>, transform_indices = @transform_5, window_bounds = array<i64: 1, 256>}, {pipeline_mode = #tpu.pipeline_mode<synchronous>, transform_indices = @transform_6, window_bounds = array<i64: 256, 32>}, {pipeline_mode = #tpu.pipeline_mode<synchronous>, transform_indices = @transform_7, window_bounds = array<i64: 1, 32>}, {pipeline_mode = #tpu.pipeline_mode<synchronous>, transform_indices = @transform_8, window_bounds = array<i64: 256, 32>}, {pipeline_mode = #tpu.pipeline_mode<synchronous>, transform_indices = @transform_9, window_bounds = array<i64: 1, 32>}, {pipeline_mode = #tpu.pipeline_mode<synchronous>, transform_indices = @transform_10, window_bounds = array<i64: 32, 256>}, {pipeline_mode = #tpu.pipeline_mode<synchronous>, transform_indices = @transform_11, window_bounds = array<i64: 1, 256>}, {pipeline_mode = #tpu.pipeline_mode<synchronous>, transform_indices = @transform_12, window_bounds = array<i64: 256, 512>}, {pipeline_mode = #tpu.pipeline_mode<synchronous>, transform_indices = @transform_13, window_bounds = array<i64: 1, 512>}, {pipeline_mode = #tpu.pipeline_mode<synchronous>, transform_indices = @transform_14, window_bounds = array<i64: 512, 1024>}, {pipeline_mode = #tpu.pipeline_mode<synchronous>, transform_indices = @transform_15, window_bounds = array<i64: 1, 1024>}, {transform_indices = @transform_16, window_bounds = array<i64: 1, 1, 1024>}, {transform_indices = @transform_17, window_bounds = array<i64: 1, 1, 32>}, {transform_indices = @transform_18, window_bounds = array<i64: 1, 1, 32>}, {transform_indices = @transform_19, window_bounds = array<i64: 1, 1, 32>}]} {
    %c0 = arith.constant 0 : index
    %c0_0 = arith.constant 0 : index
    %c0_1 = arith.constant 0 : index
    %0 = vector.load %arg1[%c0, %c0_0, %c0_1] : memref<1x1x1024xf32, #tpu.memory_space<vmem>>, vector<1x1x1024xf32>
    %1 = vector.shape_cast %0 : vector<1x1x1024xf32> to vector<1x1024xf32>
    %c0_2 = arith.constant 0 : index
    %c0_3 = arith.constant 0 : index
    %2 = vector.load %arg3[%c0_2, %c0_3] : memref<1024x512xf32, #tpu.memory_space<vmem>>, vector<1024x512xf32>
    %cst = arith.constant dense<0.000000e+00> : vector<1x512xf32>
    %3 = tpu.matmul %1, %2, %cst {dimension_numbers = #tpu.dot_dimension_numbers<[1], [0], [0], [1], [0, 0, 1, 1], [], []>} : vector<1x1024xf32>, vector<1024x512xf32>, vector<1x512xf32> -> vector<1x512xf32>
    %c0_4 = arith.constant 0 : index
    %c0_5 = arith.constant 0 : index
    %4 = vector.load %arg4[%c0_4, %c0_5] : memref<1x512xf32, #tpu.memory_space<vmem>>, vector<1x512xf32>
    %5 = arith.addf %3, %4 : vector<1x512xf32>
    %cst_6 = arith.constant 0.000000e+00 : f32
    %6 = vector.broadcast %cst_6 : f32 to vector<1x512xf32>
    %7 = arith.cmpf ogt, %5, %6 : vector<1x512xf32>
    %cst_7 = arith.constant 2.000000e-01 : f32
    %8 = vector.broadcast %cst_7 : f32 to vector<1x512xf32>
    %9 = arith.mulf %8, %5 : vector<1x512xf32>
    %10 = arith.select %7, %5, %9 : vector<1x512xi1>, vector<1x512xf32>
    %c0_8 = arith.constant 0 : index
    %c0_9 = arith.constant 0 : index
    %11 = vector.load %arg5[%c0_8, %c0_9] : memref<512x256xf32, #tpu.memory_space<vmem>>, vector<512x256xf32>
    %cst_10 = arith.constant dense<0.000000e+00> : vector<1x256xf32>
    %12 = tpu.matmul %10, %11, %cst_10 {dimension_numbers = #tpu.dot_dimension_numbers<[1], [0], [0], [1], [0, 0, 1, 1], [], []>} : vector<1x512xf32>, vector<512x256xf32>, vector<1x256xf32> -> vector<1x256xf32>
    %c0_11 = arith.constant 0 : index
    %c0_12 = arith.constant 0 : index
    %13 = vector.load %arg6[%c0_11, %c0_12] : memref<1x256xf32, #tpu.memory_space<vmem>>, vector<1x256xf32>
    %14 = arith.addf %12, %13 : vector<1x256xf32>
    %cst_13 = arith.constant 0.000000e+00 : f32
    %15 = vector.broadcast %cst_13 : f32 to vector<1x256xf32>
    %16 = arith.cmpf ogt, %14, %15 : vector<1x256xf32>
    %cst_14 = arith.constant 2.000000e-01 : f32
    %17 = vector.broadcast %cst_14 : f32 to vector<1x256xf32>
    %18 = arith.mulf %17, %14 : vector<1x256xf32>
    %19 = arith.select %16, %14, %18 : vector<1x256xi1>, vector<1x256xf32>
    %c0_15 = arith.constant 0 : index
    %c0_16 = arith.constant 0 : index
    %20 = vector.load %arg7[%c0_15, %c0_16] : memref<256x32xf32, #tpu.memory_space<vmem>>, vector<256x32xf32>
    %cst_17 = arith.constant dense<0.000000e+00> : vector<1x32xf32>
    %21 = tpu.matmul %19, %20, %cst_17 {dimension_numbers = #tpu.dot_dimension_numbers<[1], [0], [0], [1], [0, 0, 1, 1], [], []>} : vector<1x256xf32>, vector<256x32xf32>, vector<1x32xf32> -> vector<1x32xf32>
    %c0_18 = arith.constant 0 : index
    %c0_19 = arith.constant 0 : index
    %22 = vector.load %arg8[%c0_18, %c0_19] : memref<1x32xf32, #tpu.memory_space<vmem>>, vector<1x32xf32>
    %23 = arith.addf %21, %22 : vector<1x32xf32>
    %c0_20 = arith.constant 0 : index
    %c0_21 = arith.constant 0 : index
    %24 = vector.load %arg9[%c0_20, %c0_21] : memref<256x32xf32, #tpu.memory_space<vmem>>, vector<256x32xf32>
    %cst_22 = arith.constant dense<0.000000e+00> : vector<1x32xf32>
    %25 = tpu.matmul %19, %24, %cst_22 {dimension_numbers = #tpu.dot_dimension_numbers<[1], [0], [0], [1], [0, 0, 1, 1], [], []>} : vector<1x256xf32>, vector<256x32xf32>, vector<1x32xf32> -> vector<1x32xf32>
    %c0_23 = arith.constant 0 : index
    %c0_24 = arith.constant 0 : index
    %26 = vector.load %arg10[%c0_23, %c0_24] : memref<1x32xf32, #tpu.memory_space<vmem>>, vector<1x32xf32>
    %27 = arith.addf %25, %26 : vector<1x32xf32>
    %c0_25 = arith.constant 0 : index
    %c0_26 = arith.constant 0 : index
    %c0_27 = arith.constant 0 : index
    %28 = vector.load %arg2[%c0_25, %c0_26, %c0_27] : memref<1x1x32xf32, #tpu.memory_space<vmem>>, vector<1x1x32xf32>
    %29 = vector.shape_cast %28 : vector<1x1x32xf32> to vector<1x32xf32>
    %cst_28 = arith.constant 5.000000e-01 : f32
    %30 = vector.broadcast %cst_28 : f32 to vector<1x32xf32>
    %31 = arith.mulf %30, %27 : vector<1x32xf32>
    %32 = math.exp %31 : vector<1x32xf32>
    %33 = arith.mulf %29, %32 : vector<1x32xf32>
    %34 = arith.addf %23, %33 : vector<1x32xf32>
    %c0_29 = arith.constant 0 : index
    %c0_30 = arith.constant 0 : index
    %35 = vector.load %arg11[%c0_29, %c0_30] : memref<32x256xf32, #tpu.memory_space<vmem>>, vector<32x256xf32>
    %cst_31 = arith.constant dense<0.000000e+00> : vector<1x256xf32>
    %36 = tpu.matmul %34, %35, %cst_31 {dimension_numbers = #tpu.dot_dimension_numbers<[1], [0], [0], [1], [0, 0, 1, 1], [], []>} : vector<1x32xf32>, vector<32x256xf32>, vector<1x256xf32> -> vector<1x256xf32>
    %c0_32 = arith.constant 0 : index
    %c0_33 = arith.constant 0 : index
    %37 = vector.load %arg12[%c0_32, %c0_33] : memref<1x256xf32, #tpu.memory_space<vmem>>, vector<1x256xf32>
    %38 = arith.addf %36, %37 : vector<1x256xf32>
    %cst_34 = arith.constant 0.000000e+00 : f32
    %39 = vector.broadcast %cst_34 : f32 to vector<1x256xf32>
    %40 = arith.maximumf %38, %39 : vector<1x256xf32>
    %c0_35 = arith.constant 0 : index
    %c0_36 = arith.constant 0 : index
    %41 = vector.load %arg13[%c0_35, %c0_36] : memref<256x512xf32, #tpu.memory_space<vmem>>, vector<256x512xf32>
    %cst_37 = arith.constant dense<0.000000e+00> : vector<1x512xf32>
    %42 = tpu.matmul %40, %41, %cst_37 {dimension_numbers = #tpu.dot_dimension_numbers<[1], [0], [0], [1], [0, 0, 1, 1], [], []>} : vector<1x256xf32>, vector<256x512xf32>, vector<1x512xf32> -> vector<1x512xf32>
    %c0_38 = arith.constant 0 : index
    %c0_39 = arith.constant 0 : index
    %43 = vector.load %arg14[%c0_38, %c0_39] : memref<1x512xf32, #tpu.memory_space<vmem>>, vector<1x512xf32>
    %44 = arith.addf %42, %43 : vector<1x512xf32>
    %cst_40 = arith.constant 0.000000e+00 : f32
    %45 = vector.broadcast %cst_40 : f32 to vector<1x512xf32>
    %46 = arith.maximumf %44, %45 : vector<1x512xf32>
    %c0_41 = arith.constant 0 : index
    %c0_42 = arith.constant 0 : index
    %47 = vector.load %arg15[%c0_41, %c0_42] : memref<512x1024xf32, #tpu.memory_space<vmem>>, vector<512x1024xf32>
    %cst_43 = arith.constant dense<0.000000e+00> : vector<1x1024xf32>
    %48 = tpu.matmul %46, %47, %cst_43 {dimension_numbers = #tpu.dot_dimension_numbers<[1], [0], [0], [1], [0, 0, 1, 1], [], []>} : vector<1x512xf32>, vector<512x1024xf32>, vector<1x1024xf32> -> vector<1x1024xf32>
    %c0_44 = arith.constant 0 : index
    %c0_45 = arith.constant 0 : index
    %49 = vector.load %arg16[%c0_44, %c0_45] : memref<1x1024xf32, #tpu.memory_space<vmem>>, vector<1x1024xf32>
    %50 = arith.addf %48, %49 : vector<1x1024xf32>
    %51 = math.tanh %50 : vector<1x1024xf32>
    %c0_46 = arith.constant 0 : index
    %c0_47 = arith.constant 0 : index
    %c0_48 = arith.constant 0 : index
    %52 = vector.load %arg17[%c0_46, %c0_47, %c0_48] : memref<1x1x1024xf32, #tpu.memory_space<vmem>>, vector<1x1x1024xf32>
    %53 = vector.shape_cast %52 : vector<1x1x1024xf32> to vector<1x1024xf32>
    %54 = vector.shape_cast %51 : vector<1x1024xf32> to vector<1x1x1024xf32>
    tpu.vector_store %arg17[%c0_46, %c0_47, %c0_48], %54 {strides = array<i32>} : memref<1x1x1024xf32, #tpu.memory_space<vmem>>, vector<1x1x1024xf32>,
    %c0_49 = arith.constant 0 : index
    %c0_50 = arith.constant 0 : index
    %c0_51 = arith.constant 0 : index
    %55 = vector.load %arg18[%c0_49, %c0_50, %c0_51] : memref<1x1x32xf32, #tpu.memory_space<vmem>>, vector<1x1x32xf32>
    %56 = vector.shape_cast %55 : vector<1x1x32xf32> to vector<1x32xf32>
    %57 = vector.shape_cast %34 : vector<1x32xf32> to vector<1x1x32xf32>
    tpu.vector_store %arg18[%c0_49, %c0_50, %c0_51], %57 {strides = array<i32>} : memref<1x1x32xf32, #tpu.memory_space<vmem>>, vector<1x1x32xf32>,
    %c0_52 = arith.constant 0 : index
    %c0_53 = arith.constant 0 : index
    %c0_54 = arith.constant 0 : index
    %58 = vector.load %arg19[%c0_52, %c0_53, %c0_54] : memref<1x1x32xf32, #tpu.memory_space<vmem>>, vector<1x1x32xf32>
    %59 = vector.shape_cast %58 : vector<1x1x32xf32> to vector<1x32xf32>
    %60 = vector.shape_cast %23 : vector<1x32xf32> to vector<1x1x32xf32>
    tpu.vector_store %arg19[%c0_52, %c0_53, %c0_54], %60 {strides = array<i32>} : memref<1x1x32xf32, #tpu.memory_space<vmem>>, vector<1x1x32xf32>,
    %c0_55 = arith.constant 0 : index
    %c0_56 = arith.constant 0 : index
    %c0_57 = arith.constant 0 : index
    %61 = vector.load %arg20[%c0_55, %c0_56, %c0_57] : memref<1x1x32xf32, #tpu.memory_space<vmem>>, vector<1x1x32xf32>
    %62 = vector.shape_cast %61 : vector<1x1x32xf32> to vector<1x32xf32>
    %63 = vector.shape_cast %27 : vector<1x32xf32> to vector<1x1x32xf32>
    tpu.vector_store %arg20[%c0_55, %c0_56, %c0_57], %63 {strides = array<i32>} : memref<1x1x32xf32, #tpu.memory_space<vmem>>, vector<1x1x32xf32>,
    return
  }
  func.func @transform_0(%arg0: i32) -> (i32, i32, i32) {
    %c0_i32 = arith.constant 0 : i32
    %c0_i32_0 = arith.constant 0 : i32
    %c0_i32_1 = arith.constant 0 : i32
    return %arg0, %c0_i32, %c0_i32_0 : i32, i32, i32
  }
  func.func @transform_1(%arg0: i32) -> (i32, i32, i32) {
    %c0_i32 = arith.constant 0 : i32
    %c0_i32_0 = arith.constant 0 : i32
    %c0_i32_1 = arith.constant 0 : i32
    return %arg0, %c0_i32, %c0_i32_0 : i32, i32, i32
  }
  func.func @transform_2(%arg0: i32) -> (i32, i32) {
    %c0_i32 = arith.constant 0 : i32
    %c0_i32_0 = arith.constant 0 : i32
    %c0_i32_1 = arith.constant 0 : i32
    return %c0_i32, %c0_i32_0 : i32, i32
  }
  func.func @transform_3(%arg0: i32) -> (i32, i32) {
    %c0_i32 = arith.constant 0 : i32
    %c0_i32_0 = arith.constant 0 : i32
    %c0_i32_1 = arith.constant 0 : i32
    return %c0_i32, %c0_i32_0 : i32, i32
  }
  func.func @transform_4(%arg0: i32) -> (i32, i32) {
    %c0_i32 = arith.constant 0 : i32
    %c0_i32_0 = arith.constant 0 : i32
    %c0_i32_1 = arith.constant 0 : i32
    return %c0_i32, %c0_i32_0 : i32, i32
  }
  func.func @transform_5(%arg0: i32) -> (i32, i32) {
    %c0_i32 = arith.constant 0 : i32
    %c0_i32_0 = arith.constant 0 : i32
    %c0_i32_1 = arith.constant 0 : i32
    return %c0_i32, %c0_i32_0 : i32, i32
  }
  func.func @transform_6(%arg0: i32) -> (i32, i32) {
    %c0_i32 = arith.constant 0 : i32
    %c0_i32_0 = arith.constant 0 : i32
    %c0_i32_1 = arith.constant 0 : i32
    return %c0_i32, %c0_i32_0 : i32, i32
  }
  func.func @transform_7(%arg0: i32) -> (i32, i32) {
    %c0_i32 = arith.constant 0 : i32
    %c0_i32_0 = arith.constant 0 : i32
    %c0_i32_1 = arith.constant 0 : i32
    return %c0_i32, %c0_i32_0 : i32, i32
  }
  func.func @transform_8(%arg0: i32) -> (i32, i32) {
    %c0_i32 = arith.constant 0 : i32
    %c0_i32_0 = arith.constant 0 : i32
    %c0_i32_1 = arith.constant 0 : i32
    return %c0_i32, %c0_i32_0 : i32, i32
  }
  func.func @transform_9(%arg0: i32) -> (i32, i32) {
    %c0_i32 = arith.constant 0 : i32
    %c0_i32_0 = arith.constant 0 : i32
    %c0_i32_1 = arith.constant 0 : i32
    return %c0_i32, %c0_i32_0 : i32, i32
  }
  func.func @transform_10(%arg0: i32) -> (i32, i32) {
    %c0_i32 = arith.constant 0 : i32
    %c0_i32_0 = arith.constant 0 : i32
    %c0_i32_1 = arith.constant 0 : i32
    return %c0_i32, %c0_i32_0 : i32, i32
  }
  func.func @transform_11(%arg0: i32) -> (i32, i32) {
    %c0_i32 = arith.constant 0 : i32
    %c0_i32_0 = arith.constant 0 : i32
    %c0_i32_1 = arith.constant 0 : i32
    return %c0_i32, %c0_i32_0 : i32, i32
  }
  func.func @transform_12(%arg0: i32) -> (i32, i32) {
    %c0_i32 = arith.constant 0 : i32
    %c0_i32_0 = arith.constant 0 : i32
    %c0_i32_1 = arith.constant 0 : i32
    return %c0_i32, %c0_i32_0 : i32, i32
  }
  func.func @transform_13(%arg0: i32) -> (i32, i32) {
    %c0_i32 = arith.constant 0 : i32
    %c0_i32_0 = arith.constant 0 : i32
    %c0_i32_1 = arith.constant 0 : i32
    return %c0_i32, %c0_i32_0 : i32, i32
  }
  func.func @transform_14(%arg0: i32) -> (i32, i32) {
    %c0_i32 = arith.constant 0 : i32
    %c0_i32_0 = arith.constant 0 : i32
    %c0_i32_1 = arith.constant 0 : i32
    return %c0_i32, %c0_i32_0 : i32, i32
  }
  func.func @transform_15(%arg0: i32) -> (i32, i32) {
    %c0_i32 = arith.constant 0 : i32
    %c0_i32_0 = arith.constant 0 : i32
    %c0_i32_1 = arith.constant 0 : i32
    return %c0_i32, %c0_i32_0 : i32, i32
  }
  func.func @transform_16(%arg0: i32) -> (i32, i32, i32) {
    %c0_i32 = arith.constant 0 : i32
    %c0_i32_0 = arith.constant 0 : i32
    %c0_i32_1 = arith.constant 0 : i32
    return %arg0, %c0_i32, %c0_i32_0 : i32, i32, i32
  }
  func.func @transform_17(%arg0: i32) -> (i32, i32, i32) {
    %c0_i32 = arith.constant 0 : i32
    %c0_i32_0 = arith.constant 0 : i32
    %c0_i32_1 = arith.constant 0 : i32
    return %arg0, %c0_i32, %c0_i32_0 : i32, i32, i32
  }
  func.func @transform_18(%arg0: i32) -> (i32, i32, i32) {
    %c0_i32 = arith.constant 0 : i32
    %c0_i32_0 = arith.constant 0 : i32
    %c0_i32_1 = arith.constant 0 : i32
    return %arg0, %c0_i32, %c0_i32_0 : i32, i32, i32
  }
  func.func @transform_19(%arg0: i32) -> (i32, i32, i32) {
    %c0_i32 = arith.constant 0 : i32
    %c0_i32_0 = arith.constant 0 : i32
    %c0_i32_1 = arith.constant 0 : i32
    return %arg0, %c0_i32, %c0_i32_0 : i32, i32, i32
  }
}

</mosaic_0001>

<llo_original>
// kernel: generator_forward.1
$region0: #{generator_forward.1}
  #allocation0 [shape = 'u32[]', space=smem, size = 0x4, offset = 0x4, fixed_abs, tag = 'smem constant byte address 0x4 - core index']
  #allocation1 [shape = 'u32[72,128]{1,0:T(1,128)}', space=vmem, size = 0x9000, scoped, tag = 'internal scratch']
  %s0 = inlined_call_operand.vmem [shape: f32[2,1,1024], index: 0, kind: input, shape index: {}]
  %s1 = inlined_call_operand.hbm [shape: f32[2,1,32], index: 1, kind: input, shape index: {}]
  %s2 = inlined_call_operand.hbm [shape: f32[1024,512], index: 2, kind: input, shape index: {}]
  %s3 = inlined_call_operand.hbm [shape: f32[1,512], index: 3, kind: input, shape index: {}]
  %s4 = inlined_call_operand.hbm [shape: f32[512,256], index: 4, kind: input, shape index: {}]
  %s5 = inlined_call_operand.hbm [shape: f32[1,256], index: 5, kind: input, shape index: {}]
  %s6 = inlined_call_operand.vmem [shape: f32[256,32], index: 6, kind: input, shape index: {}]
  %s7 = inlined_call_operand.hbm [shape: f32[1,32], index: 7, kind: input, shape index: {}]
  %s8 = inlined_call_operand.vmem [shape: f32[256,32], index: 8, kind: input, shape index: {}]
  %s9 = inlined_call_operand.hbm [shape: f32[1,32], index: 9, kind: input, shape index: {}]
  %s10 = inlined_call_operand.hbm [shape: f32[32,256], index: 10, kind: input, shape index: {}]
  %s11 = inlined_call_operand.hbm [shape: f32[1,256], index: 11, kind: input, shape index: {}]
  %s12 = inlined_call_operand.hbm [shape: f32[256,512], index: 12, kind: input, shape index: {}]
  %s13 = inlined_call_operand.hbm [shape: f32[1,512], index: 13, kind: input, shape index: {}]
  %s14 = inlined_call_operand.hbm [shape: f32[512,1024], index: 14, kind: input, shape index: {}]
  %s15 = inlined_call_operand.hbm [shape: f32[1,1024], index: 15, kind: input, shape index: {}]
  %s16 = inlined_call_operand.vmem [shape: f32[2,1,1024], index: 16, kind: output, shape index: {0}]
  %s17 = inlined_call_operand.hbm [shape: f32[2,1,32], index: 17, kind: output, shape index: {1}]
  %s18 = inlined_call_operand.hbm [shape: f32[2,1,32], index: 18, kind: output, shape index: {2}]
  %s19 = inlined_call_operand.hbm [shape: f32[2,1,32], index: 19, kind: output, shape index: {3}]
  %20 = xla_tuple %s16, %s17, %s18, %s19
  %s21 = sld [smem:[#allocation0]]
  $region173: #{generator_forward.1} parent=0
    _
  %s23 = ssub.s32 1, %s21
  %s24 = scalar_select 0, %s23, %s21
  $region1: #{generator_forward.1} parent=0
    #allocation2 [shape = 'u8[1024]{0}', space=vmem, size = 0x400, scoped, tag = 'input window, operand 1']
    #allocation3 [shape = 's32[2]{0}', space=sflag, size = 0x8, scoped, tag = 'scoped memory for generator_forward.1']
    #allocation4 [shape = 's32[2]{0}', space=sflag, size = 0x8, scoped, tag = 'scoped memory for generator_forward.1']
    #allocation5 [shape = 'u8[2097152]{0}', space=vmem, size = 0x200000, scoped, tag = 'input window, operand 2, single buffered']
    #allocation6 [shape = 's32[1]{0}', space=sflag, size = 0x4, scoped, tag = 'scoped memory for generator_forward.1']
    #allocation7 [shape = 'u8[2048]{0}', space=vmem, size = 0x800, scoped, tag = 'input window, operand 3, single buffered']
    #allocation8 [shape = 'u8[524288]{0}', space=vmem, size = 0x80000, scoped, tag = 'input window, operand 4, single buffered']
    #allocation9 [shape = 's32[1]{0}', space=sflag, size = 0x4, scoped, tag = 'scoped memory for generator_forward.1']
    #allocation10 [shape = 'u8[1024]{0}', space=vmem, size = 0x400, scoped, tag = 'input window, operand 5, single buffered']
    #allocation11 [shape = 'u8[512]{0}', space=vmem, size = 0x400, scoped, tag = 'input window, operand 7, single buffered']
    #allocation12 [shape = 's32[1]{0}', space=sflag, size = 0x4, scoped, tag = 'scoped memory for generator_forward.1']
    #allocation13 [shape = 'u8[512]{0}', space=vmem, size = 0x400, scoped, tag = 'input window, operand 9, single buffered']
    #allocation14 [shape = 'u8[32768]{0}', space=vmem, size = 0x8000, scoped, tag = 'input window, operand 10, single buffered']
    #allocation15 [shape = 's32[1]{0}', space=sflag, size = 0x4, scoped, tag = 'scoped memory for generator_forward.1']
    #allocation16 [shape = 'u8[1024]{0}', space=vmem, size = 0x400, scoped, tag = 'input window, operand 11, single buffered']
    #allocation17 [shape = 'u8[524288]{0}', space=vmem, size = 0x80000, scoped, tag = 'input window, operand 12, single buffered']
    #allocation18 [shape = 's32[1]{0}', space=sflag, size = 0x4, scoped, tag = 'scoped memory for generator_forward.1']
    #allocation19 [shape = 'u8[2048]{0}', space=vmem, size = 0x800, scoped, tag = 'input window, operand 13, single buffered']
    #allocation20 [shape = 'u8[2097152]{0}', space=vmem, size = 0x200000, scoped, tag = 'input window, operand 14, single buffered']
    #allocation21 [shape = 's32[1]{0}', space=sflag, size = 0x4, scoped, tag = 'scoped memory for generator_forward.1']
    #allocation22 [shape = 'u8[4096]{0}', space=vmem, size = 0x1000, scoped, tag = 'input window, operand 15, single buffered']
    #allocation23 [shape = 'u8[1024]{0}', space=vmem, size = 0x400, scoped, tag = 'output window, operand 1']
    #allocation24 [shape = 'u8[1024]{0}', space=vmem, size = 0x400, scoped, tag = 'output window, operand 2']
    #allocation25 [shape = 's32[2]{0}', space=sflag, size = 0x8, scoped, tag = 'scoped memory for generator_forward.1']
    #allocation26 [shape = 'u8[1024]{0}', space=vmem, size = 0x400, scoped, tag = 'output window, operand 3']
    %25 = vsyncpa [#allocation3], 0
    %s26 = scalar_lea.sflag [#allocation3], 1
    %27 = vsyncpa %s26, 0
    %28 = vsyncpa [#allocation6], 0
    %29 = vsyncpa [#allocation9], 0
    %30 = vsyncpa [#allocation12], 0
    %31 = vsyncpa [#allocation15], 0
    %32 = vsyncpa [#allocation18], 0
    %33 = vsyncpa [#allocation21], 0
    %34 = vsyncpa [#allocation4], 0
    %s35 = scalar_lea.sflag [#allocation4], 1
    %36 = vsyncpa %s35, 0
    %37 = vsyncpa [#allocation25], 0
    %s38 = scalar_lea.sflag [#allocation25], 1
    %39 = vsyncpa %s38, 0
    loop: start=0, step=1, limit=4
    $region2: #{generator_forward.1} parent=1 // loop_pre_header
      _
    $region3: #{generator_forward.1} parent=1 // loop_header
      %s41 = sphi 0, %s45
      %p42 = scmp.ge.s32.totalorder %s41, 4
      %s51 = sphi 0, %s53
      %s54 = sphi 0, %s51
      %s55 = sphi 0, %s54
      %s71 = sphi 0, %s55
      %s77 = sphi 0, %s79
      %s80 = sphi 0, %s77
      %s81 = sphi 0, %s80
      %s97 = sphi 0, %s81
      %s101 = sphi 0, %s101
      %s103 = sphi 0, %s101
      %s104 = sphi 0, %s103
      %s118 = sphi 0, %s104
      %s122 = sphi 0, %s122
      %s124 = sphi 0, %s122
      %s125 = sphi 0, %s124
      %s139 = sphi 0, %s125
      %s143 = sphi 0, %s143
      %s145 = sphi 0, %s143
      %s146 = sphi 0, %s145
      %s160 = sphi 0, %s146
      %s164 = sphi 0, %s164
      %s166 = sphi 0, %s164
      %s167 = sphi 0, %s166
      %s181 = sphi 0, %s167
      %s185 = sphi 0, %s185
      %s187 = sphi 0, %s185
      %s188 = sphi 0, %s187
      %s202 = sphi 0, %s188
      %s206 = sphi 0, %s206
      %s208 = sphi 0, %s206
      %s209 = sphi 0, %s208
      %s223 = sphi 0, %s209
      %s227 = sphi 0, %s227
      %s229 = sphi 0, %s227
      %s230 = sphi 0, %s229
      %s244 = sphi 0, %s230
      %s248 = sphi 0, %s248
      %s250 = sphi 0, %s248
      %s251 = sphi 0, %s250
      %s265 = sphi 0, %s251
      %s269 = sphi 0, %s269
      %s271 = sphi 0, %s269
      %s272 = sphi 0, %s271
      %s286 = sphi 0, %s272
      %s290 = sphi 0, %s290
      %s292 = sphi 0, %s290
      %s293 = sphi 0, %s292
      %s307 = sphi 0, %s293
      %s311 = sphi 0, %s311
      %s313 = sphi 0, %s311
      %s314 = sphi 0, %s313
      %s328 = sphi 0, %s314
      %s332 = sphi 0, %s332
      %s334 = sphi 0, %s332
      %s335 = sphi 0, %s334
      %s349 = sphi 0, %s335
      %s353 = sphi 0, %s353
      %s355 = sphi 0, %s353
      %s356 = sphi 0, %s355
      %s370 = sphi 0, %s356
      %s374 = sphi 0, %s374
      %s376 = sphi 0, %s374
      %s377 = sphi 0, %s376
      %s391 = sphi 0, %s377
      %s397 = sphi 0, %s399
      %s400 = sphi 0, %s397
      %s401 = sphi 0, %s400
      %s417 = sphi 0, %s401
      %s423 = sphi 0, %s425
      %s426 = sphi 0, %s423
      %s427 = sphi 0, %s426
      %s443 = sphi 0, %s427
      %s449 = sphi 0, %s451
      %s452 = sphi 0, %s449
      %s453 = sphi 0, %s452
      %s469 = sphi 0, %s453
      %s475 = sphi 0, %s477
      %s478 = sphi 0, %s475
      %s479 = sphi 0, %s478
      %s495 = sphi 0, %s479
    $region4: #{generator_forward.1} parent=1 // loop_header_branch
      %44 = sbr.rel (%p42) target = $region8
    $region5: #{generator_forward.1} parent=1 // loop_body
      %s46 = ssub.s32 %s41, 1
      %s47 = ssub.s32 %s41, 2
      %s48 = sadd.s32 %s41, 1
      %s49 = ssub.s32 %s41, %s48
      %p50 = scmp.eq.s32.totalorder %s49, 0
      %s52 = sadd.s32 %s51, 1
      %s53 = scalar_select %p50, %s51, %s52
      %p56 = pneg %p50
      %p57 = scmp.eq.s32.totalorder %s41, 1
      %p58 = por %p56, %p57
      %p59 = scmp.ne.s32.totalorder %s51, %s54
      %p60 = scmp.eq.s32.totalorder %s41, 0
      %p61 = por %p59, %p60
      %p62 = scmp.ne.s32.totalorder %s51, %s54
      %p63 = scmp.eq.s32.totalorder %s46, 1
      %p64 = por %p62, %p63
      %p65 = scmp.ne.s32.totalorder %s54, %s55
      %p66 = scmp.eq.s32.totalorder %s46, 0
      %p67 = por %p65, %p66
      %p68 = scmp.ne.s32.totalorder %s54, %s55
      %p69 = scmp.eq.s32.totalorder %s47, 1
      %p70 = por %p68, %p69
      %p72 = scmp.ne.s32.totalorder %s55, %s71
      %p73 = scmp.eq.s32.totalorder %s47, 0
      %p74 = por %p72, %p73
      %s75 = ssub.s32 %s41, %s48
      %p76 = scmp.eq.s32.totalorder %s75, 0
      %s78 = sadd.s32 %s77, 1
      %s79 = scalar_select %p76, %s77, %s78
      %p82 = pneg %p76
      %p83 = scmp.eq.s32.totalorder %s41, 1
      %p84 = por %p82, %p83
      %p85 = scmp.ne.s32.totalorder %s77, %s80
      %p86 = scmp.eq.s32.totalorder %s41, 0
      %p87 = por %p85, %p86
      %p88 = scmp.ne.s32.totalorder %s77, %s80
      %p89 = scmp.eq.s32.totalorder %s46, 1
      %p90 = por %p88, %p89
      %p91 = scmp.ne.s32.totalorder %s80, %s81
      %p92 = scmp.eq.s32.totalorder %s46, 0
      %p93 = por %p91, %p92
      %p94 = scmp.ne.s32.totalorder %s80, %s81
      %p95 = scmp.eq.s32.totalorder %s47, 1
      %p96 = por %p94, %p95
      %p98 = scmp.ne.s32.totalorder %s81, %s97
      %p99 = scmp.eq.s32.totalorder %s47, 0
      %p100 = por %p98, %p99
      %s102 = sadd.s32 %s101, 1
      %p105 = scmp.eq.s32.totalorder %s41, 1
      %p106 = scmp.ne.s32.totalorder %s101, %s103
      %p107 = scmp.eq.s32.totalorder %s41, 0
      %p108 = por %p106, %p107
      %p109 = scmp.ne.s32.totalorder %s101, %s103
      %p110 = scmp.eq.s32.totalorder %s46, 1
      %p111 = por %p109, %p110
      %p112 = scmp.ne.s32.totalorder %s103, %s104
      %p113 = scmp.eq.s32.totalorder %s46, 0
      %p114 = por %p112, %p113
      %p115 = scmp.ne.s32.totalorder %s103, %s104
      %p116 = scmp.eq.s32.totalorder %s47, 1
      %p117 = por %p115, %p116
      %p119 = scmp.ne.s32.totalorder %s104, %s118
      %p120 = scmp.eq.s32.totalorder %s47, 0
      %p121 = por %p119, %p120
      %s123 = sadd.s32 %s122, 1
      %p126 = scmp.eq.s32.totalorder %s41, 1
      %p127 = scmp.ne.s32.totalorder %s122, %s124
      %p128 = scmp.eq.s32.totalorder %s41, 0
      %p129 = por %p127, %p128
      %p130 = scmp.ne.s32.totalorder %s122, %s124
      %p131 = scmp.eq.s32.totalorder %s46, 1
      %p132 = por %p130, %p131
      %p133 = scmp.ne.s32.totalorder %s124, %s125
      %p134 = scmp.eq.s32.totalorder %s46, 0
      %p135 = por %p133, %p134
      %p136 = scmp.ne.s32.totalorder %s124, %s125
      %p137 = scmp.eq.s32.totalorder %s47, 1
      %p138 = por %p136, %p137
      %p140 = scmp.ne.s32.totalorder %s125, %s139
      %p141 = scmp.eq.s32.totalorder %s47, 0
      %p142 = por %p140, %p141
      %s144 = sadd.s32 %s143, 1
      %p147 = scmp.eq.s32.totalorder %s41, 1
      %p148 = scmp.ne.s32.totalorder %s143, %s145
      %p149 = scmp.eq.s32.totalorder %s41, 0
      %p150 = por %p148, %p149
      %p151 = scmp.ne.s32.totalorder %s143, %s145
      %p152 = scmp.eq.s32.totalorder %s46, 1
      %p153 = por %p151, %p152
      %p154 = scmp.ne.s32.totalorder %s145, %s146
      %p155 = scmp.eq.s32.totalorder %s46, 0
      %p156 = por %p154, %p155
      %p157 = scmp.ne.s32.totalorder %s145, %s146
      %p158 = scmp.eq.s32.totalorder %s47, 1
      %p159 = por %p157, %p158
      %p161 = scmp.ne.s32.totalorder %s146, %s160
      %p162 = scmp.eq.s32.totalorder %s47, 0
      %p163 = por %p161, %p162
      %s165 = sadd.s32 %s164, 1
      %p168 = scmp.eq.s32.totalorder %s41, 1
      %p169 = scmp.ne.s32.totalorder %s164, %s166
      %p170 = scmp.eq.s32.totalorder %s41, 0
      %p171 = por %p169, %p170
      %p172 = scmp.ne.s32.totalorder %s164, %s166
      %p173 = scmp.eq.s32.totalorder %s46, 1
      %p174 = por %p172, %p173
      %p175 = scmp.ne.s32.totalorder %s166, %s167
      %p176 = scmp.eq.s32.totalorder %s46, 0
      %p177 = por %p175, %p176
      %p178 = scmp.ne.s32.totalorder %s166, %s167
      %p179 = scmp.eq.s32.totalorder %s47, 1
      %p180 = por %p178, %p179
      %p182 = scmp.ne.s32.totalorder %s167, %s181
      %p183 = scmp.eq.s32.totalorder %s47, 0
      %p184 = por %p182, %p183
      %s186 = sadd.s32 %s185, 1
      %p189 = scmp.eq.s32.totalorder %s41, 1
      %p190 = scmp.ne.s32.totalorder %s185, %s187
      %p191 = scmp.eq.s32.totalorder %s41, 0
      %p192 = por %p190, %p191
      %p193 = scmp.ne.s32.totalorder %s185, %s187
      %p194 = scmp.eq.s32.totalorder %s46, 1
      %p195 = por %p193, %p194
      %p196 = scmp.ne.s32.totalorder %s187, %s188
      %p197 = scmp.eq.s32.totalorder %s46, 0
      %p198 = por %p196, %p197
      %p199 = scmp.ne.s32.totalorder %s187, %s188
      %p200 = scmp.eq.s32.totalorder %s47, 1
      %p201 = por %p199, %p200
      %p203 = scmp.ne.s32.totalorder %s188, %s202
      %p204 = scmp.eq.s32.totalorder %s47, 0
      %p205 = por %p203, %p204
      %s207 = sadd.s32 %s206, 1
      %p210 = scmp.eq.s32.totalorder %s41, 1
      %p211 = scmp.ne.s32.totalorder %s206, %s208
      %p212 = scmp.eq.s32.totalorder %s41, 0
      %p213 = por %p211, %p212
      %p214 = scmp.ne.s32.totalorder %s206, %s208
      %p215 = scmp.eq.s32.totalorder %s46, 1
      %p216 = por %p214, %p215
      %p217 = scmp.ne.s32.totalorder %s208, %s209
      %p218 = scmp.eq.s32.totalorder %s46, 0
      %p219 = por %p217, %p218
      %p220 = scmp.ne.s32.totalorder %s208, %s209
      %p221 = scmp.eq.s32.totalorder %s47, 1
      %p222 = por %p220, %p221
      %p224 = scmp.ne.s32.totalorder %s209, %s223
      %p225 = scmp.eq.s32.totalorder %s47, 0
      %p226 = por %p224, %p225
      %s228 = sadd.s32 %s227, 1
      %p231 = scmp.eq.s32.totalorder %s41, 1
      %p232 = scmp.ne.s32.totalorder %s227, %s229
      %p233 = scmp.eq.s32.totalorder %s41, 0
      %p234 = por %p232, %p233
      %p235 = scmp.ne.s32.totalorder %s227, %s229
      %p236 = scmp.eq.s32.totalorder %s46, 1
      %p237 = por %p235, %p236
      %p238 = scmp.ne.s32.totalorder %s229, %s230
      %p239 = scmp.eq.s32.totalorder %s46, 0
      %p240 = por %p238, %p239
      %p241 = scmp.ne.s32.totalorder %s229, %s230
      %p242 = scmp.eq.s32.totalorder %s47, 1
      %p243 = por %p241, %p242
      %p245 = scmp.ne.s32.totalorder %s230, %s244
      %p246 = scmp.eq.s32.totalorder %s47, 0
      %p247 = por %p245, %p246
      %s249 = sadd.s32 %s248, 1
      %p252 = scmp.eq.s32.totalorder %s41, 1
      %p253 = scmp.ne.s32.totalorder %s248, %s250
      %p254 = scmp.eq.s32.totalorder %s41, 0
      %p255 = por %p253, %p254
      %p256 = scmp.ne.s32.totalorder %s248, %s250
      %p257 = scmp.eq.s32.totalorder %s46, 1
      %p258 = por %p256, %p257
      %p259 = scmp.ne.s32.totalorder %s250, %s251
      %p260 = scmp.eq.s32.totalorder %s46, 0
      %p261 = por %p259, %p260
      %p262 = scmp.ne.s32.totalorder %s250, %s251
      %p263 = scmp.eq.s32.totalorder %s47, 1
      %p264 = por %p262, %p263
      %p266 = scmp.ne.s32.totalorder %s251, %s265
      %p267 = scmp.eq.s32.totalorder %s47, 0
      %p268 = por %p266, %p267
      %s270 = sadd.s32 %s269, 1
      %p273 = scmp.eq.s32.totalorder %s41, 1
      %p274 = scmp.ne.s32.totalorder %s269, %s271
      %p275 = scmp.eq.s32.totalorder %s41, 0
      %p276 = por %p274, %p275
      %p277 = scmp.ne.s32.totalorder %s269, %s271
      %p278 = scmp.eq.s32.totalorder %s46, 1
      %p279 = por %p277, %p278
      %p280 = scmp.ne.s32.totalorder %s271, %s272
      %p281 = scmp.eq.s32.totalorder %s46, 0
      %p282 = por %p280, %p281
      %p283 = scmp.ne.s32.totalorder %s271, %s272
      %p284 = scmp.eq.s32.totalorder %s47, 1
      %p285 = por %p283, %p284
      %p287 = scmp.ne.s32.totalorder %s272, %s286
      %p288 = scmp.eq.s32.totalorder %s47, 0
      %p289 = por %p287, %p288
      %s291 = sadd.s32 %s290, 1
      %p294 = scmp.eq.s32.totalorder %s41, 1
      %p295 = scmp.ne.s32.totalorder %s290, %s292
      %p296 = scmp.eq.s32.totalorder %s41, 0
      %p297 = por %p295, %p296
      %p298 = scmp.ne.s32.totalorder %s290, %s292
      %p299 = scmp.eq.s32.totalorder %s46, 1
      %p300 = por %p298, %p299
      %p301 = scmp.ne.s32.totalorder %s292, %s293
      %p302 = scmp.eq.s32.totalorder %s46, 0
      %p303 = por %p301, %p302
      %p304 = scmp.ne.s32.totalorder %s292, %s293
      %p305 = scmp.eq.s32.totalorder %s47, 1
      %p306 = por %p304, %p305
      %p308 = scmp.ne.s32.totalorder %s293, %s307
      %p309 = scmp.eq.s32.totalorder %s47, 0
      %p310 = por %p308, %p309
      %s312 = sadd.s32 %s311, 1
      %p315 = scmp.eq.s32.totalorder %s41, 1
      %p316 = scmp.ne.s32.totalorder %s311, %s313
      %p317 = scmp.eq.s32.totalorder %s41, 0
      %p318 = por %p316, %p317
      %p319 = scmp.ne.s32.totalorder %s311, %s313
      %p320 = scmp.eq.s32.totalorder %s46, 1
      %p321 = por %p319, %p320
      %p322 = scmp.ne.s32.totalorder %s313, %s314
      %p323 = scmp.eq.s32.totalorder %s46, 0
      %p324 = por %p322, %p323
      %p325 = scmp.ne.s32.totalorder %s313, %s314
      %p326 = scmp.eq.s32.totalorder %s47, 1
      %p327 = por %p325, %p326
      %p329 = scmp.ne.s32.totalorder %s314, %s328
      %p330 = scmp.eq.s32.totalorder %s47, 0
      %p331 = por %p329, %p330
      %s333 = sadd.s32 %s332, 1
      %p336 = scmp.eq.s32.totalorder %s41, 1
      %p337 = scmp.ne.s32.totalorder %s332, %s334
      %p338 = scmp.eq.s32.totalorder %s41, 0
      %p339 = por %p337, %p338
      %p340 = scmp.ne.s32.totalorder %s332, %s334
      %p341 = scmp.eq.s32.totalorder %s46, 1
      %p342 = por %p340, %p341
      %p343 = scmp.ne.s32.totalorder %s334, %s335
      %p344 = scmp.eq.s32.totalorder %s46, 0
      %p345 = por %p343, %p344
      %p346 = scmp.ne.s32.totalorder %s334, %s335
      %p347 = scmp.eq.s32.totalorder %s47, 1
      %p348 = por %p346, %p347
      %p350 = scmp.ne.s32.totalorder %s335, %s349
      %p351 = scmp.eq.s32.totalorder %s47, 0
      %p352 = por %p350, %p351
      %s354 = sadd.s32 %s353, 1
      %p357 = scmp.eq.s32.totalorder %s41, 1
      %p358 = scmp.ne.s32.totalorder %s353, %s355
      %p359 = scmp.eq.s32.totalorder %s41, 0
      %p360 = por %p358, %p359
      %p361 = scmp.ne.s32.totalorder %s353, %s355
      %p362 = scmp.eq.s32.totalorder %s46, 1
      %p363 = por %p361, %p362
      %p364 = scmp.ne.s32.totalorder %s355, %s356
      %p365 = scmp.eq.s32.totalorder %s46, 0
      %p366 = por %p364, %p365
      %p367 = scmp.ne.s32.totalorder %s355, %s356
      %p368 = scmp.eq.s32.totalorder %s47, 1
      %p369 = por %p367, %p368
      %p371 = scmp.ne.s32.totalorder %s356, %s370
      %p372 = scmp.eq.s32.totalorder %s47, 0
      %p373 = por %p371, %p372
      %s375 = sadd.s32 %s374, 1
      %p378 = scmp.eq.s32.totalorder %s41, 1
      %p379 = scmp.ne.s32.totalorder %s374, %s376
      %p380 = scmp.eq.s32.totalorder %s41, 0
      %p381 = por %p379, %p380
      %p382 = scmp.ne.s32.totalorder %s374, %s376
      %p383 = scmp.eq.s32.totalorder %s46, 1
      %p384 = por %p382, %p383
      %p385 = scmp.ne.s32.totalorder %s376, %s377
      %p386 = scmp.eq.s32.totalorder %s46, 0
      %p387 = por %p385, %p386
      %p388 = scmp.ne.s32.totalorder %s376, %s377
      %p389 = scmp.eq.s32.totalorder %s47, 1
      %p390 = por %p388, %p389
      %p392 = scmp.ne.s32.totalorder %s377, %s391
      %p393 = scmp.eq.s32.totalorder %s47, 0
      %p394 = por %p392, %p393
      %s395 = ssub.s32 %s41, %s48
      %p396 = scmp.eq.s32.totalorder %s395, 0
      %s398 = sadd.s32 %s397, 1
      %s399 = scalar_select %p396, %s397, %s398
      %p402 = pneg %p396
      %p403 = scmp.eq.s32.totalorder %s41, 1
      %p404 = por %p402, %p403
      %p405 = scmp.ne.s32.totalorder %s397, %s400
      %p406 = scmp.eq.s32.totalorder %s41, 0
      %p407 = por %p405, %p406
      %p408 = scmp.ne.s32.totalorder %s397, %s400
      %p409 = scmp.eq.s32.totalorder %s46, 1
      %p410 = por %p408, %p409
      %p411 = scmp.ne.s32.totalorder %s400, %s401
      %p412 = scmp.eq.s32.totalorder %s46, 0
      %p413 = por %p411, %p412
      %p414 = scmp.ne.s32.totalorder %s400, %s401
      %p415 = scmp.eq.s32.totalorder %s47, 1
      %p416 = por %p414, %p415
      %p418 = scmp.ne.s32.totalorder %s401, %s417
      %p419 = scmp.eq.s32.totalorder %s47, 0
      %p420 = por %p418, %p419
      %s421 = ssub.s32 %s41, %s48
      %p422 = scmp.eq.s32.totalorder %s421, 0
      %s424 = sadd.s32 %s423, 1
      %s425 = scalar_select %p422, %s423, %s424
      %p428 = pneg %p422
      %p429 = scmp.eq.s32.totalorder %s41, 1
      %p430 = por %p428, %p429
      %p431 = scmp.ne.s32.totalorder %s423, %s426
      %p432 = scmp.eq.s32.totalorder %s41, 0
      %p433 = por %p431, %p432
      %p434 = scmp.ne.s32.totalorder %s423, %s426
      %p435 = scmp.eq.s32.totalorder %s46, 1
      %p436 = por %p434, %p435
      %p437 = scmp.ne.s32.totalorder %s426, %s427
      %p438 = scmp.eq.s32.totalorder %s46, 0
      %p439 = por %p437, %p438
      %p440 = scmp.ne.s32.totalorder %s426, %s427
      %p441 = scmp.eq.s32.totalorder %s47, 1
      %p442 = por %p440, %p441
      %p444 = scmp.ne.s32.totalorder %s427, %s443
      %p445 = scmp.eq.s32.totalorder %s47, 0
      %p446 = por %p444, %p445
      %s447 = ssub.s32 %s41, %s48
      %p448 = scmp.eq.s32.totalorder %s447, 0
      %s450 = sadd.s32 %s449, 1
      %s451 = scalar_select %p448, %s449, %s450
      %p454 = pneg %p448
      %p455 = scmp.eq.s32.totalorder %s41, 1
      %p456 = por %p454, %p455
      %p457 = scmp.ne.s32.totalorder %s449, %s452
      %p458 = scmp.eq.s32.totalorder %s41, 0
      %p459 = por %p457, %p458
      %p460 = scmp.ne.s32.totalorder %s449, %s452
      %p461 = scmp.eq.s32.totalorder %s46, 1
      %p462 = por %p460, %p461
      %p463 = scmp.ne.s32.totalorder %s452, %s453
      %p464 = scmp.eq.s32.totalorder %s46, 0
      %p465 = por %p463, %p464
      %p466 = scmp.ne.s32.totalorder %s452, %s453
      %p467 = scmp.eq.s32.totalorder %s47, 1
      %p468 = por %p466, %p467
      %p470 = scmp.ne.s32.totalorder %s453, %s469
      %p471 = scmp.eq.s32.totalorder %s47, 0
      %p472 = por %p470, %p471
      %s473 = ssub.s32 %s41, %s48
      %p474 = scmp.eq.s32.totalorder %s473, 0
      %s476 = sadd.s32 %s475, 1
      %s477 = scalar_select %p474, %s475, %s476
      %p480 = pneg %p474
      %p481 = scmp.eq.s32.totalorder %s41, 1
      %p482 = por %p480, %p481
      %p483 = scmp.ne.s32.totalorder %s475, %s478
      %p484 = scmp.eq.s32.totalorder %s41, 0
      %p485 = por %p483, %p484
      %p486 = scmp.ne.s32.totalorder %s475, %s478
      %p487 = scmp.eq.s32.totalorder %s46, 1
      %p488 = por %p486, %p487
      %p489 = scmp.ne.s32.totalorder %s478, %s479
      %p490 = scmp.eq.s32.totalorder %s46, 0
      %p491 = por %p489, %p490
      %p492 = scmp.ne.s32.totalorder %s478, %s479
      %p493 = scmp.eq.s32.totalorder %s47, 1
      %p494 = por %p492, %p493
      %p496 = scmp.ne.s32.totalorder %s479, %s495
      %p497 = scmp.eq.s32.totalorder %s47, 0
      %p498 = por %p496, %p497
      %p499 = scmp.le.s32.totalorder 1, %s41
      %p500 = scmp.lt.s32.totalorder %s41, 3
      %p501 = pnand %p499, %p500
      %p502 = pneg %p501
      // Predicated region
      $region9: #{generator_forward.1} parent=5 // pred_check
        _
      $region10: #{generator_forward.1} parent=5 // pred_check_branch
        %504 = sbr.rel (%p501) target = $region12
      $region11: #{generator_forward.1} parent=5 // pred_region
        %s505 = ssub.s32 %s41, 1
        // Predicated region
        $region13: #{generator_forward.1} parent=11 // pred_check
          %p506 = pneg %p114
        $region14: #{generator_forward.1} parent=11 // pred_check_branch
          %508 = sbr.rel (%p506) target = $region16
        $region15: #{generator_forward.1} parent=11 // pred_region
          %510 = vsyncadd [#allocation6], 0
          %s511 = sshll.u32 %s2, 4
          %s512 = int_to_ptr.hbm [resolvable:$true] %s511
          %s513 = sshll.u32 [#allocation5], 4
          %s514 = int_to_ptr.vmem [resolvable:$true] %s513
          %519 = dma.hbm_to_vmem [thread:$0]  %s512, 65536, %s514, [#allocation6], 512, 512, 32
        $region16: #{generator_forward.1} parent=11 // pred_fallthru
          _
        // Predicated region
        $region17: #{generator_forward.1} parent=11 // pred_check
          %p520 = pneg %p135
        $region18: #{generator_forward.1} parent=11 // pred_check_branch
          %522 = sbr.rel (%p520) target = $region20
        $region19: #{generator_forward.1} parent=11 // pred_region
          %524 = vsyncadd [#allocation6], 0
          %s526 = sshll.u32 %s3, 4
          %s527 = int_to_ptr.hbm [resolvable:$true] %s526
          %s528 = sshll.u32 [#allocation7], 4
          %s529 = int_to_ptr.vmem [resolvable:$true] %s528
          %531 = dma.hbm_to_vmem [thread:$0]  %s527, 64, %s529, [#allocation6]
        $region20: #{generator_forward.1} parent=11 // pred_fallthru
          _
        // Predicated region
        $region21: #{generator_forward.1} parent=11 // pred_check
          %p532 = pneg %p156
        $region22: #{generator_forward.1} parent=11 // pred_check_branch
          %534 = sbr.rel (%p532) target = $region24
        $region23: #{generator_forward.1} parent=11 // pred_region
          %536 = vsyncadd [#allocation9], 0
          %s537 = sshll.u32 %s4, 4
          %s538 = int_to_ptr.hbm [resolvable:$true] %s537
          %s539 = sshll.u32 [#allocation8], 4
          %s540 = int_to_ptr.vmem [resolvable:$true] %s539
          %545 = dma.hbm_to_vmem [thread:$0]  %s538, 16384, %s540, [#allocation9], 256, 256, 16
        $region24: #{generator_forward.1} parent=11 // pred_fallthru
          _
        // Predicated region
        $region25: #{generator_forward.1} parent=11 // pred_check
          %p546 = pneg %p177
        $region26: #{generator_forward.1} parent=11 // pred_check_branch
          %548 = sbr.rel (%p546) target = $region28
        $region27: #{generator_forward.1} parent=11 // pred_region
          %550 = vsyncadd [#allocation9], 0
          %s552 = sshll.u32 %s5, 4
          %s553 = int_to_ptr.hbm [resolvable:$true] %s552
          %s554 = sshll.u32 [#allocation10], 4
          %s555 = int_to_ptr.vmem [resolvable:$true] %s554
          %557 = dma.hbm_to_vmem [thread:$0]  %s553, 32, %s555, [#allocation9]
        $region28: #{generator_forward.1} parent=11 // pred_fallthru
          _
        // Predicated region
        $region29: #{generator_forward.1} parent=11 // pred_check
          %p558 = pneg %p198
        $region30: #{generator_forward.1} parent=11 // pred_check_branch
          %560 = sbr.rel (%p558) target = $region32
        $region31: #{generator_forward.1} parent=11 // pred_region
          _
        $region32: #{generator_forward.1} parent=11 // pred_fallthru
          _
        // Predicated region
        $region33: #{generator_forward.1} parent=11 // pred_check
          %p561 = pneg %p219
        $region34: #{generator_forward.1} parent=11 // pred_check_branch
          %563 = sbr.rel (%p561) target = $region36
        $region35: #{generator_forward.1} parent=11 // pred_region
          %565 = vsyncadd [#allocation12], 0
          %s567 = sshll.u32 %s7, 4
          %s568 = int_to_ptr.hbm [resolvable:$true] %s567
          %s569 = sshll.u32 [#allocation11], 4
          %s570 = int_to_ptr.vmem [resolvable:$true] %s569
          %572 = dma.hbm_to_vmem [thread:$0]  %s568, 16, %s570, [#allocation12]
        $region36: #{generator_forward.1} parent=11 // pred_fallthru
          _
        // Predicated region
        $region37: #{generator_forward.1} parent=11 // pred_check
          %p573 = pneg %p240
        $region38: #{generator_forward.1} parent=11 // pred_check_branch
          %575 = sbr.rel (%p573) target = $region40
        $region39: #{generator_forward.1} parent=11 // pred_region
          _
        $region40: #{generator_forward.1} parent=11 // pred_fallthru
          _
        // Predicated region
        $region41: #{generator_forward.1} parent=11 // pred_check
          %p576 = pneg %p261
        $region42: #{generator_forward.1} parent=11 // pred_check_branch
          %578 = sbr.rel (%p576) target = $region44
        $region43: #{generator_forward.1} parent=11 // pred_region
          %580 = vsyncadd [#allocation12], 0
          %s582 = sshll.u32 %s9, 4
          %s583 = int_to_ptr.hbm [resolvable:$true] %s582
          %s584 = sshll.u32 [#allocation13], 4
          %s585 = int_to_ptr.vmem [resolvable:$true] %s584
          %587 = dma.hbm_to_vmem [thread:$0]  %s583, 16, %s585, [#allocation12]
        $region44: #{generator_forward.1} parent=11 // pred_fallthru
          _
        // Predicated region
        $region45: #{generator_forward.1} parent=11 // pred_check
          %p588 = pneg %p282
        $region46: #{generator_forward.1} parent=11 // pred_check_branch
          %590 = sbr.rel (%p588) target = $region48
        $region47: #{generator_forward.1} parent=11 // pred_region
          %592 = vsyncadd [#allocation15], 0
          %s593 = sshll.u32 %s10, 4
          %s594 = int_to_ptr.hbm [resolvable:$true] %s593
          %s595 = sshll.u32 [#allocation14], 4
          %s596 = int_to_ptr.vmem [resolvable:$true] %s595
          %601 = dma.hbm_to_vmem [thread:$0]  %s594, 1024, %s596, [#allocation15], 256, 256, 16
        $region48: #{generator_forward.1} parent=11 // pred_fallthru
          _
        // Predicated region
        $region49: #{generator_forward.1} parent=11 // pred_check
          %p602 = pneg %p303
        $region50: #{generator_forward.1} parent=11 // pred_check_branch
          %604 = sbr.rel (%p602) target = $region52
        $region51: #{generator_forward.1} parent=11 // pred_region
          %606 = vsyncadd [#allocation15], 0
          %s608 = sshll.u32 %s11, 4
          %s609 = int_to_ptr.hbm [resolvable:$true] %s608
          %s610 = sshll.u32 [#allocation16], 4
          %s611 = int_to_ptr.vmem [resolvable:$true] %s610
          %613 = dma.hbm_to_vmem [thread:$0]  %s609, 32, %s611, [#allocation15]
        $region52: #{generator_forward.1} parent=11 // pred_fallthru
          _
        // Predicated region
        $region53: #{generator_forward.1} parent=11 // pred_check
          %p614 = pneg %p324
        $region54: #{generator_forward.1} parent=11 // pred_check_branch
          %616 = sbr.rel (%p614) target = $region56
        $region55: #{generator_forward.1} parent=11 // pred_region
          %618 = vsyncadd [#allocation18], 0
          %s619 = sshll.u32 %s12, 4
          %s620 = int_to_ptr.hbm [resolvable:$true] %s619
          %s621 = sshll.u32 [#allocation17], 4
          %s622 = int_to_ptr.vmem [resolvable:$true] %s621
          %627 = dma.hbm_to_vmem [thread:$0]  %s620, 16384, %s622, [#allocation18], 512, 512, 32
        $region56: #{generator_forward.1} parent=11 // pred_fallthru
          _
        // Predicated region
        $region57: #{generator_forward.1} parent=11 // pred_check
          %p628 = pneg %p345
        $region58: #{generator_forward.1} parent=11 // pred_check_branch
          %630 = sbr.rel (%p628) target = $region60
        $region59: #{generator_forward.1} parent=11 // pred_region
          %632 = vsyncadd [#allocation18], 0
          %s634 = sshll.u32 %s13, 4
          %s635 = int_to_ptr.hbm [resolvable:$true] %s634
          %s636 = sshll.u32 [#allocation19], 4
          %s637 = int_to_ptr.vmem [resolvable:$true] %s636
          %639 = dma.hbm_to_vmem [thread:$0]  %s635, 64, %s637, [#allocation18]
        $region60: #{generator_forward.1} parent=11 // pred_fallthru
          _
        // Predicated region
        $region61: #{generator_forward.1} parent=11 // pred_check
          %p640 = pneg %p366
        $region62: #{generator_forward.1} parent=11 // pred_check_branch
          %642 = sbr.rel (%p640) target = $region64
        $region63: #{generator_forward.1} parent=11 // pred_region
          %644 = vsyncadd [#allocation21], 0
          %s645 = sshll.u32 %s14, 4
          %s646 = int_to_ptr.hbm [resolvable:$true] %s645
          %s647 = sshll.u32 [#allocation20], 4
          %s648 = int_to_ptr.vmem [resolvable:$true] %s647
          %653 = dma.hbm_to_vmem [thread:$0]  %s646, 65536, %s648, [#allocation21], 1024, 1024, 64
        $region64: #{generator_forward.1} parent=11 // pred_fallthru
          _
        // Predicated region
        $region65: #{generator_forward.1} parent=11 // pred_check
          %p654 = pneg %p387
        $region66: #{generator_forward.1} parent=11 // pred_check_branch
          %656 = sbr.rel (%p654) target = $region68
        $region67: #{generator_forward.1} parent=11 // pred_region
          %658 = vsyncadd [#allocation21], 0
          %s660 = sshll.u32 %s15, 4
          %s661 = int_to_ptr.hbm [resolvable:$true] %s660
          %s662 = sshll.u32 [#allocation22], 4
          %s663 = int_to_ptr.vmem [resolvable:$true] %s662
          %665 = dma.hbm_to_vmem [thread:$0]  %s661, 128, %s663, [#allocation21]
        $region68: #{generator_forward.1} parent=11 // pred_fallthru
          _
      $region12: #{generator_forward.1} parent=5 // pred_fallthru
        _
      %p666 = scmp.lt.s32.totalorder %s41, 2
      // Predicated region
      $region69: #{generator_forward.1} parent=5 // pred_check
        %p667 = pneg %p666
      $region70: #{generator_forward.1} parent=5 // pred_check_branch
        %669 = sbr.rel (%p667) target = $region72
      $region71: #{generator_forward.1} parent=5 // pred_region
        // Predicated region
        $region73: #{generator_forward.1} parent=71 // pred_check
          %p670 = pneg %p61
        $region74: #{generator_forward.1} parent=71 // pred_check_branch
          %672 = sbr.rel (%p670) target = $region76
        $region75: #{generator_forward.1} parent=71 // pred_region
          %p673 = scmp.lt.s32.totalorder %s41, 1
          %s674 = scalar_select %p673, %s41, 1
          %s675 = smul.addr %s674, 8
          %s676 = scalar_lea.vmem %s0, %s675
        $region76: #{generator_forward.1} parent=71 // pred_fallthru
          _
        // Predicated region
        $region77: #{generator_forward.1} parent=71 // pred_check
          %p677 = pneg %p87
        $region78: #{generator_forward.1} parent=71 // pred_check_branch
          %679 = sbr.rel (%p677) target = $region80
        $region79: #{generator_forward.1} parent=71 // pred_region
          %s680 = sand.u32 %s77, 1
          %s681 = scalar_lea.sflag [#allocation3], %s680
          %s682 = sand.u32 %s77, 1
          %s683 = scalar_lea.vmem [#allocation2], %s682
          %685 = vsyncadd %s681, 0
          %s686 = scalar_lea.hbm %s1, %s41
          %s688 = sshll.u32 %s686, 4
          %s689 = int_to_ptr.hbm [resolvable:$true] %s688
          %s690 = sshll.u32 %s683, 4
          %s691 = int_to_ptr.vmem [resolvable:$true] %s690
          %693 = dma.hbm_to_vmem [thread:$0]  %s689, 16, %s691, %s681
        $region80: #{generator_forward.1} parent=71 // pred_fallthru
          _
      $region72: #{generator_forward.1} parent=5 // pred_fallthru
        _
      %p694 = scmp.le.s32.totalorder 1, %s41
      %p695 = scmp.lt.s32.totalorder %s41, 3
      %p696 = pnand %p694, %p695
      %p697 = pneg %p696
      // Predicated region
      $region81: #{generator_forward.1} parent=5 // pred_check
        _
      $region82: #{generator_forward.1} parent=5 // pred_check_branch
        %699 = sbr.rel (%p696) target = $region84
      $region83: #{generator_forward.1} parent=5 // pred_region
        %s700 = ssub.s32 %s41, 1
        %s701 = sand.u32 %s80, 1
        %s702 = scalar_lea.sflag [#allocation3], %s701
        %s703 = sand.u32 %s80, 1
        %s704 = scalar_lea.vmem [#allocation2], %s703
        // Predicated region
        $region85: #{generator_forward.1} parent=83 // pred_check
          %p705 = pneg %p93
        $region86: #{generator_forward.1} parent=83 // pred_check_branch
          %707 = sbr.rel (%p705) target = $region88
        $region87: #{generator_forward.1} parent=83 // pred_region
          %709 = dma.done %s702, 16
        $region88: #{generator_forward.1} parent=83 // pred_fallthru
          _
        // Predicated region
        $region89: #{generator_forward.1} parent=83 // pred_check
          %p710 = pneg %p114
        $region90: #{generator_forward.1} parent=83 // pred_check_branch
          %712 = sbr.rel (%p710) target = $region92
        $region91: #{generator_forward.1} parent=83 // pred_region
          %714 = dma.done [#allocation6], 65536
        $region92: #{generator_forward.1} parent=83 // pred_fallthru
          _
        // Predicated region
        $region93: #{generator_forward.1} parent=83 // pred_check
          %p715 = pneg %p135
        $region94: #{generator_forward.1} parent=83 // pred_check_branch
          %717 = sbr.rel (%p715) target = $region96
        $region95: #{generator_forward.1} parent=83 // pred_region
          %719 = dma.done [#allocation6], 64
        $region96: #{generator_forward.1} parent=83 // pred_fallthru
          _
        // Predicated region
        $region97: #{generator_forward.1} parent=83 // pred_check
          %p720 = pneg %p156
        $region98: #{generator_forward.1} parent=83 // pred_check_branch
          %722 = sbr.rel (%p720) target = $region100
        $region99: #{generator_forward.1} parent=83 // pred_region
          %724 = dma.done [#allocation9], 16384
        $region100: #{generator_forward.1} parent=83 // pred_fallthru
          _
        // Predicated region
        $region101: #{generator_forward.1} parent=83 // pred_check
          %p725 = pneg %p177
        $region102: #{generator_forward.1} parent=83 // pred_check_branch
          %727 = sbr.rel (%p725) target = $region104
        $region103: #{generator_forward.1} parent=83 // pred_region
          %729 = dma.done [#allocation9], 32
        $region104: #{generator_forward.1} parent=83 // pred_fallthru
          _
        // Predicated region
        $region105: #{generator_forward.1} parent=83 // pred_check
          %p730 = pneg %p219
        $region106: #{generator_forward.1} parent=83 // pred_check_branch
          %732 = sbr.rel (%p730) target = $region108
        $region107: #{generator_forward.1} parent=83 // pred_region
          %734 = dma.done [#allocation12], 16
        $region108: #{generator_forward.1} parent=83 // pred_fallthru
          _
        // Predicated region
        $region109: #{generator_forward.1} parent=83 // pred_check
          %p735 = pneg %p261
        $region110: #{generator_forward.1} parent=83 // pred_check_branch
          %737 = sbr.rel (%p735) target = $region112
        $region111: #{generator_forward.1} parent=83 // pred_region
          %739 = dma.done [#allocation12], 16
        $region112: #{generator_forward.1} parent=83 // pred_fallthru
          _
        // Predicated region
        $region113: #{generator_forward.1} parent=83 // pred_check
          %p740 = pneg %p282
        $region114: #{generator_forward.1} parent=83 // pred_check_branch
          %742 = sbr.rel (%p740) target = $region116
        $region115: #{generator_forward.1} parent=83 // pred_region
          %744 = dma.done [#allocation15], 1024
        $region116: #{generator_forward.1} parent=83 // pred_fallthru
          _
        // Predicated region
        $region117: #{generator_forward.1} parent=83 // pred_check
          %p745 = pneg %p303
        $region118: #{generator_forward.1} parent=83 // pred_check_branch
          %747 = sbr.rel (%p745) target = $region120
        $region119: #{generator_forward.1} parent=83 // pred_region
          %749 = dma.done [#allocation15], 32
        $region120: #{generator_forward.1} parent=83 // pred_fallthru
          _
        // Predicated region
        $region121: #{generator_forward.1} parent=83 // pred_check
          %p750 = pneg %p324
        $region122: #{generator_forward.1} parent=83 // pred_check_branch
          %752 = sbr.rel (%p750) target = $region124
        $region123: #{generator_forward.1} parent=83 // pred_region
          %754 = dma.done [#allocation18], 16384
        $region124: #{generator_forward.1} parent=83 // pred_fallthru
          _
        // Predicated region
        $region125: #{generator_forward.1} parent=83 // pred_check
          %p755 = pneg %p345
        $region126: #{generator_forward.1} parent=83 // pred_check_branch
          %757 = sbr.rel (%p755) target = $region128
        $region127: #{generator_forward.1} parent=83 // pred_region
          %759 = dma.done [#allocation18], 64
        $region128: #{generator_forward.1} parent=83 // pred_fallthru
          _
        // Predicated region
        $region129: #{generator_forward.1} parent=83 // pred_check
          %p760 = pneg %p366
        $region130: #{generator_forward.1} parent=83 // pred_check_branch
          %762 = sbr.rel (%p760) target = $region132
        $region131: #{generator_forward.1} parent=83 // pred_region
          %764 = dma.done [#allocation21], 65536
        $region132: #{generator_forward.1} parent=83 // pred_fallthru
          _
        // Predicated region
        $region133: #{generator_forward.1} parent=83 // pred_check
          %p765 = pneg %p387
        $region134: #{generator_forward.1} parent=83 // pred_check_branch
          %767 = sbr.rel (%p765) target = $region136
        $region135: #{generator_forward.1} parent=83 // pred_region
          %769 = dma.done [#allocation21], 128
        $region136: #{generator_forward.1} parent=83 // pred_fallthru
          _
        %p770 = scmp.lt.s32.totalorder %s46, 1
        %s771 = scalar_select %p770, %s46, 1
        %s772 = smul.addr %s771, 8
        %s773 = scalar_lea.vmem %s0, %s772
        %p774 = pneg %p67
        %p775 = pneg %p64
        %s776 = sand.u32 %s80, 1
        %s777 = scalar_lea.sflag [#allocation3], %s776
        %s778 = sand.u32 %s80, 1
        %s779 = scalar_lea.vmem [#allocation2], %s778
        %p780 = pneg %p93
        %p781 = pneg %p90
        %p782 = pneg %p114
        %p783 = pneg %p111
        %p784 = pneg %p135
        %p785 = pneg %p132
        %p786 = pneg %p156
        %p787 = pneg %p153
        %p788 = pneg %p177
        %p789 = pneg %p174
        %p790 = pneg %p198
        %p791 = pneg %p195
        %p792 = pneg %p219
        %p793 = pneg %p216
        %p794 = pneg %p240
        %p795 = pneg %p237
        %p796 = pneg %p261
        %p797 = pneg %p258
        %p798 = pneg %p282
        %p799 = pneg %p279
        %p800 = pneg %p303
        %p801 = pneg %p300
        %p802 = pneg %p324
        %p803 = pneg %p321
        %p804 = pneg %p345
        %p805 = pneg %p342
        %p806 = pneg %p366
        %p807 = pneg %p363
        %p808 = pneg %p387
        %p809 = pneg %p384
        %p810 = pneg %p413
        %p811 = pneg %p410
        %p812 = scmp.lt.s32.totalorder %s46, 1
        %s813 = scalar_select %p812, %s46, 1
        %s814 = smul.addr %s813, 8
        %s815 = scalar_lea.vmem %s16, %s814
        %p816 = pneg %p439
        %p817 = pneg %p436
        %s818 = sand.u32 %s426, 1
        %s819 = scalar_lea.sflag [#allocation4], %s818
        %s820 = sand.u32 %s426, 1
        %s821 = scalar_lea.vmem [#allocation23], %s820
        %p822 = pneg %p465
        %p823 = pneg %p462
        %s824 = sand.u32 %s46, 1
        %s825 = scalar_lea.sflag [#allocation25], %s824
        %s826 = sand.u32 %s452, 1
        %s827 = scalar_lea.vmem [#allocation24], %s826
        %p828 = pneg %p491
        %p829 = pneg %p488
        %s830 = sand.u32 %s46, 1
        %s831 = scalar_lea.sflag [#allocation25], %s830
        %s832 = sand.u32 %s478, 1
        %s833 = scalar_lea.vmem [#allocation26], %s832
        %p834 = scmp.lt.s32.totalorder %s46, 1
        %s835 = scalar_select %p834, %s46, 1
        %s836 = smul.addr %s835, 8
        %s837 = scalar_lea.vmem %s0, %s836
        %p838 = scmp.lt.s32.totalorder %s46, 1
        %s839 = scalar_select %p838, %s46, 1
        %s840 = smul.addr %s839, 8
        %s841 = scalar_lea.vmem %s16, %s840
        %v842 = vld [vmem:[%s837] sm:$0xff]
        %v843 = vld [vmem:[#allocation5] sm:$0xff]
        %v844 = vld [vmem:[#allocation5 + $0x8] sm:$0xff]
        %v845 = vld [vmem:[#allocation5 + $0x10] sm:$0xff]
        %v846 = vld [vmem:[#allocation5 + $0x18] sm:$0xff]
        %v847 = vld [vmem:[#allocation5 + $0x20] sm:$0xff]
        %v848 = vld [vmem:[#allocation5 + $0x28] sm:$0xff]
        %v849 = vld [vmem:[#allocation5 + $0x30] sm:$0xff]
        %v850 = vld [vmem:[#allocation5 + $0x38] sm:$0xff]
        %v851 = vld [vmem:[#allocation5 + $0x40] sm:$0xff]
        %v852 = vld [vmem:[#allocation5 + $0x48] sm:$0xff]
        %v853 = vld [vmem:[#allocation5 + $0x50] sm:$0xff]
        %v854 = vld [vmem:[#allocation5 + $0x58] sm:$0xff]
        %v855 = vld [vmem:[#allocation5 + $0x60] sm:$0xff]
        %v856 = vld [vmem:[#allocation5 + $0x68] sm:$0xff]
        %v857 = vld [vmem:[#allocation5 + $0x70] sm:$0xff]
        %v858 = vld [vmem:[#allocation5 + $0x78] sm:$0xff]
        %v859 = vld [vmem:[#allocation5 + $0x80] sm:$0xff]
        %v860 = vld [vmem:[#allocation5 + $0x88] sm:$0xff]
        %v861 = vld [vmem:[#allocation5 + $0x90] sm:$0xff]
        %v862 = vld [vmem:[#allocation5 + $0x98] sm:$0xff]
        %v863 = vld [vmem:[#allocation5 + $0xa0] sm:$0xff]
        %v864 = vld [vmem:[#allocation5 + $0xa8] sm:$0xff]
        %v865 = vld [vmem:[#allocation5 + $0xb0] sm:$0xff]
        %v866 = vld [vmem:[#allocation5 + $0xb8] sm:$0xff]
        %v867 = vld [vmem:[#allocation5 + $0xc0] sm:$0xff]
        %v868 = vld [vmem:[#allocation5 + $0xc8] sm:$0xff]
        %v869 = vld [vmem:[#allocation5 + $0xd0] sm:$0xff]
        %v870 = vld [vmem:[#allocation5 + $0xd8] sm:$0xff]
        %v871 = vld [vmem:[#allocation5 + $0xe0] sm:$0xff]
        %v872 = vld [vmem:[#allocation5 + $0xe8] sm:$0xff]
        %v873 = vld [vmem:[#allocation5 + $0xf0] sm:$0xff]
        %v874 = vld [vmem:[#allocation5 + $0xf8] sm:$0xff]
        %v875 = vld [vmem:[#allocation5 + $0x100] sm:$0xff]
        %v876 = vld [vmem:[#allocation5 + $0x108] sm:$0xff]
        %v877 = vld [vmem:[#allocation5 + $0x110] sm:$0xff]
        %v878 = vld [vmem:[#allocation5 + $0x118] sm:$0xff]
        %v879 = vld [vmem:[#allocation5 + $0x120] sm:$0xff]
        %v880 = vld [vmem:[#allocation5 + $0x128] sm:$0xff]
        %v881 = vld [vmem:[#allocation5 + $0x130] sm:$0xff]
        %v882 = vld [vmem:[#allocation5 + $0x138] sm:$0xff]
        %v883 = vld [vmem:[#allocation5 + $0x140] sm:$0xff]
        %v884 = vld [vmem:[#allocation5 + $0x148] sm:$0xff]
        %v885 = vld [vmem:[#allocation5 + $0x150] sm:$0xff]
        %v886 = vld [vmem:[#allocation5 + $0x158] sm:$0xff]
        %v887 = vld [vmem:[#allocation5 + $0x160] sm:$0xff]
        %v888 = vld [vmem:[#allocation5 + $0x168] sm:$0xff]
        %v889 = vld [vmem:[#allocation5 + $0x170] sm:$0xff]
        %v890 = vld [vmem:[#allocation5 + $0x178] sm:$0xff]
        %v891 = vld [vmem:[#allocation5 + $0x180] sm:$0xff]
        %v892 = vld [vmem:[#allocation5 + $0x188] sm:$0xff]
        %v893 = vld [vmem:[#allocation5 + $0x190] sm:$0xff]
        %v894 = vld [vmem:[#allocation5 + $0x198] sm:$0xff]
        %v895 = vld [vmem:[#allocation5 + $0x1a0] sm:$0xff]
        %v896 = vld [vmem:[#allocation5 + $0x1a8] sm:$0xff]
        %v897 = vld [vmem:[#allocation5 + $0x1b0] sm:$0xff]
        %v898 = vld [vmem:[#allocation5 + $0x1b8] sm:$0xff]
        %v899 = vld [vmem:[#allocation5 + $0x1c0] sm:$0xff]
        %v900 = vld [vmem:[#allocation5 + $0x1c8] sm:$0xff]
        %v901 = vld [vmem:[#allocation5 + $0x1d0] sm:$0xff]
        %v902 = vld [vmem:[#allocation5 + $0x1d8] sm:$0xff]
        %v903 = vld [vmem:[#allocation5 + $0x1e0] sm:$0xff]
        %v904 = vld [vmem:[#allocation5 + $0x1e8] sm:$0xff]
        %v905 = vld [vmem:[#allocation5 + $0x1f0] sm:$0xff]
        %v906 = vld [vmem:[#allocation5 + $0x1f8] sm:$0xff]
        %v907 = vld [vmem:[#allocation5 + $0x200] sm:$0xff]
        %v908 = vld [vmem:[#allocation5 + $0x208] sm:$0xff]
        %v909 = vld [vmem:[#allocation5 + $0x210] sm:$0xff]
        %v910 = vld [vmem:[#allocation5 + $0x218] sm:$0xff]
        %v911 = vld [vmem:[#allocation5 + $0x220] sm:$0xff]
        %v912 = vld [vmem:[#allocation5 + $0x228] sm:$0xff]
        %v913 = vld [vmem:[#allocation5 + $0x230] sm:$0xff]
        %v914 = vld [vmem:[#allocation5 + $0x238] sm:$0xff]
        %v915 = vld [vmem:[#allocation5 + $0x240] sm:$0xff]
        %v916 = vld [vmem:[#allocation5 + $0x248] sm:$0xff]
        %v917 = vld [vmem:[#allocation5 + $0x250] sm:$0xff]
        %v918 = vld [vmem:[#allocation5 + $0x258] sm:$0xff]
        %v919 = vld [vmem:[#allocation5 + $0x260] sm:$0xff]
        %v920 = vld [vmem:[#allocation5 + $0x268] sm:$0xff]
        %v921 = vld [vmem:[#allocation5 + $0x270] sm:$0xff]
        %v922 = vld [vmem:[#allocation5 + $0x278] sm:$0xff]
        %v923 = vld [vmem:[#allocation5 + $0x280] sm:$0xff]
        %v924 = vld [vmem:[#allocation5 + $0x288] sm:$0xff]
        %v925 = vld [vmem:[#allocation5 + $0x290] sm:$0xff]
        %v926 = vld [vmem:[#allocation5 + $0x298] sm:$0xff]
        %v927 = vld [vmem:[#allocation5 + $0x2a0] sm:$0xff]
        %v928 = vld [vmem:[#allocation5 + $0x2a8] sm:$0xff]
        %v929 = vld [vmem:[#allocation5 + $0x2b0] sm:$0xff]
        %v930 = vld [vmem:[#allocation5 + $0x2b8] sm:$0xff]
        %v931 = vld [vmem:[#allocation5 + $0x2c0] sm:$0xff]
        %v932 = vld [vmem:[#allocation5 + $0x2c8] sm:$0xff]
        %v933 = vld [vmem:[#allocation5 + $0x2d0] sm:$0xff]
        %v934 = vld [vmem:[#allocation5 + $0x2d8] sm:$0xff]
        %v935 = vld [vmem:[#allocation5 + $0x2e0] sm:$0xff]
        %v936 = vld [vmem:[#allocation5 + $0x2e8] sm:$0xff]
        %v937 = vld [vmem:[#allocation5 + $0x2f0] sm:$0xff]
        %v938 = vld [vmem:[#allocation5 + $0x2f8] sm:$0xff]
        %v939 = vld [vmem:[#allocation5 + $0x300] sm:$0xff]
        %v940 = vld [vmem:[#allocation5 + $0x308] sm:$0xff]
        %v941 = vld [vmem:[#allocation5 + $0x310] sm:$0xff]
        %v942 = vld [vmem:[#allocation5 + $0x318] sm:$0xff]
        %v943 = vld [vmem:[#allocation5 + $0x320] sm:$0xff]
        %v944 = vld [vmem:[#allocation5 + $0x328] sm:$0xff]
        %v945 = vld [vmem:[#allocation5 + $0x330] sm:$0xff]
        %v946 = vld [vmem:[#allocation5 + $0x338] sm:$0xff]
        %v947 = vld [vmem:[#allocation5 + $0x340] sm:$0xff]
        %v948 = vld [vmem:[#allocation5 + $0x348] sm:$0xff]
        %v949 = vld [vmem:[#allocation5 + $0x350] sm:$0xff]
        %v950 = vld [vmem:[#allocation5 + $0x358] sm:$0xff]
        %v951 = vld [vmem:[#allocation5 + $0x360] sm:$0xff]
        %v952 = vld [vmem:[#allocation5 + $0x368] sm:$0xff]
        %v953 = vld [vmem:[#allocation5 + $0x370] sm:$0xff]
        %v954 = vld [vmem:[#allocation5 + $0x378] sm:$0xff]
        %v955 = vld [vmem:[#allocation5 + $0x380] sm:$0xff]
        %v956 = vld [vmem:[#allocation5 + $0x388] sm:$0xff]
        %v957 = vld [vmem:[#allocation5 + $0x390] sm:$0xff]
        %v958 = vld [vmem:[#allocation5 + $0x398] sm:$0xff]
        %v959 = vld [vmem:[#allocation5 + $0x3a0] sm:$0xff]
        %v960 = vld [vmem:[#allocation5 + $0x3a8] sm:$0xff]
        %v961 = vld [vmem:[#allocation5 + $0x3b0] sm:$0xff]
        %v962 = vld [vmem:[#allocation5 + $0x3b8] sm:$0xff]
        %v963 = vld [vmem:[#allocation5 + $0x3c0] sm:$0xff]
        %v964 = vld [vmem:[#allocation5 + $0x3c8] sm:$0xff]
        %v965 = vld [vmem:[#allocation5 + $0x3d0] sm:$0xff]
        %v966 = vld [vmem:[#allocation5 + $0x3d8] sm:$0xff]
        %v967 = vld [vmem:[#allocation5 + $0x3e0] sm:$0xff]
        %v968 = vld [vmem:[#allocation5 + $0x3e8] sm:$0xff]
        %v969 = vld [vmem:[#allocation5 + $0x3f0] sm:$0xff]
        %v970 = vld [vmem:[#allocation5 + $0x3f8] sm:$0xff]
        %v971 = vld [vmem:[#allocation5 + $0x400] sm:$0xff]
        %v972 = vld [vmem:[#allocation5 + $0x408] sm:$0xff]
        %v973 = vld [vmem:[#allocation5 + $0x410] sm:$0xff]
        %v974 = vld [vmem:[#allocation5 + $0x418] sm:$0xff]
        %v975 = vld [vmem:[#allocation5 + $0x420] sm:$0xff]
        %v976 = vld [vmem:[#allocation5 + $0x428] sm:$0xff]
        %v977 = vld [vmem:[#allocation5 + $0x430] sm:$0xff]
        %v978 = vld [vmem:[#allocation5 + $0x438] sm:$0xff]
        %v979 = vld [vmem:[#allocation5 + $0x440] sm:$0xff]
        %v980 = vld [vmem:[#allocation5 + $0x448] sm:$0xff]
        %v981 = vld [vmem:[#allocation5 + $0x450] sm:$0xff]
        %v982 = vld [vmem:[#allocation5 + $0x458] sm:$0xff]
        %v983 = vld [vmem:[#allocation5 + $0x460] sm:$0xff]
        %v984 = vld [vmem:[#allocation5 + $0x468] sm:$0xff]
        %v985 = vld [vmem:[#allocation5 + $0x470] sm:$0xff]
        %v986 = vld [vmem:[#allocation5 + $0x478] sm:$0xff]
        %v987 = vld [vmem:[#allocation5 + $0x480] sm:$0xff]
        %v988 = vld [vmem:[#allocation5 + $0x488] sm:$0xff]
        %v989 = vld [vmem:[#allocation5 + $0x490] sm:$0xff]
        %v990 = vld [vmem:[#allocation5 + $0x498] sm:$0xff]
        %v991 = vld [vmem:[#allocation5 + $0x4a0] sm:$0xff]
        %v992 = vld [vmem:[#allocation5 + $0x4a8] sm:$0xff]
        %v993 = vld [vmem:[#allocation5 + $0x4b0] sm:$0xff]
        %v994 = vld [vmem:[#allocation5 + $0x4b8] sm:$0xff]
        %v995 = vld [vmem:[#allocation5 + $0x4c0] sm:$0xff]
        %v996 = vld [vmem:[#allocation5 + $0x4c8] sm:$0xff]
        %v997 = vld [vmem:[#allocation5 + $0x4d0] sm:$0xff]
        %v998 = vld [vmem:[#allocation5 + $0x4d8] sm:$0xff]
        %v999 = vld [vmem:[#allocation5 + $0x4e0] sm:$0xff]
        %v1000 = vld [vmem:[#allocation5 + $0x4e8] sm:$0xff]
        %v1001 = vld [vmem:[#allocation5 + $0x4f0] sm:$0xff]
        %v1002 = vld [vmem:[#allocation5 + $0x4f8] sm:$0xff]
        %v1003 = vld [vmem:[#allocation5 + $0x500] sm:$0xff]
        %v1004 = vld [vmem:[#allocation5 + $0x508] sm:$0xff]
        %v1005 = vld [vmem:[#allocation5 + $0x510] sm:$0xff]
        %v1006 = vld [vmem:[#allocation5 + $0x518] sm:$0xff]
        %v1007 = vld [vmem:[#allocation5 + $0x520] sm:$0xff]
        %v1008 = vld [vmem:[#allocation5 + $0x528] sm:$0xff]
        %v1009 = vld [vmem:[#allocation5 + $0x530] sm:$0xff]
        %v1010 = vld [vmem:[#allocation5 + $0x538] sm:$0xff]
        %v1011 = vld [vmem:[#allocation5 + $0x540] sm:$0xff]
        %v1012 = vld [vmem:[#allocation5 + $0x548] sm:$0xff]
        %v1013 = vld [vmem:[#allocation5 + $0x550] sm:$0xff]
        %v1014 = vld [vmem:[#allocation5 + $0x558] sm:$0xff]
        %v1015 = vld [vmem:[#allocation5 + $0x560] sm:$0xff]
        %v1016 = vld [vmem:[#allocation5 + $0x568] sm:$0xff]
        %v1017 = vld [vmem:[#allocation5 + $0x570] sm:$0xff]
        %v1018 = vld [vmem:[#allocation5 + $0x578] sm:$0xff]
        %v1019 = vld [vmem:[#allocation5 + $0x580] sm:$0xff]
        %v1020 = vld [vmem:[#allocation5 + $0x588] sm:$0xff]
        %v1021 = vld [vmem:[#allocation5 + $0x590] sm:$0xff]
        %v1022 = vld [vmem:[#allocation5 + $0x598] sm:$0xff]
        %v1023 = vld [vmem:[#allocation5 + $0x5a0] sm:$0xff]
        %v1024 = vld [vmem:[#allocation5 + $0x5a8] sm:$0xff]
        %v1025 = vld [vmem:[#allocation5 + $0x5b0] sm:$0xff]
        %v1026 = vld [vmem:[#allocation5 + $0x5b8] sm:$0xff]
        %v1027 = vld [vmem:[#allocation5 + $0x5c0] sm:$0xff]
        %v1028 = vld [vmem:[#allocation5 + $0x5c8] sm:$0xff]
        %v1029 = vld [vmem:[#allocation5 + $0x5d0] sm:$0xff]
        %v1030 = vld [vmem:[#allocation5 + $0x5d8] sm:$0xff]
        %v1031 = vld [vmem:[#allocation5 + $0x5e0] sm:$0xff]
        %v1032 = vld [vmem:[#allocation5 + $0x5e8] sm:$0xff]
        %v1033 = vld [vmem:[#allocation5 + $0x5f0] sm:$0xff]
        %v1034 = vld [vmem:[#allocation5 + $0x5f8] sm:$0xff]
        %v1035 = vld [vmem:[#allocation5 + $0x600] sm:$0xff]
        %v1036 = vld [vmem:[#allocation5 + $0x608] sm:$0xff]
        %v1037 = vld [vmem:[#allocation5 + $0x610] sm:$0xff]
        %v1038 = vld [vmem:[#allocation5 + $0x618] sm:$0xff]
        %v1039 = vld [vmem:[#allocation5 + $0x620] sm:$0xff]
        %v1040 = vld [vmem:[#allocation5 + $0x628] sm:$0xff]
        %v1041 = vld [vmem:[#allocation5 + $0x630] sm:$0xff]
        %v1042 = vld [vmem:[#allocation5 + $0x638] sm:$0xff]
        %v1043 = vld [vmem:[#allocation5 + $0x640] sm:$0xff]
        %v1044 = vld [vmem:[#allocation5 + $0x648] sm:$0xff]
        %v1045 = vld [vmem:[#allocation5 + $0x650] sm:$0xff]
        %v1046 = vld [vmem:[#allocation5 + $0x658] sm:$0xff]
        %v1047 = vld [vmem:[#allocation5 + $0x660] sm:$0xff]
        %v1048 = vld [vmem:[#allocation5 + $0x668] sm:$0xff]
        %v1049 = vld [vmem:[#allocation5 + $0x670] sm:$0xff]
        %v1050 = vld [vmem:[#allocation5 + $0x678] sm:$0xff]
        %v1051 = vld [vmem:[#allocation5 + $0x680] sm:$0xff]
        %v1052 = vld [vmem:[#allocation5 + $0x688] sm:$0xff]
        %v1053 = vld [vmem:[#allocation5 + $0x690] sm:$0xff]
        %v1054 = vld [vmem:[#allocation5 + $0x698] sm:$0xff]
        %v1055 = vld [vmem:[#allocation5 + $0x6a0] sm:$0xff]
        %v1056 = vld [vmem:[#allocation5 + $0x6a8] sm:$0xff]
        %v1057 = vld [vmem:[#allocation5 + $0x6b0] sm:$0xff]
        %v1058 = vld [vmem:[#allocation5 + $0x6b8] sm:$0xff]
        %v1059 = vld [vmem:[#allocation5 + $0x6c0] sm:$0xff]
        %v1060 = vld [vmem:[#allocation5 + $0x6c8] sm:$0xff]
        %v1061 = vld [vmem:[#allocation5 + $0x6d0] sm:$0xff]
        %v1062 = vld [vmem:[#allocation5 + $0x6d8] sm:$0xff]
        %v1063 = vld [vmem:[#allocation5 + $0x6e0] sm:$0xff]
        %v1064 = vld [vmem:[#allocation5 + $0x6e8] sm:$0xff]
        %v1065 = vld [vmem:[#allocation5 + $0x6f0] sm:$0xff]
        %v1066 = vld [vmem:[#allocation5 + $0x6f8] sm:$0xff]
        %v1067 = vld [vmem:[#allocation5 + $0x700] sm:$0xff]
        %v1068 = vld [vmem:[#allocation5 + $0x708] sm:$0xff]
        %v1069 = vld [vmem:[#allocation5 + $0x710] sm:$0xff]
        %v1070 = vld [vmem:[#allocation5 + $0x718] sm:$0xff]
        %v1071 = vld [vmem:[#allocation5 + $0x720] sm:$0xff]
        %v1072 = vld [vmem:[#allocation5 + $0x728] sm:$0xff]
        %v1073 = vld [vmem:[#allocation5 + $0x730] sm:$0xff]
        %v1074 = vld [vmem:[#allocation5 + $0x738] sm:$0xff]
        %v1075 = vld [vmem:[#allocation5 + $0x740] sm:$0xff]
        %v1076 = vld [vmem:[#allocation5 + $0x748] sm:$0xff]
        %v1077 = vld [vmem:[#allocation5 + $0x750] sm:$0xff]
        %v1078 = vld [vmem:[#allocation5 + $0x758] sm:$0xff]
        %v1079 = vld [vmem:[#allocation5 + $0x760] sm:$0xff]
        %v1080 = vld [vmem:[#allocation5 + $0x768] sm:$0xff]
        %v1081 = vld [vmem:[#allocation5 + $0x770] sm:$0xff]
        %v1082 = vld [vmem:[#allocation5 + $0x778] sm:$0xff]
        %v1083 = vld [vmem:[#allocation5 + $0x780] sm:$0xff]
        %v1084 = vld [vmem:[#allocation5 + $0x788] sm:$0xff]
        %v1085 = vld [vmem:[#allocation5 + $0x790] sm:$0xff]
        %v1086 = vld [vmem:[#allocation5 + $0x798] sm:$0xff]
        %v1087 = vld [vmem:[#allocation5 + $0x7a0] sm:$0xff]
        %v1088 = vld [vmem:[#allocation5 + $0x7a8] sm:$0xff]
        %v1089 = vld [vmem:[#allocation5 + $0x7b0] sm:$0xff]
        %v1090 = vld [vmem:[#allocation5 + $0x7b8] sm:$0xff]
        %v1091 = vld [vmem:[#allocation5 + $0x7c0] sm:$0xff]
        %v1092 = vld [vmem:[#allocation5 + $0x7c8] sm:$0xff]
        %v1093 = vld [vmem:[#allocation5 + $0x7d0] sm:$0xff]
        %v1094 = vld [vmem:[#allocation5 + $0x7d8] sm:$0xff]
        %v1095 = vld [vmem:[#allocation5 + $0x7e0] sm:$0xff]
        %v1096 = vld [vmem:[#allocation5 + $0x7e8] sm:$0xff]
        %v1097 = vld [vmem:[#allocation5 + $0x7f0] sm:$0xff]
        %v1098 = vld [vmem:[#allocation5 + $0x7f8] sm:$0xff]
        %v1099 = vld [vmem:[#allocation5 + $0x800] sm:$0xff]
        %v1100 = vld [vmem:[#allocation5 + $0x808] sm:$0xff]
        %v1101 = vld [vmem:[#allocation5 + $0x810] sm:$0xff]
        %v1102 = vld [vmem:[#allocation5 + $0x818] sm:$0xff]
        %v1103 = vld [vmem:[#allocation5 + $0x820] sm:$0xff]
        %v1104 = vld [vmem:[#allocation5 + $0x828] sm:$0xff]
        %v1105 = vld [vmem:[#allocation5 + $0x830] sm:$0xff]
        %v1106 = vld [vmem:[#allocation5 + $0x838] sm:$0xff]
        %v1107 = vld [vmem:[#allocation5 + $0x840] sm:$0xff]
        %v1108 = vld [vmem:[#allocation5 + $0x848] sm:$0xff]
        %v1109 = vld [vmem:[#allocation5 + $0x850] sm:$0xff]
        %v1110 = vld [vmem:[#allocation5 + $0x858] sm:$0xff]
        %v1111 = vld [vmem:[#allocation5 + $0x860] sm:$0xff]
        %v1112 = vld [vmem:[#allocation5 + $0x868] sm:$0xff]
        %v1113 = vld [vmem:[#allocation5 + $0x870] sm:$0xff]
        %v1114 = vld [vmem:[#allocation5 + $0x878] sm:$0xff]
        %v1115 = vld [vmem:[#allocation5 + $0x880] sm:$0xff]
        %v1116 = vld [vmem:[#allocation5 + $0x888] sm:$0xff]
        %v1117 = vld [vmem:[#allocation5 + $0x890] sm:$0xff]
        %v1118 = vld [vmem:[#allocation5 + $0x898] sm:$0xff]
        %v1119 = vld [vmem:[#allocation5 + $0x8a0] sm:$0xff]
        %v1120 = vld [vmem:[#allocation5 + $0x8a8] sm:$0xff]
        %v1121 = vld [vmem:[#allocation5 + $0x8b0] sm:$0xff]
        %v1122 = vld [vmem:[#allocation5 + $0x8b8] sm:$0xff]
        %v1123 = vld [vmem:[#allocation5 + $0x8c0] sm:$0xff]
        %v1124 = vld [vmem:[#allocation5 + $0x8c8] sm:$0xff]
        %v1125 = vld [vmem:[#allocation5 + $0x8d0] sm:$0xff]
        %v1126 = vld [vmem:[#allocation5 + $0x8d8] sm:$0xff]
        %v1127 = vld [vmem:[#allocation5 + $0x8e0] sm:$0xff]
        %v1128 = vld [vmem:[#allocation5 + $0x8e8] sm:$0xff]
        %v1129 = vld [vmem:[#allocation5 + $0x8f0] sm:$0xff]
        %v1130 = vld [vmem:[#allocation5 + $0x8f8] sm:$0xff]
        %v1131 = vld [vmem:[#allocation5 + $0x900] sm:$0xff]
        %v1132 = vld [vmem:[#allocation5 + $0x908] sm:$0xff]
        %v1133 = vld [vmem:[#allocation5 + $0x910] sm:$0xff]
        %v1134 = vld [vmem:[#allocation5 + $0x918] sm:$0xff]
        %v1135 = vld [vmem:[#allocation5 + $0x920] sm:$0xff]
        %v1136 = vld [vmem:[#allocation5 + $0x928] sm:$0xff]
        %v1137 = vld [vmem:[#allocation5 + $0x930] sm:$0xff]
        %v1138 = vld [vmem:[#allocation5 + $0x938] sm:$0xff]
        %v1139 = vld [vmem:[#allocation5 + $0x940] sm:$0xff]
        %v1140 = vld [vmem:[#allocation5 + $0x948] sm:$0xff]
        %v1141 = vld [vmem:[#allocation5 + $0x950] sm:$0xff]
        %v1142 = vld [vmem:[#allocation5 + $0x958] sm:$0xff]
        %v1143 = vld [vmem:[#allocation5 + $0x960] sm:$0xff]
        %v1144 = vld [vmem:[#allocation5 + $0x968] sm:$0xff]
        %v1145 = vld [vmem:[#allocation5 + $0x970] sm:$0xff]
        %v1146 = vld [vmem:[#allocation5 + $0x978] sm:$0xff]
        %v1147 = vld [vmem:[#allocation5 + $0x980] sm:$0xff]
        %v1148 = vld [vmem:[#allocation5 + $0x988] sm:$0xff]
        %v1149 = vld [vmem:[#allocation5 + $0x990] sm:$0xff]
        %v1150 = vld [vmem:[#allocation5 + $0x998] sm:$0xff]
        %v1151 = vld [vmem:[#allocation5 + $0x9a0] sm:$0xff]
        %v1152 = vld [vmem:[#allocation5 + $0x9a8] sm:$0xff]
        %v1153 = vld [vmem:[#allocation5 + $0x9b0] sm:$0xff]
        %v1154 = vld [vmem:[#allocation5 + $0x9b8] sm:$0xff]
        %v1155 = vld [vmem:[#allocation5 + $0x9c0] sm:$0xff]
        %v1156 = vld [vmem:[#allocation5 + $0x9c8] sm:$0xff]
        %v1157 = vld [vmem:[#allocation5 + $0x9d0] sm:$0xff]
        %v1158 = vld [vmem:[#allocation5 + $0x9d8] sm:$0xff]
        %v1159 = vld [vmem:[#allocation5 + $0x9e0] sm:$0xff]
        %v1160 = vld [vmem:[#allocation5 + $0x9e8] sm:$0xff]
        %v1161 = vld [vmem:[#allocation5 + $0x9f0] sm:$0xff]
        %v1162 = vld [vmem:[#allocation5 + $0x9f8] sm:$0xff]
        %v1163 = vld [vmem:[#allocation5 + $0xa00] sm:$0xff]
        %v1164 = vld [vmem:[#allocation5 + $0xa08] sm:$0xff]
        %v1165 = vld [vmem:[#allocation5 + $0xa10] sm:$0xff]
        %v1166 = vld [vmem:[#allocation5 + $0xa18] sm:$0xff]
        %v1167 = vld [vmem:[#allocation5 + $0xa20] sm:$0xff]
        %v1168 = vld [vmem:[#allocation5 + $0xa28] sm:$0xff]
        %v1169 = vld [vmem:[#allocation5 + $0xa30] sm:$0xff]
        %v1170 = vld [vmem:[#allocation5 + $0xa38] sm:$0xff]
        %v1171 = vld [vmem:[#allocation5 + $0xa40] sm:$0xff]
        %v1172 = vld [vmem:[#allocation5 + $0xa48] sm:$0xff]
        %v1173 = vld [vmem:[#allocation5 + $0xa50] sm:$0xff]
        %v1174 = vld [vmem:[#allocation5 + $0xa58] sm:$0xff]
        %v1175 = vld [vmem:[#allocation5 + $0xa60] sm:$0xff]
        %v1176 = vld [vmem:[#allocation5 + $0xa68] sm:$0xff]
        %v1177 = vld [vmem:[#allocation5 + $0xa70] sm:$0xff]
        %v1178 = vld [vmem:[#allocation5 + $0xa78] sm:$0xff]
        %v1179 = vld [vmem:[#allocation5 + $0xa80] sm:$0xff]
        %v1180 = vld [vmem:[#allocation5 + $0xa88] sm:$0xff]
        %v1181 = vld [vmem:[#allocation5 + $0xa90] sm:$0xff]
        %v1182 = vld [vmem:[#allocation5 + $0xa98] sm:$0xff]
        %v1183 = vld [vmem:[#allocation5 + $0xaa0] sm:$0xff]
        %v1184 = vld [vmem:[#allocation5 + $0xaa8] sm:$0xff]
        %v1185 = vld [vmem:[#allocation5 + $0xab0] sm:$0xff]
        %v1186 = vld [vmem:[#allocation5 + $0xab8] sm:$0xff]
        %v1187 = vld [vmem:[#allocation5 + $0xac0] sm:$0xff]
        %v1188 = vld [vmem:[#allocation5 + $0xac8] sm:$0xff]
        %v1189 = vld [vmem:[#allocation5 + $0xad0] sm:$0xff]
        %v1190 = vld [vmem:[#allocation5 + $0xad8] sm:$0xff]
        %v1191 = vld [vmem:[#allocation5 + $0xae0] sm:$0xff]
        %v1192 = vld [vmem:[#allocation5 + $0xae8] sm:$0xff]
        %v1193 = vld [vmem:[#allocation5 + $0xaf0] sm:$0xff]
        %v1194 = vld [vmem:[#allocation5 + $0xaf8] sm:$0xff]
        %v1195 = vld [vmem:[#allocation5 + $0xb00] sm:$0xff]
        %v1196 = vld [vmem:[#allocation5 + $0xb08] sm:$0xff]
        %v1197 = vld [vmem:[#allocation5 + $0xb10] sm:$0xff]
        %v1198 = vld [vmem:[#allocation5 + $0xb18] sm:$0xff]
        %v1199 = vld [vmem:[#allocation5 + $0xb20] sm:$0xff]
        %v1200 = vld [vmem:[#allocation5 + $0xb28] sm:$0xff]
        %v1201 = vld [vmem:[#allocation5 + $0xb30] sm:$0xff]
        %v1202 = vld [vmem:[#allocation5 + $0xb38] sm:$0xff]
        %v1203 = vld [vmem:[#allocation5 + $0xb40] sm:$0xff]
        %v1204 = vld [vmem:[#allocation5 + $0xb48] sm:$0xff]
        %v1205 = vld [vmem:[#allocation5 + $0xb50] sm:$0xff]
        %v1206 = vld [vmem:[#allocation5 + $0xb58] sm:$0xff]
        %v1207 = vld [vmem:[#allocation5 + $0xb60] sm:$0xff]
        %v1208 = vld [vmem:[#allocation5 + $0xb68] sm:$0xff]
        %v1209 = vld [vmem:[#allocation5 + $0xb70] sm:$0xff]
        %v1210 = vld [vmem:[#allocation5 + $0xb78] sm:$0xff]
        %v1211 = vld [vmem:[#allocation5 + $0xb80] sm:$0xff]
        %v1212 = vld [vmem:[#allocation5 + $0xb88] sm:$0xff]
        %v1213 = vld [vmem:[#allocation5 + $0xb90] sm:$0xff]
        %v1214 = vld [vmem:[#allocation5 + $0xb98] sm:$0xff]
        %v1215 = vld [vmem:[#allocation5 + $0xba0] sm:$0xff]
        %v1216 = vld [vmem:[#allocation5 + $0xba8] sm:$0xff]
        %v1217 = vld [vmem:[#allocation5 + $0xbb0] sm:$0xff]
        %v1218 = vld [vmem:[#allocation5 + $0xbb8] sm:$0xff]
        %v1219 = vld [vmem:[#allocation5 + $0xbc0] sm:$0xff]
        %v1220 = vld [vmem:[#allocation5 + $0xbc8] sm:$0xff]
        %v1221 = vld [vmem:[#allocation5 + $0xbd0] sm:$0xff]
        %v1222 = vld [vmem:[#allocation5 + $0xbd8] sm:$0xff]
        %v1223 = vld [vmem:[#allocation5 + $0xbe0] sm:$0xff]
        %v1224 = vld [vmem:[#allocation5 + $0xbe8] sm:$0xff]
        %v1225 = vld [vmem:[#allocation5 + $0xbf0] sm:$0xff]
        %v1226 = vld [vmem:[#allocation5 + $0xbf8] sm:$0xff]
        %v1227 = vld [vmem:[#allocation5 + $0xc00] sm:$0xff]
        %v1228 = vld [vmem:[#allocation5 + $0xc08] sm:$0xff]
        %v1229 = vld [vmem:[#allocation5 + $0xc10] sm:$0xff]
        %v1230 = vld [vmem:[#allocation5 + $0xc18] sm:$0xff]
        %v1231 = vld [vmem:[#allocation5 + $0xc20] sm:$0xff]
        %v1232 = vld [vmem:[#allocation5 + $0xc28] sm:$0xff]
        %v1233 = vld [vmem:[#allocation5 + $0xc30] sm:$0xff]
        %v1234 = vld [vmem:[#allocation5 + $0xc38] sm:$0xff]
        %v1235 = vld [vmem:[#allocation5 + $0xc40] sm:$0xff]
        %v1236 = vld [vmem:[#allocation5 + $0xc48] sm:$0xff]
        %v1237 = vld [vmem:[#allocation5 + $0xc50] sm:$0xff]
        %v1238 = vld [vmem:[#allocation5 + $0xc58] sm:$0xff]
        %v1239 = vld [vmem:[#allocation5 + $0xc60] sm:$0xff]
        %v1240 = vld [vmem:[#allocation5 + $0xc68] sm:$0xff]
        %v1241 = vld [vmem:[#allocation5 + $0xc70] sm:$0xff]
        %v1242 = vld [vmem:[#allocation5 + $0xc78] sm:$0xff]
        %v1243 = vld [vmem:[#allocation5 + $0xc80] sm:$0xff]
        %v1244 = vld [vmem:[#allocation5 + $0xc88] sm:$0xff]
        %v1245 = vld [vmem:[#allocation5 + $0xc90] sm:$0xff]
        %v1246 = vld [vmem:[#allocation5 + $0xc98] sm:$0xff]
        %v1247 = vld [vmem:[#allocation5 + $0xca0] sm:$0xff]
        %v1248 = vld [vmem:[#allocation5 + $0xca8] sm:$0xff]
        %v1249 = vld [vmem:[#allocation5 + $0xcb0] sm:$0xff]
        %v1250 = vld [vmem:[#allocation5 + $0xcb8] sm:$0xff]
        %v1251 = vld [vmem:[#allocation5 + $0xcc0] sm:$0xff]
        %v1252 = vld [vmem:[#allocation5 + $0xcc8] sm:$0xff]
        %v1253 = vld [vmem:[#allocation5 + $0xcd0] sm:$0xff]
        %v1254 = vld [vmem:[#allocation5 + $0xcd8] sm:$0xff]
        %v1255 = vld [vmem:[#allocation5 + $0xce0] sm:$0xff]
        %v1256 = vld [vmem:[#allocation5 + $0xce8] sm:$0xff]
        %v1257 = vld [vmem:[#allocation5 + $0xcf0] sm:$0xff]
        %v1258 = vld [vmem:[#allocation5 + $0xcf8] sm:$0xff]
        %v1259 = vld [vmem:[#allocation5 + $0xd00] sm:$0xff]
        %v1260 = vld [vmem:[#allocation5 + $0xd08] sm:$0xff]
        %v1261 = vld [vmem:[#allocation5 + $0xd10] sm:$0xff]
        %v1262 = vld [vmem:[#allocation5 + $0xd18] sm:$0xff]
        %v1263 = vld [vmem:[#allocation5 + $0xd20] sm:$0xff]
        %v1264 = vld [vmem:[#allocation5 + $0xd28] sm:$0xff]
        %v1265 = vld [vmem:[#allocation5 + $0xd30] sm:$0xff]
        %v1266 = vld [vmem:[#allocation5 + $0xd38] sm:$0xff]
        %v1267 = vld [vmem:[#allocation5 + $0xd40] sm:$0xff]
        %v1268 = vld [vmem:[#allocation5 + $0xd48] sm:$0xff]
        %v1269 = vld [vmem:[#allocation5 + $0xd50] sm:$0xff]
        %v1270 = vld [vmem:[#allocation5 + $0xd58] sm:$0xff]
        %v1271 = vld [vmem:[#allocation5 + $0xd60] sm:$0xff]
        %v1272 = vld [vmem:[#allocation5 + $0xd68] sm:$0xff]
        %v1273 = vld [vmem:[#allocation5 + $0xd70] sm:$0xff]
        %v1274 = vld [vmem:[#allocation5 + $0xd78] sm:$0xff]
        %v1275 = vld [vmem:[#allocation5 + $0xd80] sm:$0xff]
        %v1276 = vld [vmem:[#allocation5 + $0xd88] sm:$0xff]
        %v1277 = vld [vmem:[#allocation5 + $0xd90] sm:$0xff]
        %v1278 = vld [vmem:[#allocation5 + $0xd98] sm:$0xff]
        %v1279 = vld [vmem:[#allocation5 + $0xda0] sm:$0xff]
        %v1280 = vld [vmem:[#allocation5 + $0xda8] sm:$0xff]
        %v1281 = vld [vmem:[#allocation5 + $0xdb0] sm:$0xff]
        %v1282 = vld [vmem:[#allocation5 + $0xdb8] sm:$0xff]
        %v1283 = vld [vmem:[#allocation5 + $0xdc0] sm:$0xff]
        %v1284 = vld [vmem:[#allocation5 + $0xdc8] sm:$0xff]
        %v1285 = vld [vmem:[#allocation5 + $0xdd0] sm:$0xff]
        %v1286 = vld [vmem:[#allocation5 + $0xdd8] sm:$0xff]
        %v1287 = vld [vmem:[#allocation5 + $0xde0] sm:$0xff]
        %v1288 = vld [vmem:[#allocation5 + $0xde8] sm:$0xff]
        %v1289 = vld [vmem:[#allocation5 + $0xdf0] sm:$0xff]
        %v1290 = vld [vmem:[#allocation5 + $0xdf8] sm:$0xff]
        %v1291 = vld [vmem:[#allocation5 + $0xe00] sm:$0xff]
        %v1292 = vld [vmem:[#allocation5 + $0xe08] sm:$0xff]
        %v1293 = vld [vmem:[#allocation5 + $0xe10] sm:$0xff]
        %v1294 = vld [vmem:[#allocation5 + $0xe18] sm:$0xff]
        %v1295 = vld [vmem:[#allocation5 + $0xe20] sm:$0xff]
        %v1296 = vld [vmem:[#allocation5 + $0xe28] sm:$0xff]
        %v1297 = vld [vmem:[#allocation5 + $0xe30] sm:$0xff]
        %v1298 = vld [vmem:[#allocation5 + $0xe38] sm:$0xff]
        %v1299 = vld [vmem:[#allocation5 + $0xe40] sm:$0xff]
        %v1300 = vld [vmem:[#allocation5 + $0xe48] sm:$0xff]
        %v1301 = vld [vmem:[#allocation5 + $0xe50] sm:$0xff]
        %v1302 = vld [vmem:[#allocation5 + $0xe58] sm:$0xff]
        %v1303 = vld [vmem:[#allocation5 + $0xe60] sm:$0xff]
        %v1304 = vld [vmem:[#allocation5 + $0xe68] sm:$0xff]
        %v1305 = vld [vmem:[#allocation5 + $0xe70] sm:$0xff]
        %v1306 = vld [vmem:[#allocation5 + $0xe78] sm:$0xff]
        %v1307 = vld [vmem:[#allocation5 + $0xe80] sm:$0xff]
        %v1308 = vld [vmem:[#allocation5 + $0xe88] sm:$0xff]
        %v1309 = vld [vmem:[#allocation5 + $0xe90] sm:$0xff]
        %v1310 = vld [vmem:[#allocation5 + $0xe98] sm:$0xff]
        %v1311 = vld [vmem:[#allocation5 + $0xea0] sm:$0xff]
        %v1312 = vld [vmem:[#allocation5 + $0xea8] sm:$0xff]
        %v1313 = vld [vmem:[#allocation5 + $0xeb0] sm:$0xff]
        %v1314 = vld [vmem:[#allocation5 + $0xeb8] sm:$0xff]
        %v1315 = vld [vmem:[#allocation5 + $0xec0] sm:$0xff]
        %v1316 = vld [vmem:[#allocation5 + $0xec8] sm:$0xff]
        %v1317 = vld [vmem:[#allocation5 + $0xed0] sm:$0xff]
        %v1318 = vld [vmem:[#allocation5 + $0xed8] sm:$0xff]
        %v1319 = vld [vmem:[#allocation5 + $0xee0] sm:$0xff]
        %v1320 = vld [vmem:[#allocation5 + $0xee8] sm:$0xff]
        %v1321 = vld [vmem:[#allocation5 + $0xef0] sm:$0xff]
        %v1322 = vld [vmem:[#allocation5 + $0xef8] sm:$0xff]
        %v1323 = vld [vmem:[#allocation5 + $0xf00] sm:$0xff]
        %v1324 = vld [vmem:[#allocation5 + $0xf08] sm:$0xff]
        %v1325 = vld [vmem:[#allocation5 + $0xf10] sm:$0xff]
        %v1326 = vld [vmem:[#allocation5 + $0xf18] sm:$0xff]
        %v1327 = vld [vmem:[#allocation5 + $0xf20] sm:$0xff]
        %v1328 = vld [vmem:[#allocation5 + $0xf28] sm:$0xff]
        %v1329 = vld [vmem:[#allocation5 + $0xf30] sm:$0xff]
        %v1330 = vld [vmem:[#allocation5 + $0xf38] sm:$0xff]
        %v1331 = vld [vmem:[#allocation5 + $0xf40] sm:$0xff]
        %v1332 = vld [vmem:[#allocation5 + $0xf48] sm:$0xff]
        %v1333 = vld [vmem:[#allocation5 + $0xf50] sm:$0xff]
        %v1334 = vld [vmem:[#allocation5 + $0xf58] sm:$0xff]
        %v1335 = vld [vmem:[#allocation5 + $0xf60] sm:$0xff]
        %v1336 = vld [vmem:[#allocation5 + $0xf68] sm:$0xff]
        %v1337 = vld [vmem:[#allocation5 + $0xf70] sm:$0xff]
        %v1338 = vld [vmem:[#allocation5 + $0xf78] sm:$0xff]
        %v1339 = vld [vmem:[#allocation5 + $0xf80] sm:$0xff]
        %v1340 = vld [vmem:[#allocation5 + $0xf88] sm:$0xff]
        %v1341 = vld [vmem:[#allocation5 + $0xf90] sm:$0xff]
        %v1342 = vld [vmem:[#allocation5 + $0xf98] sm:$0xff]
        %v1343 = vld [vmem:[#allocation5 + $0xfa0] sm:$0xff]
        %v1344 = vld [vmem:[#allocation5 + $0xfa8] sm:$0xff]
        %v1345 = vld [vmem:[#allocation5 + $0xfb0] sm:$0xff]
        %v1346 = vld [vmem:[#allocation5 + $0xfb8] sm:$0xff]
        %v1347 = vld [vmem:[#allocation5 + $0xfc0] sm:$0xff]
        %v1348 = vld [vmem:[#allocation5 + $0xfc8] sm:$0xff]
        %v1349 = vld [vmem:[#allocation5 + $0xfd0] sm:$0xff]
        %v1350 = vld [vmem:[#allocation5 + $0xfd8] sm:$0xff]
        %v1351 = vld [vmem:[#allocation5 + $0xfe0] sm:$0xff]
        %v1352 = vld [vmem:[#allocation5 + $0xfe8] sm:$0xff]
        %v1353 = vld [vmem:[#allocation5 + $0xff0] sm:$0xff]
        %v1354 = vld [vmem:[#allocation5 + $0xff8] sm:$0xff]
        %v1355 = vld [vmem:[#allocation7] sm:$0xf]
        %v1357 = vperm.slane %v842, 0
        %v1358 = vperm.slane %v842, 1
        %v1359 = vperm.slane %v842, 2
        %v1360 = vperm.slane %v842, 3
        %v1361 = vperm.slane %v842, 4
        %v1362 = vperm.slane %v842, 5
        %v1363 = vperm.slane %v842, 6
        %v1364 = vperm.slane %v842, 7
        %v1374 = vperm.slane %v1355, 0
        %v1375 = vperm.slane %v1355, 1
        %v1376 = vperm.slane %v1355, 2
        %v1377 = vperm.slane %v1355, 3
        %1382 = vmatpush.msra.mxu0 %v903
        %1383 = vmatpush.msra.mxu0 %v899
        %1384 = vmatpush.msra.mxu0 %v895
        %1385 = vmatpush.msra.mxu0 %v891
        %1386 = vmatpush.msra.mxu0 %v887
        %1387 = vmatpush.msra.mxu0 %v883
        %1388 = vmatpush.msra.mxu0 %v879
        %1389 = vmatpush.msra.mxu0 %v875
        %1390 = vmatpush.msra.mxu0 %v871
        %1391 = vmatpush.msra.mxu0 %v867
        %1392 = vmatpush.msra.mxu0 %v863
        %1393 = vmatpush.msra.mxu0 %v859
        %1394 = vmatpush.msra.mxu0 %v855
        %1395 = vmatpush.msra.mxu0 %v851
        %1396 = vmatpush.msra.mxu0 %v847
        %1397 = vmatpush.msra.mxu0 %v843
        %1398 = vmatmul.f32.gmra.mxu0 %v1357
        %v1399 = vpop.f32.mrf.mxu0
        %v1400 = vadd.f32 %v1374, %v1399
        %1401 = vdwg.mxu0
        %1402 = vmatpush.msra.mxu0 %v967
        %1403 = vmatpush.msra.mxu0 %v963
        %1404 = vmatpush.msra.mxu0 %v959
        %1405 = vmatpush.msra.mxu0 %v955
        %1406 = vmatpush.msra.mxu0 %v951
        %1407 = vmatpush.msra.mxu0 %v947
        %1408 = vmatpush.msra.mxu0 %v943
        %1409 = vmatpush.msra.mxu0 %v939
        %1410 = vmatpush.msra.mxu0 %v935
        %1411 = vmatpush.msra.mxu0 %v931
        %1412 = vmatpush.msra.mxu0 %v927
        %1413 = vmatpush.msra.mxu0 %v923
        %1414 = vmatpush.msra.mxu0 %v919
        %1415 = vmatpush.msra.mxu0 %v915
        %1416 = vmatpush.msra.mxu0 %v911
        %1417 = vmatpush.msra.mxu0 %v907
        %1418 = vmatmul.f32.gmra.mxu0 %v1358
        %v1419 = vpop.f32.mrf.mxu0
        %v1420 = vadd.f32 %v1400, %v1419
        %1421 = vdwg.mxu0
        %1422 = vmatpush.msra.mxu0 %v1031
        %1423 = vmatpush.msra.mxu0 %v1027
        %1424 = vmatpush.msra.mxu0 %v1023
        %1425 = vmatpush.msra.mxu0 %v1019
        %1426 = vmatpush.msra.mxu0 %v1015
        %1427 = vmatpush.msra.mxu0 %v1011
        %1428 = vmatpush.msra.mxu0 %v1007
        %1429 = vmatpush.msra.mxu0 %v1003
        %1430 = vmatpush.msra.mxu0 %v999
        %1431 = vmatpush.msra.mxu0 %v995
        %1432 = vmatpush.msra.mxu0 %v991
        %1433 = vmatpush.msra.mxu0 %v987
        %1434 = vmatpush.msra.mxu0 %v983
        %1435 = vmatpush.msra.mxu0 %v979
        %1436 = vmatpush.msra.mxu0 %v975
        %1437 = vmatpush.msra.mxu0 %v971
        %1438 = vmatmul.f32.gmra.mxu0 %v1359
        %v1439 = vpop.f32.mrf.mxu0
        %v1440 = vadd.f32 %v1420, %v1439
        %1441 = vdwg.mxu0
        %1442 = vmatpush.msra.mxu0 %v1095
        %1443 = vmatpush.msra.mxu0 %v1091
        %1444 = vmatpush.msra.mxu0 %v1087
        %1445 = vmatpush.msra.mxu0 %v1083
        %1446 = vmatpush.msra.mxu0 %v1079
        %1447 = vmatpush.msra.mxu0 %v1075
        %1448 = vmatpush.msra.mxu0 %v1071
        %1449 = vmatpush.msra.mxu0 %v1067
        %1450 = vmatpush.msra.mxu0 %v1063
        %1451 = vmatpush.msra.mxu0 %v1059
        %1452 = vmatpush.msra.mxu0 %v1055
        %1453 = vmatpush.msra.mxu0 %v1051
        %1454 = vmatpush.msra.mxu0 %v1047
        %1455 = vmatpush.msra.mxu0 %v1043
        %1456 = vmatpush.msra.mxu0 %v1039
        %1457 = vmatpush.msra.mxu0 %v1035
        %1458 = vmatmul.f32.gmra.mxu0 %v1360
        %v1459 = vpop.f32.mrf.mxu0
        %v1460 = vadd.f32 %v1440, %v1459
        %1461 = vdwg.mxu0
        %1462 = vmatpush.msra.mxu0 %v1159
        %1463 = vmatpush.msra.mxu0 %v1155
        %1464 = vmatpush.msra.mxu0 %v1151
        %1465 = vmatpush.msra.mxu0 %v1147
        %1466 = vmatpush.msra.mxu0 %v1143
        %1467 = vmatpush.msra.mxu0 %v1139
        %1468 = vmatpush.msra.mxu0 %v1135
        %1469 = vmatpush.msra.mxu0 %v1131
        %1470 = vmatpush.msra.mxu0 %v1127
        %1471 = vmatpush.msra.mxu0 %v1123
        %1472 = vmatpush.msra.mxu0 %v1119
        %1473 = vmatpush.msra.mxu0 %v1115
        %1474 = vmatpush.msra.mxu0 %v1111
        %1475 = vmatpush.msra.mxu0 %v1107
        %1476 = vmatpush.msra.mxu0 %v1103
        %1477 = vmatpush.msra.mxu0 %v1099
        %1478 = vmatmul.f32.gmra.mxu0 %v1361
        %v1479 = vpop.f32.mrf.mxu0
        %v1480 = vadd.f32 %v1460, %v1479
        %1481 = vdwg.mxu0
        %1482 = vmatpush.msra.mxu0 %v1223
        %1483 = vmatpush.msra.mxu0 %v1219
        %1484 = vmatpush.msra.mxu0 %v1215
        %1485 = vmatpush.msra.mxu0 %v1211
        %1486 = vmatpush.msra.mxu0 %v1207
        %1487 = vmatpush.msra.mxu0 %v1203
        %1488 = vmatpush.msra.mxu0 %v1199
        %1489 = vmatpush.msra.mxu0 %v1195
        %1490 = vmatpush.msra.mxu0 %v1191
        %1491 = vmatpush.msra.mxu0 %v1187
        %1492 = vmatpush.msra.mxu0 %v1183
        %1493 = vmatpush.msra.mxu0 %v1179
        %1494 = vmatpush.msra.mxu0 %v1175
        %1495 = vmatpush.msra.mxu0 %v1171
        %1496 = vmatpush.msra.mxu0 %v1167
        %1497 = vmatpush.msra.mxu0 %v1163
        %1498 = vmatmul.f32.gmra.mxu0 %v1362
        %v1499 = vpop.f32.mrf.mxu0
        %v1500 = vadd.f32 %v1480, %v1499
        %1501 = vdwg.mxu0
        %1502 = vmatpush.msra.mxu0 %v1287
        %1503 = vmatpush.msra.mxu0 %v1283
        %1504 = vmatpush.msra.mxu0 %v1279
        %1505 = vmatpush.msra.mxu0 %v1275
        %1506 = vmatpush.msra.mxu0 %v1271
        %1507 = vmatpush.msra.mxu0 %v1267
        %1508 = vmatpush.msra.mxu0 %v1263
        %1509 = vmatpush.msra.mxu0 %v1259
        %1510 = vmatpush.msra.mxu0 %v1255
        %1511 = vmatpush.msra.mxu0 %v1251
        %1512 = vmatpush.msra.mxu0 %v1247
        %1513 = vmatpush.msra.mxu0 %v1243
        %1514 = vmatpush.msra.mxu0 %v1239
        %1515 = vmatpush.msra.mxu0 %v1235
        %1516 = vmatpush.msra.mxu0 %v1231
        %1517 = vmatpush.msra.mxu0 %v1227
        %1518 = vmatmul.f32.gmra.mxu0 %v1363
        %v1519 = vpop.f32.mrf.mxu0
        %v1520 = vadd.f32 %v1500, %v1519
        %1521 = vdwg.mxu0
        %1522 = vmatpush.msra.mxu0 %v1351
        %1523 = vmatpush.msra.mxu0 %v1347
        %1524 = vmatpush.msra.mxu0 %v1343
        %1525 = vmatpush.msra.mxu0 %v1339
        %1526 = vmatpush.msra.mxu0 %v1335
        %1527 = vmatpush.msra.mxu0 %v1331
        %1528 = vmatpush.msra.mxu0 %v1327
        %1529 = vmatpush.msra.mxu0 %v1323
        %1530 = vmatpush.msra.mxu0 %v1319
        %1531 = vmatpush.msra.mxu0 %v1315
        %1532 = vmatpush.msra.mxu0 %v1311
        %1533 = vmatpush.msra.mxu0 %v1307
        %1534 = vmatpush.msra.mxu0 %v1303
        %1535 = vmatpush.msra.mxu0 %v1299
        %1536 = vmatpush.msra.mxu0 %v1295
        %1537 = vmatpush.msra.mxu0 %v1291
        %1538 = vmatmul.f32.gmra.mxu0 %v1364
        %v1539 = vpop.f32.mrf.mxu0
        %v1540 = vadd.f32 %v1520, %v1539
        %1541 = vdwg.mxu0
        %1542 = vmatpush.msra.mxu0 %v904
        %1543 = vmatpush.msra.mxu0 %v900
        %1544 = vmatpush.msra.mxu0 %v896
        %1545 = vmatpush.msra.mxu0 %v892
        %1546 = vmatpush.msra.mxu0 %v888
        %1547 = vmatpush.msra.mxu0 %v884
        %1548 = vmatpush.msra.mxu0 %v880
        %1549 = vmatpush.msra.mxu0 %v876
        %1550 = vmatpush.msra.mxu0 %v872
        %1551 = vmatpush.msra.mxu0 %v868
        %1552 = vmatpush.msra.mxu0 %v864
        %1553 = vmatpush.msra.mxu0 %v860
        %1554 = vmatpush.msra.mxu0 %v856
        %1555 = vmatpush.msra.mxu0 %v852
        %1556 = vmatpush.msra.mxu0 %v848
        %1557 = vmatpush.msra.mxu0 %v844
        %1558 = vmatmul.f32.gmra.mxu0 %v1357
        %v1559 = vpop.f32.mrf.mxu0
        %v1560 = vadd.f32 %v1375, %v1559
        %1561 = vdwg.mxu0
        %1562 = vmatpush.msra.mxu0 %v968
        %1563 = vmatpush.msra.mxu0 %v964
        %1564 = vmatpush.msra.mxu0 %v960
        %1565 = vmatpush.msra.mxu0 %v956
        %1566 = vmatpush.msra.mxu0 %v952
        %1567 = vmatpush.msra.mxu0 %v948
        %1568 = vmatpush.msra.mxu0 %v944
        %1569 = vmatpush.msra.mxu0 %v940
        %1570 = vmatpush.msra.mxu0 %v936
        %1571 = vmatpush.msra.mxu0 %v932
        %1572 = vmatpush.msra.mxu0 %v928
        %1573 = vmatpush.msra.mxu0 %v924
        %1574 = vmatpush.msra.mxu0 %v920
        %1575 = vmatpush.msra.mxu0 %v916
        %1576 = vmatpush.msra.mxu0 %v912
        %1577 = vmatpush.msra.mxu0 %v908
        %1578 = vmatmul.f32.gmra.mxu0 %v1358
        %v1579 = vpop.f32.mrf.mxu0
        %v1580 = vadd.f32 %v1560, %v1579
        %1581 = vdwg.mxu0
        %1582 = vmatpush.msra.mxu0 %v1032
        %1583 = vmatpush.msra.mxu0 %v1028
        %1584 = vmatpush.msra.mxu0 %v1024
        %1585 = vmatpush.msra.mxu0 %v1020
        %1586 = vmatpush.msra.mxu0 %v1016
        %1587 = vmatpush.msra.mxu0 %v1012
        %1588 = vmatpush.msra.mxu0 %v1008
        %1589 = vmatpush.msra.mxu0 %v1004
        %1590 = vmatpush.msra.mxu0 %v1000
        %1591 = vmatpush.msra.mxu0 %v996
        %1592 = vmatpush.msra.mxu0 %v992
        %1593 = vmatpush.msra.mxu0 %v988
        %1594 = vmatpush.msra.mxu0 %v984
        %1595 = vmatpush.msra.mxu0 %v980
        %1596 = vmatpush.msra.mxu0 %v976
        %1597 = vmatpush.msra.mxu0 %v972
        %1598 = vmatmul.f32.gmra.mxu0 %v1359
        %v1599 = vpop.f32.mrf.mxu0
        %v1600 = vadd.f32 %v1580, %v1599
        %1601 = vdwg.mxu0
        %1602 = vmatpush.msra.mxu0 %v1096
        %1603 = vmatpush.msra.mxu0 %v1092
        %1604 = vmatpush.msra.mxu0 %v1088
        %1605 = vmatpush.msra.mxu0 %v1084
        %1606 = vmatpush.msra.mxu0 %v1080
        %1607 = vmatpush.msra.mxu0 %v1076
        %1608 = vmatpush.msra.mxu0 %v1072
        %1609 = vmatpush.msra.mxu0 %v1068
        %1610 = vmatpush.msra.mxu0 %v1064
        %1611 = vmatpush.msra.mxu0 %v1060
        %1612 = vmatpush.msra.mxu0 %v1056
        %1613 = vmatpush.msra.mxu0 %v1052
        %1614 = vmatpush.msra.mxu0 %v1048
        %1615 = vmatpush.msra.mxu0 %v1044
        %1616 = vmatpush.msra.mxu0 %v1040
        %1617 = vmatpush.msra.mxu0 %v1036
        %1618 = vmatmul.f32.gmra.mxu0 %v1360
        %v1619 = vpop.f32.mrf.mxu0
        %v1620 = vadd.f32 %v1600, %v1619
        %1621 = vdwg.mxu0
        %1622 = vmatpush.msra.mxu0 %v1160
        %1623 = vmatpush.msra.mxu0 %v1156
        %1624 = vmatpush.msra.mxu0 %v1152
        %1625 = vmatpush.msra.mxu0 %v1148
        %1626 = vmatpush.msra.mxu0 %v1144
        %1627 = vmatpush.msra.mxu0 %v1140
        %1628 = vmatpush.msra.mxu0 %v1136
        %1629 = vmatpush.msra.mxu0 %v1132
        %1630 = vmatpush.msra.mxu0 %v1128
        %1631 = vmatpush.msra.mxu0 %v1124
        %1632 = vmatpush.msra.mxu0 %v1120
        %1633 = vmatpush.msra.mxu0 %v1116
        %1634 = vmatpush.msra.mxu0 %v1112
        %1635 = vmatpush.msra.mxu0 %v1108
        %1636 = vmatpush.msra.mxu0 %v1104
        %1637 = vmatpush.msra.mxu0 %v1100
        %1638 = vmatmul.f32.gmra.mxu0 %v1361
        %v1639 = vpop.f32.mrf.mxu0
        %v1640 = vadd.f32 %v1620, %v1639
        %1641 = vdwg.mxu0
        %1642 = vmatpush.msra.mxu0 %v1224
        %1643 = vmatpush.msra.mxu0 %v1220
        %1644 = vmatpush.msra.mxu0 %v1216
        %1645 = vmatpush.msra.mxu0 %v1212
        %1646 = vmatpush.msra.mxu0 %v1208
        %1647 = vmatpush.msra.mxu0 %v1204
        %1648 = vmatpush.msra.mxu0 %v1200
        %1649 = vmatpush.msra.mxu0 %v1196
        %1650 = vmatpush.msra.mxu0 %v1192
        %1651 = vmatpush.msra.mxu0 %v1188
        %1652 = vmatpush.msra.mxu0 %v1184
        %1653 = vmatpush.msra.mxu0 %v1180
        %1654 = vmatpush.msra.mxu0 %v1176
        %1655 = vmatpush.msra.mxu0 %v1172
        %1656 = vmatpush.msra.mxu0 %v1168
        %1657 = vmatpush.msra.mxu0 %v1164
        %1658 = vmatmul.f32.gmra.mxu0 %v1362
        %v1659 = vpop.f32.mrf.mxu0
        %v1660 = vadd.f32 %v1640, %v1659
        %1661 = vdwg.mxu0
        %1662 = vmatpush.msra.mxu0 %v1288
        %1663 = vmatpush.msra.mxu0 %v1284
        %1664 = vmatpush.msra.mxu0 %v1280
        %1665 = vmatpush.msra.mxu0 %v1276
        %1666 = vmatpush.msra.mxu0 %v1272
        %1667 = vmatpush.msra.mxu0 %v1268
        %1668 = vmatpush.msra.mxu0 %v1264
        %1669 = vmatpush.msra.mxu0 %v1260
        %1670 = vmatpush.msra.mxu0 %v1256
        %1671 = vmatpush.msra.mxu0 %v1252
        %1672 = vmatpush.msra.mxu0 %v1248
        %1673 = vmatpush.msra.mxu0 %v1244
        %1674 = vmatpush.msra.mxu0 %v1240
        %1675 = vmatpush.msra.mxu0 %v1236
        %1676 = vmatpush.msra.mxu0 %v1232
        %1677 = vmatpush.msra.mxu0 %v1228
        %1678 = vmatmul.f32.gmra.mxu0 %v1363
        %v1679 = vpop.f32.mrf.mxu0
        %v1680 = vadd.f32 %v1660, %v1679
        %1681 = vdwg.mxu0
        %1682 = vmatpush.msra.mxu0 %v1352
        %1683 = vmatpush.msra.mxu0 %v1348
        %1684 = vmatpush.msra.mxu0 %v1344
        %1685 = vmatpush.msra.mxu0 %v1340
        %1686 = vmatpush.msra.mxu0 %v1336
        %1687 = vmatpush.msra.mxu0 %v1332
        %1688 = vmatpush.msra.mxu0 %v1328
        %1689 = vmatpush.msra.mxu0 %v1324
        %1690 = vmatpush.msra.mxu0 %v1320
        %1691 = vmatpush.msra.mxu0 %v1316
        %1692 = vmatpush.msra.mxu0 %v1312
        %1693 = vmatpush.msra.mxu0 %v1308
        %1694 = vmatpush.msra.mxu0 %v1304
        %1695 = vmatpush.msra.mxu0 %v1300
        %1696 = vmatpush.msra.mxu0 %v1296
        %1697 = vmatpush.msra.mxu0 %v1292
        %1698 = vmatmul.f32.gmra.mxu0 %v1364
        %v1699 = vpop.f32.mrf.mxu0
        %v1700 = vadd.f32 %v1680, %v1699
        %1701 = vdwg.mxu0
        %1702 = vmatpush.msra.mxu0 %v905
        %1703 = vmatpush.msra.mxu0 %v901
        %1704 = vmatpush.msra.mxu0 %v897
        %1705 = vmatpush.msra.mxu0 %v893
        %1706 = vmatpush.msra.mxu0 %v889
        %1707 = vmatpush.msra.mxu0 %v885
        %1708 = vmatpush.msra.mxu0 %v881
        %1709 = vmatpush.msra.mxu0 %v877
        %1710 = vmatpush.msra.mxu0 %v873
        %1711 = vmatpush.msra.mxu0 %v869
        %1712 = vmatpush.msra.mxu0 %v865
        %1713 = vmatpush.msra.mxu0 %v861
        %1714 = vmatpush.msra.mxu0 %v857
        %1715 = vmatpush.msra.mxu0 %v853
        %1716 = vmatpush.msra.mxu0 %v849
        %1717 = vmatpush.msra.mxu0 %v845
        %1718 = vmatmul.f32.gmra.mxu0 %v1357
        %v1719 = vpop.f32.mrf.mxu0
        %v1720 = vadd.f32 %v1376, %v1719
        %1721 = vdwg.mxu0
        %1722 = vmatpush.msra.mxu0 %v969
        %1723 = vmatpush.msra.mxu0 %v965
        %1724 = vmatpush.msra.mxu0 %v961
        %1725 = vmatpush.msra.mxu0 %v957
        %1726 = vmatpush.msra.mxu0 %v953
        %1727 = vmatpush.msra.mxu0 %v949
        %1728 = vmatpush.msra.mxu0 %v945
        %1729 = vmatpush.msra.mxu0 %v941
        %1730 = vmatpush.msra.mxu0 %v937
        %1731 = vmatpush.msra.mxu0 %v933
        %1732 = vmatpush.msra.mxu0 %v929
        %1733 = vmatpush.msra.mxu0 %v925
        %1734 = vmatpush.msra.mxu0 %v921
        %1735 = vmatpush.msra.mxu0 %v917
        %1736 = vmatpush.msra.mxu0 %v913
        %1737 = vmatpush.msra.mxu0 %v909
        %1738 = vmatmul.f32.gmra.mxu0 %v1358
        %v1739 = vpop.f32.mrf.mxu0
        %v1740 = vadd.f32 %v1720, %v1739
        %1741 = vdwg.mxu0
        %1742 = vmatpush.msra.mxu0 %v1033
        %1743 = vmatpush.msra.mxu0 %v1029
        %1744 = vmatpush.msra.mxu0 %v1025
        %1745 = vmatpush.msra.mxu0 %v1021
        %1746 = vmatpush.msra.mxu0 %v1017
        %1747 = vmatpush.msra.mxu0 %v1013
        %1748 = vmatpush.msra.mxu0 %v1009
        %1749 = vmatpush.msra.mxu0 %v1005
        %1750 = vmatpush.msra.mxu0 %v1001
        %1751 = vmatpush.msra.mxu0 %v997
        %1752 = vmatpush.msra.mxu0 %v993
        %1753 = vmatpush.msra.mxu0 %v989
        %1754 = vmatpush.msra.mxu0 %v985
        %1755 = vmatpush.msra.mxu0 %v981
        %1756 = vmatpush.msra.mxu0 %v977
        %1757 = vmatpush.msra.mxu0 %v973
        %1758 = vmatmul.f32.gmra.mxu0 %v1359
        %v1759 = vpop.f32.mrf.mxu0
        %v1760 = vadd.f32 %v1740, %v1759
        %1761 = vdwg.mxu0
        %1762 = vmatpush.msra.mxu0 %v1097
        %1763 = vmatpush.msra.mxu0 %v1093
        %1764 = vmatpush.msra.mxu0 %v1089
        %1765 = vmatpush.msra.mxu0 %v1085
        %1766 = vmatpush.msra.mxu0 %v1081
        %1767 = vmatpush.msra.mxu0 %v1077
        %1768 = vmatpush.msra.mxu0 %v1073
        %1769 = vmatpush.msra.mxu0 %v1069
        %1770 = vmatpush.msra.mxu0 %v1065
        %1771 = vmatpush.msra.mxu0 %v1061
        %1772 = vmatpush.msra.mxu0 %v1057
        %1773 = vmatpush.msra.mxu0 %v1053
        %1774 = vmatpush.msra.mxu0 %v1049
        %1775 = vmatpush.msra.mxu0 %v1045
        %1776 = vmatpush.msra.mxu0 %v1041
        %1777 = vmatpush.msra.mxu0 %v1037
        %1778 = vmatmul.f32.gmra.mxu0 %v1360
        %v1779 = vpop.f32.mrf.mxu0
        %v1780 = vadd.f32 %v1760, %v1779
        %1781 = vdwg.mxu0
        %1782 = vmatpush.msra.mxu0 %v1161
        %1783 = vmatpush.msra.mxu0 %v1157
        %1784 = vmatpush.msra.mxu0 %v1153
        %1785 = vmatpush.msra.mxu0 %v1149
        %1786 = vmatpush.msra.mxu0 %v1145
        %1787 = vmatpush.msra.mxu0 %v1141
        %1788 = vmatpush.msra.mxu0 %v1137
        %1789 = vmatpush.msra.mxu0 %v1133
        %1790 = vmatpush.msra.mxu0 %v1129
        %1791 = vmatpush.msra.mxu0 %v1125
        %1792 = vmatpush.msra.mxu0 %v1121
        %1793 = vmatpush.msra.mxu0 %v1117
        %1794 = vmatpush.msra.mxu0 %v1113
        %1795 = vmatpush.msra.mxu0 %v1109
        %1796 = vmatpush.msra.mxu0 %v1105
        %1797 = vmatpush.msra.mxu0 %v1101
        %1798 = vmatmul.f32.gmra.mxu0 %v1361
        %v1799 = vpop.f32.mrf.mxu0
        %v1800 = vadd.f32 %v1780, %v1799
        %1801 = vdwg.mxu0
        %1802 = vmatpush.msra.mxu0 %v1225
        %1803 = vmatpush.msra.mxu0 %v1221
        %1804 = vmatpush.msra.mxu0 %v1217
        %1805 = vmatpush.msra.mxu0 %v1213
        %1806 = vmatpush.msra.mxu0 %v1209
        %1807 = vmatpush.msra.mxu0 %v1205
        %1808 = vmatpush.msra.mxu0 %v1201
        %1809 = vmatpush.msra.mxu0 %v1197
        %1810 = vmatpush.msra.mxu0 %v1193
        %1811 = vmatpush.msra.mxu0 %v1189
        %1812 = vmatpush.msra.mxu0 %v1185
        %1813 = vmatpush.msra.mxu0 %v1181
        %1814 = vmatpush.msra.mxu0 %v1177
        %1815 = vmatpush.msra.mxu0 %v1173
        %1816 = vmatpush.msra.mxu0 %v1169
        %1817 = vmatpush.msra.mxu0 %v1165
        %1818 = vmatmul.f32.gmra.mxu0 %v1362
        %v1819 = vpop.f32.mrf.mxu0
        %v1820 = vadd.f32 %v1800, %v1819
        %1821 = vdwg.mxu0
        %1822 = vmatpush.msra.mxu0 %v1289
        %1823 = vmatpush.msra.mxu0 %v1285
        %1824 = vmatpush.msra.mxu0 %v1281
        %1825 = vmatpush.msra.mxu0 %v1277
        %1826 = vmatpush.msra.mxu0 %v1273
        %1827 = vmatpush.msra.mxu0 %v1269
        %1828 = vmatpush.msra.mxu0 %v1265
        %1829 = vmatpush.msra.mxu0 %v1261
        %1830 = vmatpush.msra.mxu0 %v1257
        %1831 = vmatpush.msra.mxu0 %v1253
        %1832 = vmatpush.msra.mxu0 %v1249
        %1833 = vmatpush.msra.mxu0 %v1245
        %1834 = vmatpush.msra.mxu0 %v1241
        %1835 = vmatpush.msra.mxu0 %v1237
        %1836 = vmatpush.msra.mxu0 %v1233
        %1837 = vmatpush.msra.mxu0 %v1229
        %1838 = vmatmul.f32.gmra.mxu0 %v1363
        %v1839 = vpop.f32.mrf.mxu0
        %v1840 = vadd.f32 %v1820, %v1839
        %1841 = vdwg.mxu0
        %1842 = vmatpush.msra.mxu0 %v1353
        %1843 = vmatpush.msra.mxu0 %v1349
        %1844 = vmatpush.msra.mxu0 %v1345
        %1845 = vmatpush.msra.mxu0 %v1341
        %1846 = vmatpush.msra.mxu0 %v1337
        %1847 = vmatpush.msra.mxu0 %v1333
        %1848 = vmatpush.msra.mxu0 %v1329
        %1849 = vmatpush.msra.mxu0 %v1325
        %1850 = vmatpush.msra.mxu0 %v1321
        %1851 = vmatpush.msra.mxu0 %v1317
        %1852 = vmatpush.msra.mxu0 %v1313
        %1853 = vmatpush.msra.mxu0 %v1309
        %1854 = vmatpush.msra.mxu0 %v1305
        %1855 = vmatpush.msra.mxu0 %v1301
        %1856 = vmatpush.msra.mxu0 %v1297
        %1857 = vmatpush.msra.mxu0 %v1293
        %1858 = vmatmul.f32.gmra.mxu0 %v1364
        %v1859 = vpop.f32.mrf.mxu0
        %v1860 = vadd.f32 %v1840, %v1859
        %1861 = vdwg.mxu0
        %1862 = vmatpush.msra.mxu0 %v906
        %1863 = vmatpush.msra.mxu0 %v902
        %1864 = vmatpush.msra.mxu0 %v898
        %1865 = vmatpush.msra.mxu0 %v894
        %1866 = vmatpush.msra.mxu0 %v890
        %1867 = vmatpush.msra.mxu0 %v886
        %1868 = vmatpush.msra.mxu0 %v882
        %1869 = vmatpush.msra.mxu0 %v878
        %1870 = vmatpush.msra.mxu0 %v874
        %1871 = vmatpush.msra.mxu0 %v870
        %1872 = vmatpush.msra.mxu0 %v866
        %1873 = vmatpush.msra.mxu0 %v862
        %1874 = vmatpush.msra.mxu0 %v858
        %1875 = vmatpush.msra.mxu0 %v854
        %1876 = vmatpush.msra.mxu0 %v850
        %1877 = vmatpush.msra.mxu0 %v846
        %1878 = vmatmul.f32.gmra.mxu0 %v1357
        %v1879 = vpop.f32.mrf.mxu0
        %v1880 = vadd.f32 %v1377, %v1879
        %1881 = vdwg.mxu0
        %1882 = vmatpush.msra.mxu0 %v970
        %1883 = vmatpush.msra.mxu0 %v966
        %1884 = vmatpush.msra.mxu0 %v962
        %1885 = vmatpush.msra.mxu0 %v958
        %1886 = vmatpush.msra.mxu0 %v954
        %1887 = vmatpush.msra.mxu0 %v950
        %1888 = vmatpush.msra.mxu0 %v946
        %1889 = vmatpush.msra.mxu0 %v942
        %1890 = vmatpush.msra.mxu0 %v938
        %1891 = vmatpush.msra.mxu0 %v934
        %1892 = vmatpush.msra.mxu0 %v930
        %1893 = vmatpush.msra.mxu0 %v926
        %1894 = vmatpush.msra.mxu0 %v922
        %1895 = vmatpush.msra.mxu0 %v918
        %1896 = vmatpush.msra.mxu0 %v914
        %1897 = vmatpush.msra.mxu0 %v910
        %1898 = vmatmul.f32.gmra.mxu0 %v1358
        %v1899 = vpop.f32.mrf.mxu0
        %v1900 = vadd.f32 %v1880, %v1899
        %1901 = vdwg.mxu0
        %1902 = vmatpush.msra.mxu0 %v1034
        %1903 = vmatpush.msra.mxu0 %v1030
        %1904 = vmatpush.msra.mxu0 %v1026
        %1905 = vmatpush.msra.mxu0 %v1022
        %1906 = vmatpush.msra.mxu0 %v1018
        %1907 = vmatpush.msra.mxu0 %v1014
        %1908 = vmatpush.msra.mxu0 %v1010
        %1909 = vmatpush.msra.mxu0 %v1006
        %1910 = vmatpush.msra.mxu0 %v1002
        %1911 = vmatpush.msra.mxu0 %v998
        %1912 = vmatpush.msra.mxu0 %v994
        %1913 = vmatpush.msra.mxu0 %v990
        %1914 = vmatpush.msra.mxu0 %v986
        %1915 = vmatpush.msra.mxu0 %v982
        %1916 = vmatpush.msra.mxu0 %v978
        %1917 = vmatpush.msra.mxu0 %v974
        %1918 = vmatmul.f32.gmra.mxu0 %v1359
        %v1919 = vpop.f32.mrf.mxu0
        %v1920 = vadd.f32 %v1900, %v1919
        %1921 = vdwg.mxu0
        %1922 = vmatpush.msra.mxu0 %v1098
        %1923 = vmatpush.msra.mxu0 %v1094
        %1924 = vmatpush.msra.mxu0 %v1090
        %1925 = vmatpush.msra.mxu0 %v1086
        %1926 = vmatpush.msra.mxu0 %v1082
        %1927 = vmatpush.msra.mxu0 %v1078
        %1928 = vmatpush.msra.mxu0 %v1074
        %1929 = vmatpush.msra.mxu0 %v1070
        %1930 = vmatpush.msra.mxu0 %v1066
        %1931 = vmatpush.msra.mxu0 %v1062
        %1932 = vmatpush.msra.mxu0 %v1058
        %1933 = vmatpush.msra.mxu0 %v1054
        %1934 = vmatpush.msra.mxu0 %v1050
        %1935 = vmatpush.msra.mxu0 %v1046
        %1936 = vmatpush.msra.mxu0 %v1042
        %1937 = vmatpush.msra.mxu0 %v1038
        %1938 = vmatmul.f32.gmra.mxu0 %v1360
        %v1939 = vpop.f32.mrf.mxu0
        %v1940 = vadd.f32 %v1920, %v1939
        %1941 = vdwg.mxu0
        %1942 = vmatpush.msra.mxu0 %v1162
        %1943 = vmatpush.msra.mxu0 %v1158
        %1944 = vmatpush.msra.mxu0 %v1154
        %1945 = vmatpush.msra.mxu0 %v1150
        %1946 = vmatpush.msra.mxu0 %v1146
        %1947 = vmatpush.msra.mxu0 %v1142
        %1948 = vmatpush.msra.mxu0 %v1138
        %1949 = vmatpush.msra.mxu0 %v1134
        %1950 = vmatpush.msra.mxu0 %v1130
        %1951 = vmatpush.msra.mxu0 %v1126
        %1952 = vmatpush.msra.mxu0 %v1122
        %1953 = vmatpush.msra.mxu0 %v1118
        %1954 = vmatpush.msra.mxu0 %v1114
        %1955 = vmatpush.msra.mxu0 %v1110
        %1956 = vmatpush.msra.mxu0 %v1106
        %1957 = vmatpush.msra.mxu0 %v1102
        %1958 = vmatmul.f32.gmra.mxu0 %v1361
        %v1959 = vpop.f32.mrf.mxu0
        %v1960 = vadd.f32 %v1940, %v1959
        %1961 = vdwg.mxu0
        %1962 = vmatpush.msra.mxu0 %v1226
        %1963 = vmatpush.msra.mxu0 %v1222
        %1964 = vmatpush.msra.mxu0 %v1218
        %1965 = vmatpush.msra.mxu0 %v1214
        %1966 = vmatpush.msra.mxu0 %v1210
        %1967 = vmatpush.msra.mxu0 %v1206
        %1968 = vmatpush.msra.mxu0 %v1202
        %1969 = vmatpush.msra.mxu0 %v1198
        %1970 = vmatpush.msra.mxu0 %v1194
        %1971 = vmatpush.msra.mxu0 %v1190
        %1972 = vmatpush.msra.mxu0 %v1186
        %1973 = vmatpush.msra.mxu0 %v1182
        %1974 = vmatpush.msra.mxu0 %v1178
        %1975 = vmatpush.msra.mxu0 %v1174
        %1976 = vmatpush.msra.mxu0 %v1170
        %1977 = vmatpush.msra.mxu0 %v1166
        %1978 = vmatmul.f32.gmra.mxu0 %v1362
        %v1979 = vpop.f32.mrf.mxu0
        %v1980 = vadd.f32 %v1960, %v1979
        %1981 = vdwg.mxu0
        %1982 = vmatpush.msra.mxu0 %v1290
        %1983 = vmatpush.msra.mxu0 %v1286
        %1984 = vmatpush.msra.mxu0 %v1282
        %1985 = vmatpush.msra.mxu0 %v1278
        %1986 = vmatpush.msra.mxu0 %v1274
        %1987 = vmatpush.msra.mxu0 %v1270
        %1988 = vmatpush.msra.mxu0 %v1266
        %1989 = vmatpush.msra.mxu0 %v1262
        %1990 = vmatpush.msra.mxu0 %v1258
        %1991 = vmatpush.msra.mxu0 %v1254
        %1992 = vmatpush.msra.mxu0 %v1250
        %1993 = vmatpush.msra.mxu0 %v1246
        %1994 = vmatpush.msra.mxu0 %v1242
        %1995 = vmatpush.msra.mxu0 %v1238
        %1996 = vmatpush.msra.mxu0 %v1234
        %1997 = vmatpush.msra.mxu0 %v1230
        %1998 = vmatmul.f32.gmra.mxu0 %v1363
        %v1999 = vpop.f32.mrf.mxu0
        %v2000 = vadd.f32 %v1980, %v1999
        %2001 = vdwg.mxu0
        %2002 = vmatpush.msra.mxu0 %v1354
        %2003 = vmatpush.msra.mxu0 %v1350
        %2004 = vmatpush.msra.mxu0 %v1346
        %2005 = vmatpush.msra.mxu0 %v1342
        %2006 = vmatpush.msra.mxu0 %v1338
        %2007 = vmatpush.msra.mxu0 %v1334
        %2008 = vmatpush.msra.mxu0 %v1330
        %2009 = vmatpush.msra.mxu0 %v1326
        %2010 = vmatpush.msra.mxu0 %v1322
        %2011 = vmatpush.msra.mxu0 %v1318
        %2012 = vmatpush.msra.mxu0 %v1314
        %2013 = vmatpush.msra.mxu0 %v1310
        %2014 = vmatpush.msra.mxu0 %v1306
        %2015 = vmatpush.msra.mxu0 %v1302
        %2016 = vmatpush.msra.mxu0 %v1298
        %2017 = vmatpush.msra.mxu0 %v1294
        %2018 = vmatmul.f32.gmra.mxu0 %v1364
        %v2019 = vpop.f32.mrf.mxu0
        %v2020 = vadd.f32 %v2000, %v2019
        %2021 = vdwg.mxu0
        %vm2022 = vcmp.gt.f32.partialorder %v1540, 0.0
        %vm2023 = vcmp.gt.f32.partialorder %v1700, 0.0
        %vm2024 = vcmp.gt.f32.partialorder %v1860, 0.0
        %vm2025 = vcmp.gt.f32.partialorder %v2020, 0.0
        %v2026 = vmul.f32 %v1540, 0.2
        %v2027 = vmul.f32 %v1700, 0.2
        %v2028 = vmul.f32 %v1860, 0.2
        %v2029 = vmul.f32 %v2020, 0.2
        %v2030 = vsel %vm2022, %v1540, %v2026
        %v2031 = vsel %vm2023, %v1700, %v2027
        %v2032 = vsel %vm2024, %v1860, %v2028
        %v2033 = vsel %vm2025, %v2020, %v2029
        %v2034 = vld [vmem:[#allocation8] sm:$0xff]
        %v2035 = vld [vmem:[#allocation8 + $0x8] sm:$0xff]
        %v2036 = vld [vmem:[#allocation8 + $0x10] sm:$0xff]
        %v2037 = vld [vmem:[#allocation8 + $0x18] sm:$0xff]
        %v2038 = vld [vmem:[#allocation8 + $0x20] sm:$0xff]
        %v2039 = vld [vmem:[#allocation8 + $0x28] sm:$0xff]
        %v2040 = vld [vmem:[#allocation8 + $0x30] sm:$0xff]
        %v2041 = vld [vmem:[#allocation8 + $0x38] sm:$0xff]
        %v2042 = vld [vmem:[#allocation8 + $0x40] sm:$0xff]
        %v2043 = vld [vmem:[#allocation8 + $0x48] sm:$0xff]
        %v2044 = vld [vmem:[#allocation8 + $0x50] sm:$0xff]
        %v2045 = vld [vmem:[#allocation8 + $0x58] sm:$0xff]
        %v2046 = vld [vmem:[#allocation8 + $0x60] sm:$0xff]
        %v2047 = vld [vmem:[#allocation8 + $0x68] sm:$0xff]
        %v2048 = vld [vmem:[#allocation8 + $0x70] sm:$0xff]
        %v2049 = vld [vmem:[#allocation8 + $0x78] sm:$0xff]
        %v2050 = vld [vmem:[#allocation8 + $0x80] sm:$0xff]
        %v2051 = vld [vmem:[#allocation8 + $0x88] sm:$0xff]
        %v2052 = vld [vmem:[#allocation8 + $0x90] sm:$0xff]
        %v2053 = vld [vmem:[#allocation8 + $0x98] sm:$0xff]
        %v2054 = vld [vmem:[#allocation8 + $0xa0] sm:$0xff]
        %v2055 = vld [vmem:[#allocation8 + $0xa8] sm:$0xff]
        %v2056 = vld [vmem:[#allocation8 + $0xb0] sm:$0xff]
        %v2057 = vld [vmem:[#allocation8 + $0xb8] sm:$0xff]
        %v2058 = vld [vmem:[#allocation8 + $0xc0] sm:$0xff]
        %v2059 = vld [vmem:[#allocation8 + $0xc8] sm:$0xff]
        %v2060 = vld [vmem:[#allocation8 + $0xd0] sm:$0xff]
        %v2061 = vld [vmem:[#allocation8 + $0xd8] sm:$0xff]
        %v2062 = vld [vmem:[#allocation8 + $0xe0] sm:$0xff]
        %v2063 = vld [vmem:[#allocation8 + $0xe8] sm:$0xff]
        %v2064 = vld [vmem:[#allocation8 + $0xf0] sm:$0xff]
        %v2065 = vld [vmem:[#allocation8 + $0xf8] sm:$0xff]
        %v2066 = vld [vmem:[#allocation8 + $0x100] sm:$0xff]
        %v2067 = vld [vmem:[#allocation8 + $0x108] sm:$0xff]
        %v2068 = vld [vmem:[#allocation8 + $0x110] sm:$0xff]
        %v2069 = vld [vmem:[#allocation8 + $0x118] sm:$0xff]
        %v2070 = vld [vmem:[#allocation8 + $0x120] sm:$0xff]
        %v2071 = vld [vmem:[#allocation8 + $0x128] sm:$0xff]
        %v2072 = vld [vmem:[#allocation8 + $0x130] sm:$0xff]
        %v2073 = vld [vmem:[#allocation8 + $0x138] sm:$0xff]
        %v2074 = vld [vmem:[#allocation8 + $0x140] sm:$0xff]
        %v2075 = vld [vmem:[#allocation8 + $0x148] sm:$0xff]
        %v2076 = vld [vmem:[#allocation8 + $0x150] sm:$0xff]
        %v2077 = vld [vmem:[#allocation8 + $0x158] sm:$0xff]
        %v2078 = vld [vmem:[#allocation8 + $0x160] sm:$0xff]
        %v2079 = vld [vmem:[#allocation8 + $0x168] sm:$0xff]
        %v2080 = vld [vmem:[#allocation8 + $0x170] sm:$0xff]
        %v2081 = vld [vmem:[#allocation8 + $0x178] sm:$0xff]
        %v2082 = vld [vmem:[#allocation8 + $0x180] sm:$0xff]
        %v2083 = vld [vmem:[#allocation8 + $0x188] sm:$0xff]
        %v2084 = vld [vmem:[#allocation8 + $0x190] sm:$0xff]
        %v2085 = vld [vmem:[#allocation8 + $0x198] sm:$0xff]
        %v2086 = vld [vmem:[#allocation8 + $0x1a0] sm:$0xff]
        %v2087 = vld [vmem:[#allocation8 + $0x1a8] sm:$0xff]
        %v2088 = vld [vmem:[#allocation8 + $0x1b0] sm:$0xff]
        %v2089 = vld [vmem:[#allocation8 + $0x1b8] sm:$0xff]
        %v2090 = vld [vmem:[#allocation8 + $0x1c0] sm:$0xff]
        %v2091 = vld [vmem:[#allocation8 + $0x1c8] sm:$0xff]
        %v2092 = vld [vmem:[#allocation8 + $0x1d0] sm:$0xff]
        %v2093 = vld [vmem:[#allocation8 + $0x1d8] sm:$0xff]
        %v2094 = vld [vmem:[#allocation8 + $0x1e0] sm:$0xff]
        %v2095 = vld [vmem:[#allocation8 + $0x1e8] sm:$0xff]
        %v2096 = vld [vmem:[#allocation8 + $0x1f0] sm:$0xff]
        %v2097 = vld [vmem:[#allocation8 + $0x1f8] sm:$0xff]
        %v2098 = vld [vmem:[#allocation8 + $0x200] sm:$0xff]
        %v2099 = vld [vmem:[#allocation8 + $0x208] sm:$0xff]
        %v2100 = vld [vmem:[#allocation8 + $0x210] sm:$0xff]
        %v2101 = vld [vmem:[#allocation8 + $0x218] sm:$0xff]
        %v2102 = vld [vmem:[#allocation8 + $0x220] sm:$0xff]
        %v2103 = vld [vmem:[#allocation8 + $0x228] sm:$0xff]
        %v2104 = vld [vmem:[#allocation8 + $0x230] sm:$0xff]
        %v2105 = vld [vmem:[#allocation8 + $0x238] sm:$0xff]
        %v2106 = vld [vmem:[#allocation8 + $0x240] sm:$0xff]
        %v2107 = vld [vmem:[#allocation8 + $0x248] sm:$0xff]
        %v2108 = vld [vmem:[#allocation8 + $0x250] sm:$0xff]
        %v2109 = vld [vmem:[#allocation8 + $0x258] sm:$0xff]
        %v2110 = vld [vmem:[#allocation8 + $0x260] sm:$0xff]
        %v2111 = vld [vmem:[#allocation8 + $0x268] sm:$0xff]
        %v2112 = vld [vmem:[#allocation8 + $0x270] sm:$0xff]
        %v2113 = vld [vmem:[#allocation8 + $0x278] sm:$0xff]
        %v2114 = vld [vmem:[#allocation8 + $0x280] sm:$0xff]
        %v2115 = vld [vmem:[#allocation8 + $0x288] sm:$0xff]
        %v2116 = vld [vmem:[#allocation8 + $0x290] sm:$0xff]
        %v2117 = vld [vmem:[#allocation8 + $0x298] sm:$0xff]
        %v2118 = vld [vmem:[#allocation8 + $0x2a0] sm:$0xff]
        %v2119 = vld [vmem:[#allocation8 + $0x2a8] sm:$0xff]
        %v2120 = vld [vmem:[#allocation8 + $0x2b0] sm:$0xff]
        %v2121 = vld [vmem:[#allocation8 + $0x2b8] sm:$0xff]
        %v2122 = vld [vmem:[#allocation8 + $0x2c0] sm:$0xff]
        %v2123 = vld [vmem:[#allocation8 + $0x2c8] sm:$0xff]
        %v2124 = vld [vmem:[#allocation8 + $0x2d0] sm:$0xff]
        %v2125 = vld [vmem:[#allocation8 + $0x2d8] sm:$0xff]
        %v2126 = vld [vmem:[#allocation8 + $0x2e0] sm:$0xff]
        %v2127 = vld [vmem:[#allocation8 + $0x2e8] sm:$0xff]
        %v2128 = vld [vmem:[#allocation8 + $0x2f0] sm:$0xff]
        %v2129 = vld [vmem:[#allocation8 + $0x2f8] sm:$0xff]
        %v2130 = vld [vmem:[#allocation8 + $0x300] sm:$0xff]
        %v2131 = vld [vmem:[#allocation8 + $0x308] sm:$0xff]
        %v2132 = vld [vmem:[#allocation8 + $0x310] sm:$0xff]
        %v2133 = vld [vmem:[#allocation8 + $0x318] sm:$0xff]
        %v2134 = vld [vmem:[#allocation8 + $0x320] sm:$0xff]
        %v2135 = vld [vmem:[#allocation8 + $0x328] sm:$0xff]
        %v2136 = vld [vmem:[#allocation8 + $0x330] sm:$0xff]
        %v2137 = vld [vmem:[#allocation8 + $0x338] sm:$0xff]
        %v2138 = vld [vmem:[#allocation8 + $0x340] sm:$0xff]
        %v2139 = vld [vmem:[#allocation8 + $0x348] sm:$0xff]
        %v2140 = vld [vmem:[#allocation8 + $0x350] sm:$0xff]
        %v2141 = vld [vmem:[#allocation8 + $0x358] sm:$0xff]
        %v2142 = vld [vmem:[#allocation8 + $0x360] sm:$0xff]
        %v2143 = vld [vmem:[#allocation8 + $0x368] sm:$0xff]
        %v2144 = vld [vmem:[#allocation8 + $0x370] sm:$0xff]
        %v2145 = vld [vmem:[#allocation8 + $0x378] sm:$0xff]
        %v2146 = vld [vmem:[#allocation8 + $0x380] sm:$0xff]
        %v2147 = vld [vmem:[#allocation8 + $0x388] sm:$0xff]
        %v2148 = vld [vmem:[#allocation8 + $0x390] sm:$0xff]
        %v2149 = vld [vmem:[#allocation8 + $0x398] sm:$0xff]
        %v2150 = vld [vmem:[#allocation8 + $0x3a0] sm:$0xff]
        %v2151 = vld [vmem:[#allocation8 + $0x3a8] sm:$0xff]
        %v2152 = vld [vmem:[#allocation8 + $0x3b0] sm:$0xff]
        %v2153 = vld [vmem:[#allocation8 + $0x3b8] sm:$0xff]
        %v2154 = vld [vmem:[#allocation8 + $0x3c0] sm:$0xff]
        %v2155 = vld [vmem:[#allocation8 + $0x3c8] sm:$0xff]
        %v2156 = vld [vmem:[#allocation8 + $0x3d0] sm:$0xff]
        %v2157 = vld [vmem:[#allocation8 + $0x3d8] sm:$0xff]
        %v2158 = vld [vmem:[#allocation8 + $0x3e0] sm:$0xff]
        %v2159 = vld [vmem:[#allocation8 + $0x3e8] sm:$0xff]
        %v2160 = vld [vmem:[#allocation8 + $0x3f0] sm:$0xff]
        %v2161 = vld [vmem:[#allocation8 + $0x3f8] sm:$0xff]
        %v2162 = vld [vmem:[#allocation10] sm:$0x3]
        %v2164 = vperm.slane %v2162, 0
        %v2165 = vperm.slane %v2162, 1
        %2168 = vmatpush.msra.mxu0 %v2064
        %2169 = vmatpush.msra.mxu0 %v2062
        %2170 = vmatpush.msra.mxu0 %v2060
        %2171 = vmatpush.msra.mxu0 %v2058
        %2172 = vmatpush.msra.mxu0 %v2056
        %2173 = vmatpush.msra.mxu0 %v2054
        %2174 = vmatpush.msra.mxu0 %v2052
        %2175 = vmatpush.msra.mxu0 %v2050
        %2176 = vmatpush.msra.mxu0 %v2048
        %2177 = vmatpush.msra.mxu0 %v2046
        %2178 = vmatpush.msra.mxu0 %v2044
        %2179 = vmatpush.msra.mxu0 %v2042
        %2180 = vmatpush.msra.mxu0 %v2040
        %2181 = vmatpush.msra.mxu0 %v2038
        %2182 = vmatpush.msra.mxu0 %v2036
        %2183 = vmatpush.msra.mxu0 %v2034
        %2184 = vmatmul.f32.gmra.mxu0 %v2030
        %v2185 = vpop.f32.mrf.mxu0
        %v2186 = vadd.f32 %v2164, %v2185
        %2187 = vdwg.mxu0
        %2188 = vmatpush.msra.mxu0 %v2096
        %2189 = vmatpush.msra.mxu0 %v2094
        %2190 = vmatpush.msra.mxu0 %v2092
        %2191 = vmatpush.msra.mxu0 %v2090
        %2192 = vmatpush.msra.mxu0 %v2088
        %2193 = vmatpush.msra.mxu0 %v2086
        %2194 = vmatpush.msra.mxu0 %v2084
        %2195 = vmatpush.msra.mxu0 %v2082
        %2196 = vmatpush.msra.mxu0 %v2080
        %2197 = vmatpush.msra.mxu0 %v2078
        %2198 = vmatpush.msra.mxu0 %v2076
        %2199 = vmatpush.msra.mxu0 %v2074
        %2200 = vmatpush.msra.mxu0 %v2072
        %2201 = vmatpush.msra.mxu0 %v2070
        %2202 = vmatpush.msra.mxu0 %v2068
        %2203 = vmatpush.msra.mxu0 %v2066
        %2204 = vmatmul.f32.gmra.mxu0 %v2031
        %v2205 = vpop.f32.mrf.mxu0
        %v2206 = vadd.f32 %v2186, %v2205
        %2207 = vdwg.mxu0
        %2208 = vmatpush.msra.mxu0 %v2128
        %2209 = vmatpush.msra.mxu0 %v2126
        %2210 = vmatpush.msra.mxu0 %v2124
        %2211 = vmatpush.msra.mxu0 %v2122
        %2212 = vmatpush.msra.mxu0 %v2120
        %2213 = vmatpush.msra.mxu0 %v2118
        %2214 = vmatpush.msra.mxu0 %v2116
        %2215 = vmatpush.msra.mxu0 %v2114
        %2216 = vmatpush.msra.mxu0 %v2112
        %2217 = vmatpush.msra.mxu0 %v2110
        %2218 = vmatpush.msra.mxu0 %v2108
        %2219 = vmatpush.msra.mxu0 %v2106
        %2220 = vmatpush.msra.mxu0 %v2104
        %2221 = vmatpush.msra.mxu0 %v2102
        %2222 = vmatpush.msra.mxu0 %v2100
        %2223 = vmatpush.msra.mxu0 %v2098
        %2224 = vmatmul.f32.gmra.mxu0 %v2032
        %v2225 = vpop.f32.mrf.mxu0
        %v2226 = vadd.f32 %v2206, %v2225
        %2227 = vdwg.mxu0
        %2228 = vmatpush.msra.mxu0 %v2160
        %2229 = vmatpush.msra.mxu0 %v2158
        %2230 = vmatpush.msra.mxu0 %v2156
        %2231 = vmatpush.msra.mxu0 %v2154
        %2232 = vmatpush.msra.mxu0 %v2152
        %2233 = vmatpush.msra.mxu0 %v2150
        %2234 = vmatpush.msra.mxu0 %v2148
        %2235 = vmatpush.msra.mxu0 %v2146
        %2236 = vmatpush.msra.mxu0 %v2144
        %2237 = vmatpush.msra.mxu0 %v2142
        %2238 = vmatpush.msra.mxu0 %v2140
        %2239 = vmatpush.msra.mxu0 %v2138
        %2240 = vmatpush.msra.mxu0 %v2136
        %2241 = vmatpush.msra.mxu0 %v2134
        %2242 = vmatpush.msra.mxu0 %v2132
        %2243 = vmatpush.msra.mxu0 %v2130
        %2244 = vmatmul.f32.gmra.mxu0 %v2033
        %v2245 = vpop.f32.mrf.mxu0
        %v2246 = vadd.f32 %v2226, %v2245
        %2247 = vdwg.mxu0
        %2248 = vmatpush.msra.mxu0 %v2065
        %2249 = vmatpush.msra.mxu0 %v2063
        %2250 = vmatpush.msra.mxu0 %v2061
        %2251 = vmatpush.msra.mxu0 %v2059
        %2252 = vmatpush.msra.mxu0 %v2057
        %2253 = vmatpush.msra.mxu0 %v2055
        %2254 = vmatpush.msra.mxu0 %v2053
        %2255 = vmatpush.msra.mxu0 %v2051
        %2256 = vmatpush.msra.mxu0 %v2049
        %2257 = vmatpush.msra.mxu0 %v2047
        %2258 = vmatpush.msra.mxu0 %v2045
        %2259 = vmatpush.msra.mxu0 %v2043
        %2260 = vmatpush.msra.mxu0 %v2041
        %2261 = vmatpush.msra.mxu0 %v2039
        %2262 = vmatpush.msra.mxu0 %v2037
        %2263 = vmatpush.msra.mxu0 %v2035
        %2264 = vmatmul.f32.gmra.mxu0 %v2030
        %v2265 = vpop.f32.mrf.mxu0
        %v2266 = vadd.f32 %v2165, %v2265
        %2267 = vdwg.mxu0
        %2268 = vmatpush.msra.mxu0 %v2097
        %2269 = vmatpush.msra.mxu0 %v2095
        %2270 = vmatpush.msra.mxu0 %v2093
        %2271 = vmatpush.msra.mxu0 %v2091
        %2272 = vmatpush.msra.mxu0 %v2089
        %2273 = vmatpush.msra.mxu0 %v2087
        %2274 = vmatpush.msra.mxu0 %v2085
        %2275 = vmatpush.msra.mxu0 %v2083
        %2276 = vmatpush.msra.mxu0 %v2081
        %2277 = vmatpush.msra.mxu0 %v2079
        %2278 = vmatpush.msra.mxu0 %v2077
        %2279 = vmatpush.msra.mxu0 %v2075
        %2280 = vmatpush.msra.mxu0 %v2073
        %2281 = vmatpush.msra.mxu0 %v2071
        %2282 = vmatpush.msra.mxu0 %v2069
        %2283 = vmatpush.msra.mxu0 %v2067
        %2284 = vmatmul.f32.gmra.mxu0 %v2031
        %v2285 = vpop.f32.mrf.mxu0
        %v2286 = vadd.f32 %v2266, %v2285
        %2287 = vdwg.mxu0
        %2288 = vmatpush.msra.mxu0 %v2129
        %2289 = vmatpush.msra.mxu0 %v2127
        %2290 = vmatpush.msra.mxu0 %v2125
        %2291 = vmatpush.msra.mxu0 %v2123
        %2292 = vmatpush.msra.mxu0 %v2121
        %2293 = vmatpush.msra.mxu0 %v2119
        %2294 = vmatpush.msra.mxu0 %v2117
        %2295 = vmatpush.msra.mxu0 %v2115
        %2296 = vmatpush.msra.mxu0 %v2113
        %2297 = vmatpush.msra.mxu0 %v2111
        %2298 = vmatpush.msra.mxu0 %v2109
        %2299 = vmatpush.msra.mxu0 %v2107
        %2300 = vmatpush.msra.mxu0 %v2105
        %2301 = vmatpush.msra.mxu0 %v2103
        %2302 = vmatpush.msra.mxu0 %v2101
        %2303 = vmatpush.msra.mxu0 %v2099
        %2304 = vmatmul.f32.gmra.mxu0 %v2032
        %v2305 = vpop.f32.mrf.mxu0
        %v2306 = vadd.f32 %v2286, %v2305
        %2307 = vdwg.mxu0
        %2308 = vmatpush.msra.mxu0 %v2161
        %2309 = vmatpush.msra.mxu0 %v2159
        %2310 = vmatpush.msra.mxu0 %v2157
        %2311 = vmatpush.msra.mxu0 %v2155
        %2312 = vmatpush.msra.mxu0 %v2153
        %2313 = vmatpush.msra.mxu0 %v2151
        %2314 = vmatpush.msra.mxu0 %v2149
        %2315 = vmatpush.msra.mxu0 %v2147
        %2316 = vmatpush.msra.mxu0 %v2145
        %2317 = vmatpush.msra.mxu0 %v2143
        %2318 = vmatpush.msra.mxu0 %v2141
        %2319 = vmatpush.msra.mxu0 %v2139
        %2320 = vmatpush.msra.mxu0 %v2137
        %2321 = vmatpush.msra.mxu0 %v2135
        %2322 = vmatpush.msra.mxu0 %v2133
        %2323 = vmatpush.msra.mxu0 %v2131
        %2324 = vmatmul.f32.gmra.mxu0 %v2033
        %v2325 = vpop.f32.mrf.mxu0
        %v2326 = vadd.f32 %v2306, %v2325
        %2327 = vdwg.mxu0
        %vm2328 = vcmp.gt.f32.partialorder %v2246, 0.0
        %vm2329 = vcmp.gt.f32.partialorder %v2326, 0.0
        %v2330 = vmul.f32 %v2246, 0.2
        %v2331 = vmul.f32 %v2326, 0.2
        %v2332 = vsel %vm2328, %v2246, %v2330
        %v2333 = vsel %vm2329, %v2326, %v2331
        %v2334 = vld [vmem:[%s6] sm:$0xff]
        %v2335 = vld [vmem:[%s6 + $0x8] sm:$0xff]
        %v2336 = vld [vmem:[%s6 + $0x10] sm:$0xff]
        %v2337 = vld [vmem:[%s6 + $0x18] sm:$0xff]
        %v2338 = vld [vmem:[%s6 + $0x20] sm:$0xff]
        %v2339 = vld [vmem:[%s6 + $0x28] sm:$0xff]
        %v2340 = vld [vmem:[%s6 + $0x30] sm:$0xff]
        %v2341 = vld [vmem:[%s6 + $0x38] sm:$0xff]
        %v2342 = vld [vmem:[%s6 + $0x40] sm:$0xff]
        %v2343 = vld [vmem:[%s6 + $0x48] sm:$0xff]
        %v2344 = vld [vmem:[%s6 + $0x50] sm:$0xff]
        %v2345 = vld [vmem:[%s6 + $0x58] sm:$0xff]
        %v2346 = vld [vmem:[%s6 + $0x60] sm:$0xff]
        %v2347 = vld [vmem:[%s6 + $0x68] sm:$0xff]
        %v2348 = vld [vmem:[%s6 + $0x70] sm:$0xff]
        %v2349 = vld [vmem:[%s6 + $0x78] sm:$0xff]
        %v2350 = vld [vmem:[%s6 + $0x80] sm:$0xff]
        %v2351 = vld [vmem:[%s6 + $0x88] sm:$0xff]
        %v2352 = vld [vmem:[%s6 + $0x90] sm:$0xff]
        %v2353 = vld [vmem:[%s6 + $0x98] sm:$0xff]
        %v2354 = vld [vmem:[%s6 + $0xa0] sm:$0xff]
        %v2355 = vld [vmem:[%s6 + $0xa8] sm:$0xff]
        %v2356 = vld [vmem:[%s6 + $0xb0] sm:$0xff]
        %v2357 = vld [vmem:[%s6 + $0xb8] sm:$0xff]
        %v2358 = vld [vmem:[%s6 + $0xc0] sm:$0xff]
        %v2359 = vld [vmem:[%s6 + $0xc8] sm:$0xff]
        %v2360 = vld [vmem:[%s6 + $0xd0] sm:$0xff]
        %v2361 = vld [vmem:[%s6 + $0xd8] sm:$0xff]
        %v2362 = vld [vmem:[%s6 + $0xe0] sm:$0xff]
        %v2363 = vld [vmem:[%s6 + $0xe8] sm:$0xff]
        %v2364 = vld [vmem:[%s6 + $0xf0] sm:$0xff]
        %v2365 = vld [vmem:[%s6 + $0xf8] sm:$0xff]
        %v2366 = vld [vmem:[#allocation11] sm:$0x1]
        %2367 = vmatpush.msra.mxu0 %v2349
        %2368 = vmatpush.msra.mxu0 %v2348
        %2369 = vmatpush.msra.mxu0 %v2347
        %2370 = vmatpush.msra.mxu0 %v2346
        %2371 = vmatpush.msra.mxu0 %v2345
        %2372 = vmatpush.msra.mxu0 %v2344
        %2373 = vmatpush.msra.mxu0 %v2343
        %2374 = vmatpush.msra.mxu0 %v2342
        %2375 = vmatpush.msra.mxu0 %v2341
        %2376 = vmatpush.msra.mxu0 %v2340
        %2377 = vmatpush.msra.mxu0 %v2339
        %2378 = vmatpush.msra.mxu0 %v2338
        %2379 = vmatpush.msra.mxu0 %v2337
        %2380 = vmatpush.msra.mxu0 %v2336
        %2381 = vmatpush.msra.mxu0 %v2335
        %2382 = vmatpush.msra.mxu0 %v2334
        %2383 = vmatmul.f32.gmra.mxu0 %v2332
        %v2384 = vpop.f32.mrf.mxu0
        %v2385 = vadd.f32 %v2366, %v2384
        %2386 = vdwg.mxu0
        %2387 = vmatpush.msra.mxu0 %v2365
        %2388 = vmatpush.msra.mxu0 %v2364
        %2389 = vmatpush.msra.mxu0 %v2363
        %2390 = vmatpush.msra.mxu0 %v2362
        %2391 = vmatpush.msra.mxu0 %v2361
        %2392 = vmatpush.msra.mxu0 %v2360
        %2393 = vmatpush.msra.mxu0 %v2359
        %2394 = vmatpush.msra.mxu0 %v2358
        %2395 = vmatpush.msra.mxu0 %v2357
        %2396 = vmatpush.msra.mxu0 %v2356
        %2397 = vmatpush.msra.mxu0 %v2355
        %2398 = vmatpush.msra.mxu0 %v2354
        %2399 = vmatpush.msra.mxu0 %v2353
        %2400 = vmatpush.msra.mxu0 %v2352
        %2401 = vmatpush.msra.mxu0 %v2351
        %2402 = vmatpush.msra.mxu0 %v2350
        %2403 = vmatmul.f32.gmra.mxu0 %v2333
        %v2404 = vpop.f32.mrf.mxu0
        %v2405 = vadd.f32 %v2385, %v2404
        %2406 = vdwg.mxu0
        %v2407 = vld [vmem:[%s8] sm:$0xff]
        %v2408 = vld [vmem:[%s8 + $0x8] sm:$0xff]
        %v2409 = vld [vmem:[%s8 + $0x10] sm:$0xff]
        %v2410 = vld [vmem:[%s8 + $0x18] sm:$0xff]
        %v2411 = vld [vmem:[%s8 + $0x20] sm:$0xff]
        %v2412 = vld [vmem:[%s8 + $0x28] sm:$0xff]
        %v2413 = vld [vmem:[%s8 + $0x30] sm:$0xff]
        %v2414 = vld [vmem:[%s8 + $0x38] sm:$0xff]
        %v2415 = vld [vmem:[%s8 + $0x40] sm:$0xff]
        %v2416 = vld [vmem:[%s8 + $0x48] sm:$0xff]
        %v2417 = vld [vmem:[%s8 + $0x50] sm:$0xff]
        %v2418 = vld [vmem:[%s8 + $0x58] sm:$0xff]
        %v2419 = vld [vmem:[%s8 + $0x60] sm:$0xff]
        %v2420 = vld [vmem:[%s8 + $0x68] sm:$0xff]
        %v2421 = vld [vmem:[%s8 + $0x70] sm:$0xff]
        %v2422 = vld [vmem:[%s8 + $0x78] sm:$0xff]
        %v2423 = vld [vmem:[%s8 + $0x80] sm:$0xff]
        %v2424 = vld [vmem:[%s8 + $0x88] sm:$0xff]
        %v2425 = vld [vmem:[%s8 + $0x90] sm:$0xff]
        %v2426 = vld [vmem:[%s8 + $0x98] sm:$0xff]
        %v2427 = vld [vmem:[%s8 + $0xa0] sm:$0xff]
        %v2428 = vld [vmem:[%s8 + $0xa8] sm:$0xff]
        %v2429 = vld [vmem:[%s8 + $0xb0] sm:$0xff]
        %v2430 = vld [vmem:[%s8 + $0xb8] sm:$0xff]
        %v2431 = vld [vmem:[%s8 + $0xc0] sm:$0xff]
        %v2432 = vld [vmem:[%s8 + $0xc8] sm:$0xff]
        %v2433 = vld [vmem:[%s8 + $0xd0] sm:$0xff]
        %v2434 = vld [vmem:[%s8 + $0xd8] sm:$0xff]
        %v2435 = vld [vmem:[%s8 + $0xe0] sm:$0xff]
        %v2436 = vld [vmem:[%s8 + $0xe8] sm:$0xff]
        %v2437 = vld [vmem:[%s8 + $0xf0] sm:$0xff]
        %v2438 = vld [vmem:[%s8 + $0xf8] sm:$0xff]
        %v2439 = vld [vmem:[#allocation13] sm:$0x1]
        %2440 = vmatpush.msra.mxu0 %v2422
        %2441 = vmatpush.msra.mxu0 %v2421
        %2442 = vmatpush.msra.mxu0 %v2420
        %2443 = vmatpush.msra.mxu0 %v2419
        %2444 = vmatpush.msra.mxu0 %v2418
        %2445 = vmatpush.msra.mxu0 %v2417
        %2446 = vmatpush.msra.mxu0 %v2416
        %2447 = vmatpush.msra.mxu0 %v2415
        %2448 = vmatpush.msra.mxu0 %v2414
        %2449 = vmatpush.msra.mxu0 %v2413
        %2450 = vmatpush.msra.mxu0 %v2412
        %2451 = vmatpush.msra.mxu0 %v2411
        %2452 = vmatpush.msra.mxu0 %v2410
        %2453 = vmatpush.msra.mxu0 %v2409
        %2454 = vmatpush.msra.mxu0 %v2408
        %2455 = vmatpush.msra.mxu0 %v2407
        %2456 = vmatmul.f32.gmra.mxu0 %v2332
        %v2457 = vpop.f32.mrf.mxu0
        %v2458 = vadd.f32 %v2439, %v2457
        %2459 = vdwg.mxu0
        %2460 = vmatpush.msra.mxu0 %v2438
        %2461 = vmatpush.msra.mxu0 %v2437
        %2462 = vmatpush.msra.mxu0 %v2436
        %2463 = vmatpush.msra.mxu0 %v2435
        %2464 = vmatpush.msra.mxu0 %v2434
        %2465 = vmatpush.msra.mxu0 %v2433
        %2466 = vmatpush.msra.mxu0 %v2432
        %2467 = vmatpush.msra.mxu0 %v2431
        %2468 = vmatpush.msra.mxu0 %v2430
        %2469 = vmatpush.msra.mxu0 %v2429
        %2470 = vmatpush.msra.mxu0 %v2428
        %2471 = vmatpush.msra.mxu0 %v2427
        %2472 = vmatpush.msra.mxu0 %v2426
        %2473 = vmatpush.msra.mxu0 %v2425
        %2474 = vmatpush.msra.mxu0 %v2424
        %2475 = vmatpush.msra.mxu0 %v2423
        %2476 = vmatmul.f32.gmra.mxu0 %v2333
        %v2477 = vpop.f32.mrf.mxu0
        %v2478 = vadd.f32 %v2458, %v2477
        %2479 = vdwg.mxu0
        %v2480 = vld [vmem:[%s704] sm:$0x1]
        %v2481 = vmul.f32 %v2478, 0.5
        %v2482 = vmul.f32 %v2481, 1.442695
        %v2483 = vpow.pop %v2482
        %v2484 = vmul.f32 %v2480, %v2483
        %v2485 = vadd.f32 %v2405, %v2484
        %v2486 = vld [vmem:[#allocation14] sm:$0xff]
        %v2487 = vld [vmem:[#allocation14 + $0x8] sm:$0xff]
        %v2488 = vld [vmem:[#allocation14 + $0x10] sm:$0xff]
        %v2489 = vld [vmem:[#allocation14 + $0x18] sm:$0xff]
        %v2490 = vld [vmem:[#allocation14 + $0x20] sm:$0xff]
        %v2491 = vld [vmem:[#allocation14 + $0x28] sm:$0xff]
        %v2492 = vld [vmem:[#allocation14 + $0x30] sm:$0xff]
        %v2493 = vld [vmem:[#allocation14 + $0x38] sm:$0xff]
        %v2494 = vld [vmem:[#allocation16] sm:$0x3]
        %v2496 = vperm.slane %v2494, 0
        %v2497 = vperm.slane %v2494, 1
        %vm2500 = vcmask 261120
        %v2502 = vsel %vm2500, %v2485, 0
        %2504 = vmatpush.msra.mxu0 0.0
        %2505 = vmatpush.msra.mxu0 0.0
        %2506 = vmatpush.msra.mxu0 0.0
        %2507 = vmatpush.msra.mxu0 0.0
        %2508 = vmatpush.msra.mxu0 0.0
        %2509 = vmatpush.msra.mxu0 0.0
        %2510 = vmatpush.msra.mxu0 0.0
        %2511 = vmatpush.msra.mxu0 0.0
        %2512 = vmatpush.msra.mxu0 0.0
        %2513 = vmatpush.msra.mxu0 0.0
        %2514 = vmatpush.msra.mxu0 0.0
        %2515 = vmatpush.msra.mxu0 0.0
        %2516 = vmatpush.msra.mxu0 %v2492
        %2517 = vmatpush.msra.mxu0 %v2490
        %2518 = vmatpush.msra.mxu0 %v2488
        %2519 = vmatpush.msra.mxu0 %v2486
        %2520 = vmatmul.f32.gmra.mxu0 %v2502
        %v2521 = vpop.f32.mrf.mxu0
        %v2522 = vadd.f32 %v2496, %v2521
        %2523 = vdwg.mxu0
        %2524 = vmatpush.msra.mxu0 0.0
        %2525 = vmatpush.msra.mxu0 0.0
        %2526 = vmatpush.msra.mxu0 0.0
        %2527 = vmatpush.msra.mxu0 0.0
        %2528 = vmatpush.msra.mxu0 0.0
        %2529 = vmatpush.msra.mxu0 0.0
        %2530 = vmatpush.msra.mxu0 0.0
        %2531 = vmatpush.msra.mxu0 0.0
        %2532 = vmatpush.msra.mxu0 0.0
        %2533 = vmatpush.msra.mxu0 0.0
        %2534 = vmatpush.msra.mxu0 0.0
        %2535 = vmatpush.msra.mxu0 0.0
        %2536 = vmatpush.msra.mxu0 %v2493
        %2537 = vmatpush.msra.mxu0 %v2491
        %2538 = vmatpush.msra.mxu0 %v2489
        %2539 = vmatpush.msra.mxu0 %v2487
        %2540 = vmatmul.f32.gmra.mxu0 %v2502
        %v2541 = vpop.f32.mrf.mxu0
        %v2542 = vadd.f32 %v2497, %v2541
        %2543 = vdwg.mxu0
        %v2544 = vmax.f32 %v2522, 0.0
        %v2545 = vmax.f32 %v2542, 0.0
        %v2546 = vld [vmem:[#allocation17] sm:$0xff]
        %v2547 = vld [vmem:[#allocation17 + $0x8] sm:$0xff]
        %v2548 = vld [vmem:[#allocation17 + $0x10] sm:$0xff]
        %v2549 = vld [vmem:[#allocation17 + $0x18] sm:$0xff]
        %v2550 = vld [vmem:[#allocation17 + $0x20] sm:$0xff]
        %v2551 = vld [vmem:[#allocation17 + $0x28] sm:$0xff]
        %v2552 = vld [vmem:[#allocation17 + $0x30] sm:$0xff]
        %v2553 = vld [vmem:[#allocation17 + $0x38] sm:$0xff]
        %v2554 = vld [vmem:[#allocation17 + $0x40] sm:$0xff]
        %v2555 = vld [vmem:[#allocation17 + $0x48] sm:$0xff]
        %v2556 = vld [vmem:[#allocation17 + $0x50] sm:$0xff]
        %v2557 = vld [vmem:[#allocation17 + $0x58] sm:$0xff]
        %v2558 = vld [vmem:[#allocation17 + $0x60] sm:$0xff]
        %v2559 = vld [vmem:[#allocation17 + $0x68] sm:$0xff]
        %v2560 = vld [vmem:[#allocation17 + $0x70] sm:$0xff]
        %v2561 = vld [vmem:[#allocation17 + $0x78] sm:$0xff]
        %v2562 = vld [vmem:[#allocation17 + $0x80] sm:$0xff]
        %v2563 = vld [vmem:[#allocation17 + $0x88] sm:$0xff]
        %v2564 = vld [vmem:[#allocation17 + $0x90] sm:$0xff]
        %v2565 = vld [vmem:[#allocation17 + $0x98] sm:$0xff]
        %v2566 = vld [vmem:[#allocation17 + $0xa0] sm:$0xff]
        %v2567 = vld [vmem:[#allocation17 + $0xa8] sm:$0xff]
        %v2568 = vld [vmem:[#allocation17 + $0xb0] sm:$0xff]
        %v2569 = vld [vmem:[#allocation17 + $0xb8] sm:$0xff]
        %v2570 = vld [vmem:[#allocation17 + $0xc0] sm:$0xff]
        %v2571 = vld [vmem:[#allocation17 + $0xc8] sm:$0xff]
        %v2572 = vld [vmem:[#allocation17 + $0xd0] sm:$0xff]
        %v2573 = vld [vmem:[#allocation17 + $0xd8] sm:$0xff]
        %v2574 = vld [vmem:[#allocation17 + $0xe0] sm:$0xff]
        %v2575 = vld [vmem:[#allocation17 + $0xe8] sm:$0xff]
        %v2576 = vld [vmem:[#allocation17 + $0xf0] sm:$0xff]
        %v2577 = vld [vmem:[#allocation17 + $0xf8] sm:$0xff]
        %v2578 = vld [vmem:[#allocation17 + $0x100] sm:$0xff]
        %v2579 = vld [vmem:[#allocation17 + $0x108] sm:$0xff]
        %v2580 = vld [vmem:[#allocation17 + $0x110] sm:$0xff]
        %v2581 = vld [vmem:[#allocation17 + $0x118] sm:$0xff]
        %v2582 = vld [vmem:[#allocation17 + $0x120] sm:$0xff]
        %v2583 = vld [vmem:[#allocation17 + $0x128] sm:$0xff]
        %v2584 = vld [vmem:[#allocation17 + $0x130] sm:$0xff]
        %v2585 = vld [vmem:[#allocation17 + $0x138] sm:$0xff]
        %v2586 = vld [vmem:[#allocation17 + $0x140] sm:$0xff]
        %v2587 = vld [vmem:[#allocation17 + $0x148] sm:$0xff]
        %v2588 = vld [vmem:[#allocation17 + $0x150] sm:$0xff]
        %v2589 = vld [vmem:[#allocation17 + $0x158] sm:$0xff]
        %v2590 = vld [vmem:[#allocation17 + $0x160] sm:$0xff]
        %v2591 = vld [vmem:[#allocation17 + $0x168] sm:$0xff]
        %v2592 = vld [vmem:[#allocation17 + $0x170] sm:$0xff]
        %v2593 = vld [vmem:[#allocation17 + $0x178] sm:$0xff]
        %v2594 = vld [vmem:[#allocation17 + $0x180] sm:$0xff]
        %v2595 = vld [vmem:[#allocation17 + $0x188] sm:$0xff]
        %v2596 = vld [vmem:[#allocation17 + $0x190] sm:$0xff]
        %v2597 = vld [vmem:[#allocation17 + $0x198] sm:$0xff]
        %v2598 = vld [vmem:[#allocation17 + $0x1a0] sm:$0xff]
        %v2599 = vld [vmem:[#allocation17 + $0x1a8] sm:$0xff]
        %v2600 = vld [vmem:[#allocation17 + $0x1b0] sm:$0xff]
        %v2601 = vld [vmem:[#allocation17 + $0x1b8] sm:$0xff]
        %v2602 = vld [vmem:[#allocation17 + $0x1c0] sm:$0xff]
        %v2603 = vld [vmem:[#allocation17 + $0x1c8] sm:$0xff]
        %v2604 = vld [vmem:[#allocation17 + $0x1d0] sm:$0xff]
        %v2605 = vld [vmem:[#allocation17 + $0x1d8] sm:$0xff]
        %v2606 = vld [vmem:[#allocation17 + $0x1e0] sm:$0xff]
        %v2607 = vld [vmem:[#allocation17 + $0x1e8] sm:$0xff]
        %v2608 = vld [vmem:[#allocation17 + $0x1f0] sm:$0xff]
        %v2609 = vld [vmem:[#allocation17 + $0x1f8] sm:$0xff]
        %v2610 = vld [vmem:[#allocation17 + $0x200] sm:$0xff]
        %v2611 = vld [vmem:[#allocation17 + $0x208] sm:$0xff]
        %v2612 = vld [vmem:[#allocation17 + $0x210] sm:$0xff]
        %v2613 = vld [vmem:[#allocation17 + $0x218] sm:$0xff]
        %v2614 = vld [vmem:[#allocation17 + $0x220] sm:$0xff]
        %v2615 = vld [vmem:[#allocation17 + $0x228] sm:$0xff]
        %v2616 = vld [vmem:[#allocation17 + $0x230] sm:$0xff]
        %v2617 = vld [vmem:[#allocation17 + $0x238] sm:$0xff]
        %v2618 = vld [vmem:[#allocation17 + $0x240] sm:$0xff]
        %v2619 = vld [vmem:[#allocation17 + $0x248] sm:$0xff]
        %v2620 = vld [vmem:[#allocation17 + $0x250] sm:$0xff]
        %v2621 = vld [vmem:[#allocation17 + $0x258] sm:$0xff]
        %v2622 = vld [vmem:[#allocation17 + $0x260] sm:$0xff]
        %v2623 = vld [vmem:[#allocation17 + $0x268] sm:$0xff]
        %v2624 = vld [vmem:[#allocation17 + $0x270] sm:$0xff]
        %v2625 = vld [vmem:[#allocation17 + $0x278] sm:$0xff]
        %v2626 = vld [vmem:[#allocation17 + $0x280] sm:$0xff]
        %v2627 = vld [vmem:[#allocation17 + $0x288] sm:$0xff]
        %v2628 = vld [vmem:[#allocation17 + $0x290] sm:$0xff]
        %v2629 = vld [vmem:[#allocation17 + $0x298] sm:$0xff]
        %v2630 = vld [vmem:[#allocation17 + $0x2a0] sm:$0xff]
        %v2631 = vld [vmem:[#allocation17 + $0x2a8] sm:$0xff]
        %v2632 = vld [vmem:[#allocation17 + $0x2b0] sm:$0xff]
        %v2633 = vld [vmem:[#allocation17 + $0x2b8] sm:$0xff]
        %v2634 = vld [vmem:[#allocation17 + $0x2c0] sm:$0xff]
        %v2635 = vld [vmem:[#allocation17 + $0x2c8] sm:$0xff]
        %v2636 = vld [vmem:[#allocation17 + $0x2d0] sm:$0xff]
        %v2637 = vld [vmem:[#allocation17 + $0x2d8] sm:$0xff]
        %v2638 = vld [vmem:[#allocation17 + $0x2e0] sm:$0xff]
        %v2639 = vld [vmem:[#allocation17 + $0x2e8] sm:$0xff]
        %v2640 = vld [vmem:[#allocation17 + $0x2f0] sm:$0xff]
        %v2641 = vld [vmem:[#allocation17 + $0x2f8] sm:$0xff]
        %v2642 = vld [vmem:[#allocation17 + $0x300] sm:$0xff]
        %v2643 = vld [vmem:[#allocation17 + $0x308] sm:$0xff]
        %v2644 = vld [vmem:[#allocation17 + $0x310] sm:$0xff]
        %v2645 = vld [vmem:[#allocation17 + $0x318] sm:$0xff]
        %v2646 = vld [vmem:[#allocation17 + $0x320] sm:$0xff]
        %v2647 = vld [vmem:[#allocation17 + $0x328] sm:$0xff]
        %v2648 = vld [vmem:[#allocation17 + $0x330] sm:$0xff]
        %v2649 = vld [vmem:[#allocation17 + $0x338] sm:$0xff]
        %v2650 = vld [vmem:[#allocation17 + $0x340] sm:$0xff]
        %v2651 = vld [vmem:[#allocation17 + $0x348] sm:$0xff]
        %v2652 = vld [vmem:[#allocation17 + $0x350] sm:$0xff]
        %v2653 = vld [vmem:[#allocation17 + $0x358] sm:$0xff]
        %v2654 = vld [vmem:[#allocation17 + $0x360] sm:$0xff]
        %v2655 = vld [vmem:[#allocation17 + $0x368] sm:$0xff]
        %v2656 = vld [vmem:[#allocation17 + $0x370] sm:$0xff]
        %v2657 = vld [vmem:[#allocation17 + $0x378] sm:$0xff]
        %v2658 = vld [vmem:[#allocation17 + $0x380] sm:$0xff]
        %v2659 = vld [vmem:[#allocation17 + $0x388] sm:$0xff]
        %v2660 = vld [vmem:[#allocation17 + $0x390] sm:$0xff]
        %v2661 = vld [vmem:[#allocation17 + $0x398] sm:$0xff]
        %v2662 = vld [vmem:[#allocation17 + $0x3a0] sm:$0xff]
        %v2663 = vld [vmem:[#allocation17 + $0x3a8] sm:$0xff]
        %v2664 = vld [vmem:[#allocation17 + $0x3b0] sm:$0xff]
        %v2665 = vld [vmem:[#allocation17 + $0x3b8] sm:$0xff]
        %v2666 = vld [vmem:[#allocation17 + $0x3c0] sm:$0xff]
        %v2667 = vld [vmem:[#allocation17 + $0x3c8] sm:$0xff]
        %v2668 = vld [vmem:[#allocation17 + $0x3d0] sm:$0xff]
        %v2669 = vld [vmem:[#allocation17 + $0x3d8] sm:$0xff]
        %v2670 = vld [vmem:[#allocation17 + $0x3e0] sm:$0xff]
        %v2671 = vld [vmem:[#allocation17 + $0x3e8] sm:$0xff]
        %v2672 = vld [vmem:[#allocation17 + $0x3f0] sm:$0xff]
        %v2673 = vld [vmem:[#allocation17 + $0x3f8] sm:$0xff]
        %v2674 = vld [vmem:[#allocation19] sm:$0xf]
        %v2676 = vperm.slane %v2674, 0
        %v2677 = vperm.slane %v2674, 1
        %v2678 = vperm.slane %v2674, 2
        %v2679 = vperm.slane %v2674, 3
        %2684 = vmatpush.msra.mxu0 %v2606
        %2685 = vmatpush.msra.mxu0 %v2602
        %2686 = vmatpush.msra.mxu0 %v2598
        %2687 = vmatpush.msra.mxu0 %v2594
        %2688 = vmatpush.msra.mxu0 %v2590
        %2689 = vmatpush.msra.mxu0 %v2586
        %2690 = vmatpush.msra.mxu0 %v2582
        %2691 = vmatpush.msra.mxu0 %v2578
        %2692 = vmatpush.msra.mxu0 %v2574
        %2693 = vmatpush.msra.mxu0 %v2570
        %2694 = vmatpush.msra.mxu0 %v2566
        %2695 = vmatpush.msra.mxu0 %v2562
        %2696 = vmatpush.msra.mxu0 %v2558
        %2697 = vmatpush.msra.mxu0 %v2554
        %2698 = vmatpush.msra.mxu0 %v2550
        %2699 = vmatpush.msra.mxu0 %v2546
        %2700 = vmatmul.f32.gmra.mxu0 %v2544
        %v2701 = vpop.f32.mrf.mxu0
        %v2702 = vadd.f32 %v2676, %v2701
        %2703 = vdwg.mxu0
        %2704 = vmatpush.msra.mxu0 %v2670
        %2705 = vmatpush.msra.mxu0 %v2666
        %2706 = vmatpush.msra.mxu0 %v2662
        %2707 = vmatpush.msra.mxu0 %v2658
        %2708 = vmatpush.msra.mxu0 %v2654
        %2709 = vmatpush.msra.mxu0 %v2650
        %2710 = vmatpush.msra.mxu0 %v2646
        %2711 = vmatpush.msra.mxu0 %v2642
        %2712 = vmatpush.msra.mxu0 %v2638
        %2713 = vmatpush.msra.mxu0 %v2634
        %2714 = vmatpush.msra.mxu0 %v2630
        %2715 = vmatpush.msra.mxu0 %v2626
        %2716 = vmatpush.msra.mxu0 %v2622
        %2717 = vmatpush.msra.mxu0 %v2618
        %2718 = vmatpush.msra.mxu0 %v2614
        %2719 = vmatpush.msra.mxu0 %v2610
        %2720 = vmatmul.f32.gmra.mxu0 %v2545
        %v2721 = vpop.f32.mrf.mxu0
        %v2722 = vadd.f32 %v2702, %v2721
        %2723 = vdwg.mxu0
        %2724 = vmatpush.msra.mxu0 %v2607
        %2725 = vmatpush.msra.mxu0 %v2603
        %2726 = vmatpush.msra.mxu0 %v2599
        %2727 = vmatpush.msra.mxu0 %v2595
        %2728 = vmatpush.msra.mxu0 %v2591
        %2729 = vmatpush.msra.mxu0 %v2587
        %2730 = vmatpush.msra.mxu0 %v2583
        %2731 = vmatpush.msra.mxu0 %v2579
        %2732 = vmatpush.msra.mxu0 %v2575
        %2733 = vmatpush.msra.mxu0 %v2571
        %2734 = vmatpush.msra.mxu0 %v2567
        %2735 = vmatpush.msra.mxu0 %v2563
        %2736 = vmatpush.msra.mxu0 %v2559
        %2737 = vmatpush.msra.mxu0 %v2555
        %2738 = vmatpush.msra.mxu0 %v2551
        %2739 = vmatpush.msra.mxu0 %v2547
        %2740 = vmatmul.f32.gmra.mxu0 %v2544
        %v2741 = vpop.f32.mrf.mxu0
        %v2742 = vadd.f32 %v2677, %v2741
        %2743 = vdwg.mxu0
        %2744 = vmatpush.msra.mxu0 %v2671
        %2745 = vmatpush.msra.mxu0 %v2667
        %2746 = vmatpush.msra.mxu0 %v2663
        %2747 = vmatpush.msra.mxu0 %v2659
        %2748 = vmatpush.msra.mxu0 %v2655
        %2749 = vmatpush.msra.mxu0 %v2651
        %2750 = vmatpush.msra.mxu0 %v2647
        %2751 = vmatpush.msra.mxu0 %v2643
        %2752 = vmatpush.msra.mxu0 %v2639
        %2753 = vmatpush.msra.mxu0 %v2635
        %2754 = vmatpush.msra.mxu0 %v2631
        %2755 = vmatpush.msra.mxu0 %v2627
        %2756 = vmatpush.msra.mxu0 %v2623
        %2757 = vmatpush.msra.mxu0 %v2619
        %2758 = vmatpush.msra.mxu0 %v2615
        %2759 = vmatpush.msra.mxu0 %v2611
        %2760 = vmatmul.f32.gmra.mxu0 %v2545
        %v2761 = vpop.f32.mrf.mxu0
        %v2762 = vadd.f32 %v2742, %v2761
        %2763 = vdwg.mxu0
        %2764 = vmatpush.msra.mxu0 %v2608
        %2765 = vmatpush.msra.mxu0 %v2604
        %2766 = vmatpush.msra.mxu0 %v2600
        %2767 = vmatpush.msra.mxu0 %v2596
        %2768 = vmatpush.msra.mxu0 %v2592
        %2769 = vmatpush.msra.mxu0 %v2588
        %2770 = vmatpush.msra.mxu0 %v2584
        %2771 = vmatpush.msra.mxu0 %v2580
        %2772 = vmatpush.msra.mxu0 %v2576
        %2773 = vmatpush.msra.mxu0 %v2572
        %2774 = vmatpush.msra.mxu0 %v2568
        %2775 = vmatpush.msra.mxu0 %v2564
        %2776 = vmatpush.msra.mxu0 %v2560
        %2777 = vmatpush.msra.mxu0 %v2556
        %2778 = vmatpush.msra.mxu0 %v2552
        %2779 = vmatpush.msra.mxu0 %v2548
        %2780 = vmatmul.f32.gmra.mxu0 %v2544
        %v2781 = vpop.f32.mrf.mxu0
        %v2782 = vadd.f32 %v2678, %v2781
        %2783 = vdwg.mxu0
        %2784 = vmatpush.msra.mxu0 %v2672
        %2785 = vmatpush.msra.mxu0 %v2668
        %2786 = vmatpush.msra.mxu0 %v2664
        %2787 = vmatpush.msra.mxu0 %v2660
        %2788 = vmatpush.msra.mxu0 %v2656
        %2789 = vmatpush.msra.mxu0 %v2652
        %2790 = vmatpush.msra.mxu0 %v2648
        %2791 = vmatpush.msra.mxu0 %v2644
        %2792 = vmatpush.msra.mxu0 %v2640
        %2793 = vmatpush.msra.mxu0 %v2636
        %2794 = vmatpush.msra.mxu0 %v2632
        %2795 = vmatpush.msra.mxu0 %v2628
        %2796 = vmatpush.msra.mxu0 %v2624
        %2797 = vmatpush.msra.mxu0 %v2620
        %2798 = vmatpush.msra.mxu0 %v2616
        %2799 = vmatpush.msra.mxu0 %v2612
        %2800 = vmatmul.f32.gmra.mxu0 %v2545
        %v2801 = vpop.f32.mrf.mxu0
        %v2802 = vadd.f32 %v2782, %v2801
        %2803 = vdwg.mxu0
        %2804 = vmatpush.msra.mxu0 %v2609
        %2805 = vmatpush.msra.mxu0 %v2605
        %2806 = vmatpush.msra.mxu0 %v2601
        %2807 = vmatpush.msra.mxu0 %v2597
        %2808 = vmatpush.msra.mxu0 %v2593
        %2809 = vmatpush.msra.mxu0 %v2589
        %2810 = vmatpush.msra.mxu0 %v2585
        %2811 = vmatpush.msra.mxu0 %v2581
        %2812 = vmatpush.msra.mxu0 %v2577
        %2813 = vmatpush.msra.mxu0 %v2573
        %2814 = vmatpush.msra.mxu0 %v2569
        %2815 = vmatpush.msra.mxu0 %v2565
        %2816 = vmatpush.msra.mxu0 %v2561
        %2817 = vmatpush.msra.mxu0 %v2557
        %2818 = vmatpush.msra.mxu0 %v2553
        %2819 = vmatpush.msra.mxu0 %v2549
        %2820 = vmatmul.f32.gmra.mxu0 %v2544
        %v2821 = vpop.f32.mrf.mxu0
        %v2822 = vadd.f32 %v2679, %v2821
        %2823 = vdwg.mxu0
        %2824 = vmatpush.msra.mxu0 %v2673
        %2825 = vmatpush.msra.mxu0 %v2669
        %2826 = vmatpush.msra.mxu0 %v2665
        %2827 = vmatpush.msra.mxu0 %v2661
        %2828 = vmatpush.msra.mxu0 %v2657
        %2829 = vmatpush.msra.mxu0 %v2653
        %2830 = vmatpush.msra.mxu0 %v2649
        %2831 = vmatpush.msra.mxu0 %v2645
        %2832 = vmatpush.msra.mxu0 %v2641
        %2833 = vmatpush.msra.mxu0 %v2637
        %2834 = vmatpush.msra.mxu0 %v2633
        %2835 = vmatpush.msra.mxu0 %v2629
        %2836 = vmatpush.msra.mxu0 %v2625
        %2837 = vmatpush.msra.mxu0 %v2621
        %2838 = vmatpush.msra.mxu0 %v2617
        %2839 = vmatpush.msra.mxu0 %v2613
        %2840 = vmatmul.f32.gmra.mxu0 %v2545
        %v2841 = vpop.f32.mrf.mxu0
        %v2842 = vadd.f32 %v2822, %v2841
        %2843 = vdwg.mxu0
        %v2844 = vmax.f32 %v2722, 0.0
        %v2845 = vmax.f32 %v2762, 0.0
        %v2846 = vmax.f32 %v2802, 0.0
        %v2847 = vmax.f32 %v2842, 0.0
        %v2848 = vld [vmem:[#allocation20] sm:$0xff]
        %v2849 = vld [vmem:[#allocation20 + $0x8] sm:$0xff]
        %v2850 = vld [vmem:[#allocation20 + $0x10] sm:$0xff]
        %v2851 = vld [vmem:[#allocation20 + $0x18] sm:$0xff]
        %v2852 = vld [vmem:[#allocation20 + $0x20] sm:$0xff]
        %v2853 = vld [vmem:[#allocation20 + $0x28] sm:$0xff]
        %v2854 = vld [vmem:[#allocation20 + $0x30] sm:$0xff]
        %v2855 = vld [vmem:[#allocation20 + $0x38] sm:$0xff]
        %v2856 = vld [vmem:[#allocation20 + $0x40] sm:$0xff]
        %v2857 = vld [vmem:[#allocation20 + $0x48] sm:$0xff]
        %v2858 = vld [vmem:[#allocation20 + $0x50] sm:$0xff]
        %v2859 = vld [vmem:[#allocation20 + $0x58] sm:$0xff]
        %v2860 = vld [vmem:[#allocation20 + $0x60] sm:$0xff]
        %v2861 = vld [vmem:[#allocation20 + $0x68] sm:$0xff]
        %v2862 = vld [vmem:[#allocation20 + $0x70] sm:$0xff]
        %v2863 = vld [vmem:[#allocation20 + $0x78] sm:$0xff]
        %v2864 = vld [vmem:[#allocation20 + $0x80] sm:$0xff]
        %v2865 = vld [vmem:[#allocation20 + $0x88] sm:$0xff]
        %v2866 = vld [vmem:[#allocation20 + $0x90] sm:$0xff]
        %v2867 = vld [vmem:[#allocation20 + $0x98] sm:$0xff]
        %v2868 = vld [vmem:[#allocation20 + $0xa0] sm:$0xff]
        %v2869 = vld [vmem:[#allocation20 + $0xa8] sm:$0xff]
        %v2870 = vld [vmem:[#allocation20 + $0xb0] sm:$0xff]
        %v2871 = vld [vmem:[#allocation20 + $0xb8] sm:$0xff]
        %v2872 = vld [vmem:[#allocation20 + $0xc0] sm:$0xff]
        %v2873 = vld [vmem:[#allocation20 + $0xc8] sm:$0xff]
        %v2874 = vld [vmem:[#allocation20 + $0xd0] sm:$0xff]
        %v2875 = vld [vmem:[#allocation20 + $0xd8] sm:$0xff]
        %v2876 = vld [vmem:[#allocation20 + $0xe0] sm:$0xff]
        %v2877 = vld [vmem:[#allocation20 + $0xe8] sm:$0xff]
        %v2878 = vld [vmem:[#allocation20 + $0xf0] sm:$0xff]
        %v2879 = vld [vmem:[#allocation20 + $0xf8] sm:$0xff]
        %v2880 = vld [vmem:[#allocation20 + $0x100] sm:$0xff]
        %v2881 = vld [vmem:[#allocation20 + $0x108] sm:$0xff]
        %v2882 = vld [vmem:[#allocation20 + $0x110] sm:$0xff]
        %v2883 = vld [vmem:[#allocation20 + $0x118] sm:$0xff]
        %v2884 = vld [vmem:[#allocation20 + $0x120] sm:$0xff]
        %v2885 = vld [vmem:[#allocation20 + $0x128] sm:$0xff]
        %v2886 = vld [vmem:[#allocation20 + $0x130] sm:$0xff]
        %v2887 = vld [vmem:[#allocation20 + $0x138] sm:$0xff]
        %v2888 = vld [vmem:[#allocation20 + $0x140] sm:$0xff]
        %v2889 = vld [vmem:[#allocation20 + $0x148] sm:$0xff]
        %v2890 = vld [vmem:[#allocation20 + $0x150] sm:$0xff]
        %v2891 = vld [vmem:[#allocation20 + $0x158] sm:$0xff]
        %v2892 = vld [vmem:[#allocation20 + $0x160] sm:$0xff]
        %v2893 = vld [vmem:[#allocation20 + $0x168] sm:$0xff]
        %v2894 = vld [vmem:[#allocation20 + $0x170] sm:$0xff]
        %v2895 = vld [vmem:[#allocation20 + $0x178] sm:$0xff]
        %v2896 = vld [vmem:[#allocation20 + $0x180] sm:$0xff]
        %v2897 = vld [vmem:[#allocation20 + $0x188] sm:$0xff]
        %v2898 = vld [vmem:[#allocation20 + $0x190] sm:$0xff]
        %v2899 = vld [vmem:[#allocation20 + $0x198] sm:$0xff]
        %v2900 = vld [vmem:[#allocation20 + $0x1a0] sm:$0xff]
        %v2901 = vld [vmem:[#allocation20 + $0x1a8] sm:$0xff]
        %v2902 = vld [vmem:[#allocation20 + $0x1b0] sm:$0xff]
        %v2903 = vld [vmem:[#allocation20 + $0x1b8] sm:$0xff]
        %v2904 = vld [vmem:[#allocation20 + $0x1c0] sm:$0xff]
        %v2905 = vld [vmem:[#allocation20 + $0x1c8] sm:$0xff]
        %v2906 = vld [vmem:[#allocation20 + $0x1d0] sm:$0xff]
        %v2907 = vld [vmem:[#allocation20 + $0x1d8] sm:$0xff]
        %v2908 = vld [vmem:[#allocation20 + $0x1e0] sm:$0xff]
        %v2909 = vld [vmem:[#allocation20 + $0x1e8] sm:$0xff]
        %v2910 = vld [vmem:[#allocation20 + $0x1f0] sm:$0xff]
        %v2911 = vld [vmem:[#allocation20 + $0x1f8] sm:$0xff]
        %v2912 = vld [vmem:[#allocation20 + $0x200] sm:$0xff]
        %v2913 = vld [vmem:[#allocation20 + $0x208] sm:$0xff]
        %v2914 = vld [vmem:[#allocation20 + $0x210] sm:$0xff]
        %v2915 = vld [vmem:[#allocation20 + $0x218] sm:$0xff]
        %v2916 = vld [vmem:[#allocation20 + $0x220] sm:$0xff]
        %v2917 = vld [vmem:[#allocation20 + $0x228] sm:$0xff]
        %v2918 = vld [vmem:[#allocation20 + $0x230] sm:$0xff]
        %v2919 = vld [vmem:[#allocation20 + $0x238] sm:$0xff]
        %v2920 = vld [vmem:[#allocation20 + $0x240] sm:$0xff]
        %v2921 = vld [vmem:[#allocation20 + $0x248] sm:$0xff]
        %v2922 = vld [vmem:[#allocation20 + $0x250] sm:$0xff]
        %v2923 = vld [vmem:[#allocation20 + $0x258] sm:$0xff]
        %v2924 = vld [vmem:[#allocation20 + $0x260] sm:$0xff]
        %v2925 = vld [vmem:[#allocation20 + $0x268] sm:$0xff]
        %v2926 = vld [vmem:[#allocation20 + $0x270] sm:$0xff]
        %v2927 = vld [vmem:[#allocation20 + $0x278] sm:$0xff]
        %v2928 = vld [vmem:[#allocation20 + $0x280] sm:$0xff]
        %v2929 = vld [vmem:[#allocation20 + $0x288] sm:$0xff]
        %v2930 = vld [vmem:[#allocation20 + $0x290] sm:$0xff]
        %v2931 = vld [vmem:[#allocation20 + $0x298] sm:$0xff]
        %v2932 = vld [vmem:[#allocation20 + $0x2a0] sm:$0xff]
        %v2933 = vld [vmem:[#allocation20 + $0x2a8] sm:$0xff]
        %v2934 = vld [vmem:[#allocation20 + $0x2b0] sm:$0xff]
        %v2935 = vld [vmem:[#allocation20 + $0x2b8] sm:$0xff]
        %v2936 = vld [vmem:[#allocation20 + $0x2c0] sm:$0xff]
        %v2937 = vld [vmem:[#allocation20 + $0x2c8] sm:$0xff]
        %v2938 = vld [vmem:[#allocation20 + $0x2d0] sm:$0xff]
        %v2939 = vld [vmem:[#allocation20 + $0x2d8] sm:$0xff]
        %v2940 = vld [vmem:[#allocation20 + $0x2e0] sm:$0xff]
        %v2941 = vld [vmem:[#allocation20 + $0x2e8] sm:$0xff]
        %v2942 = vld [vmem:[#allocation20 + $0x2f0] sm:$0xff]
        %v2943 = vld [vmem:[#allocation20 + $0x2f8] sm:$0xff]
        %v2944 = vld [vmem:[#allocation20 + $0x300] sm:$0xff]
        %v2945 = vld [vmem:[#allocation20 + $0x308] sm:$0xff]
        %v2946 = vld [vmem:[#allocation20 + $0x310] sm:$0xff]
        %v2947 = vld [vmem:[#allocation20 + $0x318] sm:$0xff]
        %v2948 = vld [vmem:[#allocation20 + $0x320] sm:$0xff]
        %v2949 = vld [vmem:[#allocation20 + $0x328] sm:$0xff]
        %v2950 = vld [vmem:[#allocation20 + $0x330] sm:$0xff]
        %v2951 = vld [vmem:[#allocation20 + $0x338] sm:$0xff]
        %v2952 = vld [vmem:[#allocation20 + $0x340] sm:$0xff]
        %v2953 = vld [vmem:[#allocation20 + $0x348] sm:$0xff]
        %v2954 = vld [vmem:[#allocation20 + $0x350] sm:$0xff]
        %v2955 = vld [vmem:[#allocation20 + $0x358] sm:$0xff]
        %v2956 = vld [vmem:[#allocation20 + $0x360] sm:$0xff]
        %v2957 = vld [vmem:[#allocation20 + $0x368] sm:$0xff]
        %v2958 = vld [vmem:[#allocation20 + $0x370] sm:$0xff]
        %v2959 = vld [vmem:[#allocation20 + $0x378] sm:$0xff]
        %v2960 = vld [vmem:[#allocation20 + $0x380] sm:$0xff]
        %v2961 = vld [vmem:[#allocation20 + $0x388] sm:$0xff]
        %v2962 = vld [vmem:[#allocation20 + $0x390] sm:$0xff]
        %v2963 = vld [vmem:[#allocation20 + $0x398] sm:$0xff]
        %v2964 = vld [vmem:[#allocation20 + $0x3a0] sm:$0xff]
        %v2965 = vld [vmem:[#allocation20 + $0x3a8] sm:$0xff]
        %v2966 = vld [vmem:[#allocation20 + $0x3b0] sm:$0xff]
        %v2967 = vld [vmem:[#allocation20 + $0x3b8] sm:$0xff]
        %v2968 = vld [vmem:[#allocation20 + $0x3c0] sm:$0xff]
        %v2969 = vld [vmem:[#allocation20 + $0x3c8] sm:$0xff]
        %v2970 = vld [vmem:[#allocation20 + $0x3d0] sm:$0xff]
        %v2971 = vld [vmem:[#allocation20 + $0x3d8] sm:$0xff]
        %v2972 = vld [vmem:[#allocation20 + $0x3e0] sm:$0xff]
        %v2973 = vld [vmem:[#allocation20 + $0x3e8] sm:$0xff]
        %v2974 = vld [vmem:[#allocation20 + $0x3f0] sm:$0xff]
        %v2975 = vld [vmem:[#allocation20 + $0x3f8] sm:$0xff]
        %v2976 = vld [vmem:[#allocation20 + $0x400] sm:$0xff]
        %v2977 = vld [vmem:[#allocation20 + $0x408] sm:$0xff]
        %v2978 = vld [vmem:[#allocation20 + $0x410] sm:$0xff]
        %v2979 = vld [vmem:[#allocation20 + $0x418] sm:$0xff]
        %v2980 = vld [vmem:[#allocation20 + $0x420] sm:$0xff]
        %v2981 = vld [vmem:[#allocation20 + $0x428] sm:$0xff]
        %v2982 = vld [vmem:[#allocation20 + $0x430] sm:$0xff]
        %v2983 = vld [vmem:[#allocation20 + $0x438] sm:$0xff]
        %v2984 = vld [vmem:[#allocation20 + $0x440] sm:$0xff]
        %v2985 = vld [vmem:[#allocation20 + $0x448] sm:$0xff]
        %v2986 = vld [vmem:[#allocation20 + $0x450] sm:$0xff]
        %v2987 = vld [vmem:[#allocation20 + $0x458] sm:$0xff]
        %v2988 = vld [vmem:[#allocation20 + $0x460] sm:$0xff]
        %v2989 = vld [vmem:[#allocation20 + $0x468] sm:$0xff]
        %v2990 = vld [vmem:[#allocation20 + $0x470] sm:$0xff]
        %v2991 = vld [vmem:[#allocation20 + $0x478] sm:$0xff]
        %v2992 = vld [vmem:[#allocation20 + $0x480] sm:$0xff]
        %v2993 = vld [vmem:[#allocation20 + $0x488] sm:$0xff]
        %v2994 = vld [vmem:[#allocation20 + $0x490] sm:$0xff]
        %v2995 = vld [vmem:[#allocation20 + $0x498] sm:$0xff]
        %v2996 = vld [vmem:[#allocation20 + $0x4a0] sm:$0xff]
        %v2997 = vld [vmem:[#allocation20 + $0x4a8] sm:$0xff]
        %v2998 = vld [vmem:[#allocation20 + $0x4b0] sm:$0xff]
        %v2999 = vld [vmem:[#allocation20 + $0x4b8] sm:$0xff]
        %v3000 = vld [vmem:[#allocation20 + $0x4c0] sm:$0xff]
        %v3001 = vld [vmem:[#allocation20 + $0x4c8] sm:$0xff]
        %v3002 = vld [vmem:[#allocation20 + $0x4d0] sm:$0xff]
        %v3003 = vld [vmem:[#allocation20 + $0x4d8] sm:$0xff]
        %v3004 = vld [vmem:[#allocation20 + $0x4e0] sm:$0xff]
        %v3005 = vld [vmem:[#allocation20 + $0x4e8] sm:$0xff]
        %v3006 = vld [vmem:[#allocation20 + $0x4f0] sm:$0xff]
        %v3007 = vld [vmem:[#allocation20 + $0x4f8] sm:$0xff]
        %v3008 = vld [vmem:[#allocation20 + $0x500] sm:$0xff]
        %v3009 = vld [vmem:[#allocation20 + $0x508] sm:$0xff]
        %v3010 = vld [vmem:[#allocation20 + $0x510] sm:$0xff]
        %v3011 = vld [vmem:[#allocation20 + $0x518] sm:$0xff]
        %v3012 = vld [vmem:[#allocation20 + $0x520] sm:$0xff]
        %v3013 = vld [vmem:[#allocation20 + $0x528] sm:$0xff]
        %v3014 = vld [vmem:[#allocation20 + $0x530] sm:$0xff]
        %v3015 = vld [vmem:[#allocation20 + $0x538] sm:$0xff]
        %v3016 = vld [vmem:[#allocation20 + $0x540] sm:$0xff]
        %v3017 = vld [vmem:[#allocation20 + $0x548] sm:$0xff]
        %v3018 = vld [vmem:[#allocation20 + $0x550] sm:$0xff]
        %v3019 = vld [vmem:[#allocation20 + $0x558] sm:$0xff]
        %v3020 = vld [vmem:[#allocation20 + $0x560] sm:$0xff]
        %v3021 = vld [vmem:[#allocation20 + $0x568] sm:$0xff]
        %v3022 = vld [vmem:[#allocation20 + $0x570] sm:$0xff]
        %v3023 = vld [vmem:[#allocation20 + $0x578] sm:$0xff]
        %v3024 = vld [vmem:[#allocation20 + $0x580] sm:$0xff]
        %v3025 = vld [vmem:[#allocation20 + $0x588] sm:$0xff]
        %v3026 = vld [vmem:[#allocation20 + $0x590] sm:$0xff]
        %v3027 = vld [vmem:[#allocation20 + $0x598] sm:$0xff]
        %v3028 = vld [vmem:[#allocation20 + $0x5a0] sm:$0xff]
        %v3029 = vld [vmem:[#allocation20 + $0x5a8] sm:$0xff]
        %v3030 = vld [vmem:[#allocation20 + $0x5b0] sm:$0xff]
        %v3031 = vld [vmem:[#allocation20 + $0x5b8] sm:$0xff]
        %v3032 = vld [vmem:[#allocation20 + $0x5c0] sm:$0xff]
        %v3033 = vld [vmem:[#allocation20 + $0x5c8] sm:$0xff]
        %v3034 = vld [vmem:[#allocation20 + $0x5d0] sm:$0xff]
        %v3035 = vld [vmem:[#allocation20 + $0x5d8] sm:$0xff]
        %v3036 = vld [vmem:[#allocation20 + $0x5e0] sm:$0xff]
        %v3037 = vld [vmem:[#allocation20 + $0x5e8] sm:$0xff]
        %v3038 = vld [vmem:[#allocation20 + $0x5f0] sm:$0xff]
        %v3039 = vld [vmem:[#allocation20 + $0x5f8] sm:$0xff]
        %v3040 = vld [vmem:[#allocation20 + $0x600] sm:$0xff]
        %v3041 = vld [vmem:[#allocation20 + $0x608] sm:$0xff]
        %v3042 = vld [vmem:[#allocation20 + $0x610] sm:$0xff]
        %v3043 = vld [vmem:[#allocation20 + $0x618] sm:$0xff]
        %v3044 = vld [vmem:[#allocation20 + $0x620] sm:$0xff]
        %v3045 = vld [vmem:[#allocation20 + $0x628] sm:$0xff]
        %v3046 = vld [vmem:[#allocation20 + $0x630] sm:$0xff]
        %v3047 = vld [vmem:[#allocation20 + $0x638] sm:$0xff]
        %v3048 = vld [vmem:[#allocation20 + $0x640] sm:$0xff]
        %v3049 = vld [vmem:[#allocation20 + $0x648] sm:$0xff]
        %v3050 = vld [vmem:[#allocation20 + $0x650] sm:$0xff]
        %v3051 = vld [vmem:[#allocation20 + $0x658] sm:$0xff]
        %v3052 = vld [vmem:[#allocation20 + $0x660] sm:$0xff]
        %v3053 = vld [vmem:[#allocation20 + $0x668] sm:$0xff]
        %v3054 = vld [vmem:[#allocation20 + $0x670] sm:$0xff]
        %v3055 = vld [vmem:[#allocation20 + $0x678] sm:$0xff]
        %v3056 = vld [vmem:[#allocation20 + $0x680] sm:$0xff]
        %v3057 = vld [vmem:[#allocation20 + $0x688] sm:$0xff]
        %v3058 = vld [vmem:[#allocation20 + $0x690] sm:$0xff]
        %v3059 = vld [vmem:[#allocation20 + $0x698] sm:$0xff]
        %v3060 = vld [vmem:[#allocation20 + $0x6a0] sm:$0xff]
        %v3061 = vld [vmem:[#allocation20 + $0x6a8] sm:$0xff]
        %v3062 = vld [vmem:[#allocation20 + $0x6b0] sm:$0xff]
        %v3063 = vld [vmem:[#allocation20 + $0x6b8] sm:$0xff]
        %v3064 = vld [vmem:[#allocation20 + $0x6c0] sm:$0xff]
        %v3065 = vld [vmem:[#allocation20 + $0x6c8] sm:$0xff]
        %v3066 = vld [vmem:[#allocation20 + $0x6d0] sm:$0xff]
        %v3067 = vld [vmem:[#allocation20 + $0x6d8] sm:$0xff]
        %v3068 = vld [vmem:[#allocation20 + $0x6e0] sm:$0xff]
        %v3069 = vld [vmem:[#allocation20 + $0x6e8] sm:$0xff]
        %v3070 = vld [vmem:[#allocation20 + $0x6f0] sm:$0xff]
        %v3071 = vld [vmem:[#allocation20 + $0x6f8] sm:$0xff]
        %v3072 = vld [vmem:[#allocation20 + $0x700] sm:$0xff]
        %v3073 = vld [vmem:[#allocation20 + $0x708] sm:$0xff]
        %v3074 = vld [vmem:[#allocation20 + $0x710] sm:$0xff]
        %v3075 = vld [vmem:[#allocation20 + $0x718] sm:$0xff]
        %v3076 = vld [vmem:[#allocation20 + $0x720] sm:$0xff]
        %v3077 = vld [vmem:[#allocation20 + $0x728] sm:$0xff]
        %v3078 = vld [vmem:[#allocation20 + $0x730] sm:$0xff]
        %v3079 = vld [vmem:[#allocation20 + $0x738] sm:$0xff]
        %v3080 = vld [vmem:[#allocation20 + $0x740] sm:$0xff]
        %v3081 = vld [vmem:[#allocation20 + $0x748] sm:$0xff]
        %v3082 = vld [vmem:[#allocation20 + $0x750] sm:$0xff]
        %v3083 = vld [vmem:[#allocation20 + $0x758] sm:$0xff]
        %v3084 = vld [vmem:[#allocation20 + $0x760] sm:$0xff]
        %v3085 = vld [vmem:[#allocation20 + $0x768] sm:$0xff]
        %v3086 = vld [vmem:[#allocation20 + $0x770] sm:$0xff]
        %v3087 = vld [vmem:[#allocation20 + $0x778] sm:$0xff]
        %v3088 = vld [vmem:[#allocation20 + $0x780] sm:$0xff]
        %v3089 = vld [vmem:[#allocation20 + $0x788] sm:$0xff]
        %v3090 = vld [vmem:[#allocation20 + $0x790] sm:$0xff]
        %v3091 = vld [vmem:[#allocation20 + $0x798] sm:$0xff]
        %v3092 = vld [vmem:[#allocation20 + $0x7a0] sm:$0xff]
        %v3093 = vld [vmem:[#allocation20 + $0x7a8] sm:$0xff]
        %v3094 = vld [vmem:[#allocation20 + $0x7b0] sm:$0xff]
        %v3095 = vld [vmem:[#allocation20 + $0x7b8] sm:$0xff]
        %v3096 = vld [vmem:[#allocation20 + $0x7c0] sm:$0xff]
        %v3097 = vld [vmem:[#allocation20 + $0x7c8] sm:$0xff]
        %v3098 = vld [vmem:[#allocation20 + $0x7d0] sm:$0xff]
        %v3099 = vld [vmem:[#allocation20 + $0x7d8] sm:$0xff]
        %v3100 = vld [vmem:[#allocation20 + $0x7e0] sm:$0xff]
        %v3101 = vld [vmem:[#allocation20 + $0x7e8] sm:$0xff]
        %v3102 = vld [vmem:[#allocation20 + $0x7f0] sm:$0xff]
        %v3103 = vld [vmem:[#allocation20 + $0x7f8] sm:$0xff]
        %v3104 = vld [vmem:[#allocation20 + $0x800] sm:$0xff]
        %v3105 = vld [vmem:[#allocation20 + $0x808] sm:$0xff]
        %v3106 = vld [vmem:[#allocation20 + $0x810] sm:$0xff]
        %v3107 = vld [vmem:[#allocation20 + $0x818] sm:$0xff]
        %v3108 = vld [vmem:[#allocation20 + $0x820] sm:$0xff]
        %v3109 = vld [vmem:[#allocation20 + $0x828] sm:$0xff]
        %v3110 = vld [vmem:[#allocation20 + $0x830] sm:$0xff]
        %v3111 = vld [vmem:[#allocation20 + $0x838] sm:$0xff]
        %v3112 = vld [vmem:[#allocation20 + $0x840] sm:$0xff]
        %v3113 = vld [vmem:[#allocation20 + $0x848] sm:$0xff]
        %v3114 = vld [vmem:[#allocation20 + $0x850] sm:$0xff]
        %v3115 = vld [vmem:[#allocation20 + $0x858] sm:$0xff]
        %v3116 = vld [vmem:[#allocation20 + $0x860] sm:$0xff]
        %v3117 = vld [vmem:[#allocation20 + $0x868] sm:$0xff]
        %v3118 = vld [vmem:[#allocation20 + $0x870] sm:$0xff]
        %v3119 = vld [vmem:[#allocation20 + $0x878] sm:$0xff]
        %v3120 = vld [vmem:[#allocation20 + $0x880] sm:$0xff]
        %v3121 = vld [vmem:[#allocation20 + $0x888] sm:$0xff]
        %v3122 = vld [vmem:[#allocation20 + $0x890] sm:$0xff]
        %v3123 = vld [vmem:[#allocation20 + $0x898] sm:$0xff]
        %v3124 = vld [vmem:[#allocation20 + $0x8a0] sm:$0xff]
        %v3125 = vld [vmem:[#allocation20 + $0x8a8] sm:$0xff]
        %v3126 = vld [vmem:[#allocation20 + $0x8b0] sm:$0xff]
        %v3127 = vld [vmem:[#allocation20 + $0x8b8] sm:$0xff]
        %v3128 = vld [vmem:[#allocation20 + $0x8c0] sm:$0xff]
        %v3129 = vld [vmem:[#allocation20 + $0x8c8] sm:$0xff]
        %v3130 = vld [vmem:[#allocation20 + $0x8d0] sm:$0xff]
        %v3131 = vld [vmem:[#allocation20 + $0x8d8] sm:$0xff]
        %v3132 = vld [vmem:[#allocation20 + $0x8e0] sm:$0xff]
        %v3133 = vld [vmem:[#allocation20 + $0x8e8] sm:$0xff]
        %v3134 = vld [vmem:[#allocation20 + $0x8f0] sm:$0xff]
        %v3135 = vld [vmem:[#allocation20 + $0x8f8] sm:$0xff]
        %v3136 = vld [vmem:[#allocation20 + $0x900] sm:$0xff]
        %v3137 = vld [vmem:[#allocation20 + $0x908] sm:$0xff]
        %v3138 = vld [vmem:[#allocation20 + $0x910] sm:$0xff]
        %v3139 = vld [vmem:[#allocation20 + $0x918] sm:$0xff]
        %v3140 = vld [vmem:[#allocation20 + $0x920] sm:$0xff]
        %v3141 = vld [vmem:[#allocation20 + $0x928] sm:$0xff]
        %v3142 = vld [vmem:[#allocation20 + $0x930] sm:$0xff]
        %v3143 = vld [vmem:[#allocation20 + $0x938] sm:$0xff]
        %v3144 = vld [vmem:[#allocation20 + $0x940] sm:$0xff]
        %v3145 = vld [vmem:[#allocation20 + $0x948] sm:$0xff]
        %v3146 = vld [vmem:[#allocation20 + $0x950] sm:$0xff]
        %v3147 = vld [vmem:[#allocation20 + $0x958] sm:$0xff]
        %v3148 = vld [vmem:[#allocation20 + $0x960] sm:$0xff]
        %v3149 = vld [vmem:[#allocation20 + $0x968] sm:$0xff]
        %v3150 = vld [vmem:[#allocation20 + $0x970] sm:$0xff]
        %v3151 = vld [vmem:[#allocation20 + $0x978] sm:$0xff]
        %v3152 = vld [vmem:[#allocation20 + $0x980] sm:$0xff]
        %v3153 = vld [vmem:[#allocation20 + $0x988] sm:$0xff]
        %v3154 = vld [vmem:[#allocation20 + $0x990] sm:$0xff]
        %v3155 = vld [vmem:[#allocation20 + $0x998] sm:$0xff]
        %v3156 = vld [vmem:[#allocation20 + $0x9a0] sm:$0xff]
        %v3157 = vld [vmem:[#allocation20 + $0x9a8] sm:$0xff]
        %v3158 = vld [vmem:[#allocation20 + $0x9b0] sm:$0xff]
        %v3159 = vld [vmem:[#allocation20 + $0x9b8] sm:$0xff]
        %v3160 = vld [vmem:[#allocation20 + $0x9c0] sm:$0xff]
        %v3161 = vld [vmem:[#allocation20 + $0x9c8] sm:$0xff]
        %v3162 = vld [vmem:[#allocation20 + $0x9d0] sm:$0xff]
        %v3163 = vld [vmem:[#allocation20 + $0x9d8] sm:$0xff]
        %v3164 = vld [vmem:[#allocation20 + $0x9e0] sm:$0xff]
        %v3165 = vld [vmem:[#allocation20 + $0x9e8] sm:$0xff]
        %v3166 = vld [vmem:[#allocation20 + $0x9f0] sm:$0xff]
        %v3167 = vld [vmem:[#allocation20 + $0x9f8] sm:$0xff]
        %v3168 = vld [vmem:[#allocation20 + $0xa00] sm:$0xff]
        %v3169 = vld [vmem:[#allocation20 + $0xa08] sm:$0xff]
        %v3170 = vld [vmem:[#allocation20 + $0xa10] sm:$0xff]
        %v3171 = vld [vmem:[#allocation20 + $0xa18] sm:$0xff]
        %v3172 = vld [vmem:[#allocation20 + $0xa20] sm:$0xff]
        %v3173 = vld [vmem:[#allocation20 + $0xa28] sm:$0xff]
        %v3174 = vld [vmem:[#allocation20 + $0xa30] sm:$0xff]
        %v3175 = vld [vmem:[#allocation20 + $0xa38] sm:$0xff]
        %v3176 = vld [vmem:[#allocation20 + $0xa40] sm:$0xff]
        %v3177 = vld [vmem:[#allocation20 + $0xa48] sm:$0xff]
        %v3178 = vld [vmem:[#allocation20 + $0xa50] sm:$0xff]
        %v3179 = vld [vmem:[#allocation20 + $0xa58] sm:$0xff]
        %v3180 = vld [vmem:[#allocation20 + $0xa60] sm:$0xff]
        %v3181 = vld [vmem:[#allocation20 + $0xa68] sm:$0xff]
        %v3182 = vld [vmem:[#allocation20 + $0xa70] sm:$0xff]
        %v3183 = vld [vmem:[#allocation20 + $0xa78] sm:$0xff]
        %v3184 = vld [vmem:[#allocation20 + $0xa80] sm:$0xff]
        %v3185 = vld [vmem:[#allocation20 + $0xa88] sm:$0xff]
        %v3186 = vld [vmem:[#allocation20 + $0xa90] sm:$0xff]
        %v3187 = vld [vmem:[#allocation20 + $0xa98] sm:$0xff]
        %v3188 = vld [vmem:[#allocation20 + $0xaa0] sm:$0xff]
        %v3189 = vld [vmem:[#allocation20 + $0xaa8] sm:$0xff]
        %v3190 = vld [vmem:[#allocation20 + $0xab0] sm:$0xff]
        %v3191 = vld [vmem:[#allocation20 + $0xab8] sm:$0xff]
        %v3192 = vld [vmem:[#allocation20 + $0xac0] sm:$0xff]
        %v3193 = vld [vmem:[#allocation20 + $0xac8] sm:$0xff]
        %v3194 = vld [vmem:[#allocation20 + $0xad0] sm:$0xff]
        %v3195 = vld [vmem:[#allocation20 + $0xad8] sm:$0xff]
        %v3196 = vld [vmem:[#allocation20 + $0xae0] sm:$0xff]
        %v3197 = vld [vmem:[#allocation20 + $0xae8] sm:$0xff]
        %v3198 = vld [vmem:[#allocation20 + $0xaf0] sm:$0xff]
        %v3199 = vld [vmem:[#allocation20 + $0xaf8] sm:$0xff]
        %v3200 = vld [vmem:[#allocation20 + $0xb00] sm:$0xff]
        %v3201 = vld [vmem:[#allocation20 + $0xb08] sm:$0xff]
        %v3202 = vld [vmem:[#allocation20 + $0xb10] sm:$0xff]
        %v3203 = vld [vmem:[#allocation20 + $0xb18] sm:$0xff]
        %v3204 = vld [vmem:[#allocation20 + $0xb20] sm:$0xff]
        %v3205 = vld [vmem:[#allocation20 + $0xb28] sm:$0xff]
        %v3206 = vld [vmem:[#allocation20 + $0xb30] sm:$0xff]
        %v3207 = vld [vmem:[#allocation20 + $0xb38] sm:$0xff]
        %v3208 = vld [vmem:[#allocation20 + $0xb40] sm:$0xff]
        %v3209 = vld [vmem:[#allocation20 + $0xb48] sm:$0xff]
        %v3210 = vld [vmem:[#allocation20 + $0xb50] sm:$0xff]
        %v3211 = vld [vmem:[#allocation20 + $0xb58] sm:$0xff]
        %v3212 = vld [vmem:[#allocation20 + $0xb60] sm:$0xff]
        %v3213 = vld [vmem:[#allocation20 + $0xb68] sm:$0xff]
        %v3214 = vld [vmem:[#allocation20 + $0xb70] sm:$0xff]
        %v3215 = vld [vmem:[#allocation20 + $0xb78] sm:$0xff]
        %v3216 = vld [vmem:[#allocation20 + $0xb80] sm:$0xff]
        %v3217 = vld [vmem:[#allocation20 + $0xb88] sm:$0xff]
        %v3218 = vld [vmem:[#allocation20 + $0xb90] sm:$0xff]
        %v3219 = vld [vmem:[#allocation20 + $0xb98] sm:$0xff]
        %v3220 = vld [vmem:[#allocation20 + $0xba0] sm:$0xff]
        %v3221 = vld [vmem:[#allocation20 + $0xba8] sm:$0xff]
        %v3222 = vld [vmem:[#allocation20 + $0xbb0] sm:$0xff]
        %v3223 = vld [vmem:[#allocation20 + $0xbb8] sm:$0xff]
        %v3224 = vld [vmem:[#allocation20 + $0xbc0] sm:$0xff]
        %v3225 = vld [vmem:[#allocation20 + $0xbc8] sm:$0xff]
        %v3226 = vld [vmem:[#allocation20 + $0xbd0] sm:$0xff]
        %v3227 = vld [vmem:[#allocation20 + $0xbd8] sm:$0xff]
        %v3228 = vld [vmem:[#allocation20 + $0xbe0] sm:$0xff]
        %v3229 = vld [vmem:[#allocation20 + $0xbe8] sm:$0xff]
        %v3230 = vld [vmem:[#allocation20 + $0xbf0] sm:$0xff]
        %v3231 = vld [vmem:[#allocation20 + $0xbf8] sm:$0xff]
        %v3232 = vld [vmem:[#allocation20 + $0xc00] sm:$0xff]
        %v3233 = vld [vmem:[#allocation20 + $0xc08] sm:$0xff]
        %v3234 = vld [vmem:[#allocation20 + $0xc10] sm:$0xff]
        %v3235 = vld [vmem:[#allocation20 + $0xc18] sm:$0xff]
        %v3236 = vld [vmem:[#allocation20 + $0xc20] sm:$0xff]
        %v3237 = vld [vmem:[#allocation20 + $0xc28] sm:$0xff]
        %v3238 = vld [vmem:[#allocation20 + $0xc30] sm:$0xff]
        %v3239 = vld [vmem:[#allocation20 + $0xc38] sm:$0xff]
        %v3240 = vld [vmem:[#allocation20 + $0xc40] sm:$0xff]
        %v3241 = vld [vmem:[#allocation20 + $0xc48] sm:$0xff]
        %v3242 = vld [vmem:[#allocation20 + $0xc50] sm:$0xff]
        %v3243 = vld [vmem:[#allocation20 + $0xc58] sm:$0xff]
        %v3244 = vld [vmem:[#allocation20 + $0xc60] sm:$0xff]
        %v3245 = vld [vmem:[#allocation20 + $0xc68] sm:$0xff]
        %v3246 = vld [vmem:[#allocation20 + $0xc70] sm:$0xff]
        %v3247 = vld [vmem:[#allocation20 + $0xc78] sm:$0xff]
        %v3248 = vld [vmem:[#allocation20 + $0xc80] sm:$0xff]
        %v3249 = vld [vmem:[#allocation20 + $0xc88] sm:$0xff]
        %v3250 = vld [vmem:[#allocation20 + $0xc90] sm:$0xff]
        %v3251 = vld [vmem:[#allocation20 + $0xc98] sm:$0xff]
        %v3252 = vld [vmem:[#allocation20 + $0xca0] sm:$0xff]
        %v3253 = vld [vmem:[#allocation20 + $0xca8] sm:$0xff]
        %v3254 = vld [vmem:[#allocation20 + $0xcb0] sm:$0xff]
        %v3255 = vld [vmem:[#allocation20 + $0xcb8] sm:$0xff]
        %v3256 = vld [vmem:[#allocation20 + $0xcc0] sm:$0xff]
        %v3257 = vld [vmem:[#allocation20 + $0xcc8] sm:$0xff]
        %v3258 = vld [vmem:[#allocation20 + $0xcd0] sm:$0xff]
        %v3259 = vld [vmem:[#allocation20 + $0xcd8] sm:$0xff]
        %v3260 = vld [vmem:[#allocation20 + $0xce0] sm:$0xff]
        %v3261 = vld [vmem:[#allocation20 + $0xce8] sm:$0xff]
        %v3262 = vld [vmem:[#allocation20 + $0xcf0] sm:$0xff]
        %v3263 = vld [vmem:[#allocation20 + $0xcf8] sm:$0xff]
        %v3264 = vld [vmem:[#allocation20 + $0xd00] sm:$0xff]
        %v3265 = vld [vmem:[#allocation20 + $0xd08] sm:$0xff]
        %v3266 = vld [vmem:[#allocation20 + $0xd10] sm:$0xff]
        %v3267 = vld [vmem:[#allocation20 + $0xd18] sm:$0xff]
        %v3268 = vld [vmem:[#allocation20 + $0xd20] sm:$0xff]
        %v3269 = vld [vmem:[#allocation20 + $0xd28] sm:$0xff]
        %v3270 = vld [vmem:[#allocation20 + $0xd30] sm:$0xff]
        %v3271 = vld [vmem:[#allocation20 + $0xd38] sm:$0xff]
        %v3272 = vld [vmem:[#allocation20 + $0xd40] sm:$0xff]
        %v3273 = vld [vmem:[#allocation20 + $0xd48] sm:$0xff]
        %v3274 = vld [vmem:[#allocation20 + $0xd50] sm:$0xff]
        %v3275 = vld [vmem:[#allocation20 + $0xd58] sm:$0xff]
        %v3276 = vld [vmem:[#allocation20 + $0xd60] sm:$0xff]
        %v3277 = vld [vmem:[#allocation20 + $0xd68] sm:$0xff]
        %v3278 = vld [vmem:[#allocation20 + $0xd70] sm:$0xff]
        %v3279 = vld [vmem:[#allocation20 + $0xd78] sm:$0xff]
        %v3280 = vld [vmem:[#allocation20 + $0xd80] sm:$0xff]
        %v3281 = vld [vmem:[#allocation20 + $0xd88] sm:$0xff]
        %v3282 = vld [vmem:[#allocation20 + $0xd90] sm:$0xff]
        %v3283 = vld [vmem:[#allocation20 + $0xd98] sm:$0xff]
        %v3284 = vld [vmem:[#allocation20 + $0xda0] sm:$0xff]
        %v3285 = vld [vmem:[#allocation20 + $0xda8] sm:$0xff]
        %v3286 = vld [vmem:[#allocation20 + $0xdb0] sm:$0xff]
        %v3287 = vld [vmem:[#allocation20 + $0xdb8] sm:$0xff]
        %v3288 = vld [vmem:[#allocation20 + $0xdc0] sm:$0xff]
        %v3289 = vld [vmem:[#allocation20 + $0xdc8] sm:$0xff]
        %v3290 = vld [vmem:[#allocation20 + $0xdd0] sm:$0xff]
        %v3291 = vld [vmem:[#allocation20 + $0xdd8] sm:$0xff]
        %v3292 = vld [vmem:[#allocation20 + $0xde0] sm:$0xff]
        %v3293 = vld [vmem:[#allocation20 + $0xde8] sm:$0xff]
        %v3294 = vld [vmem:[#allocation20 + $0xdf0] sm:$0xff]
        %v3295 = vld [vmem:[#allocation20 + $0xdf8] sm:$0xff]
        %v3296 = vld [vmem:[#allocation20 + $0xe00] sm:$0xff]
        %v3297 = vld [vmem:[#allocation20 + $0xe08] sm:$0xff]
        %v3298 = vld [vmem:[#allocation20 + $0xe10] sm:$0xff]
        %v3299 = vld [vmem:[#allocation20 + $0xe18] sm:$0xff]
        %v3300 = vld [vmem:[#allocation20 + $0xe20] sm:$0xff]
        %v3301 = vld [vmem:[#allocation20 + $0xe28] sm:$0xff]
        %v3302 = vld [vmem:[#allocation20 + $0xe30] sm:$0xff]
        %v3303 = vld [vmem:[#allocation20 + $0xe38] sm:$0xff]
        %v3304 = vld [vmem:[#allocation20 + $0xe40] sm:$0xff]
        %v3305 = vld [vmem:[#allocation20 + $0xe48] sm:$0xff]
        %v3306 = vld [vmem:[#allocation20 + $0xe50] sm:$0xff]
        %v3307 = vld [vmem:[#allocation20 + $0xe58] sm:$0xff]
        %v3308 = vld [vmem:[#allocation20 + $0xe60] sm:$0xff]
        %v3309 = vld [vmem:[#allocation20 + $0xe68] sm:$0xff]
        %v3310 = vld [vmem:[#allocation20 + $0xe70] sm:$0xff]
        %v3311 = vld [vmem:[#allocation20 + $0xe78] sm:$0xff]
        %v3312 = vld [vmem:[#allocation20 + $0xe80] sm:$0xff]
        %v3313 = vld [vmem:[#allocation20 + $0xe88] sm:$0xff]
        %v3314 = vld [vmem:[#allocation20 + $0xe90] sm:$0xff]
        %v3315 = vld [vmem:[#allocation20 + $0xe98] sm:$0xff]
        %v3316 = vld [vmem:[#allocation20 + $0xea0] sm:$0xff]
        %v3317 = vld [vmem:[#allocation20 + $0xea8] sm:$0xff]
        %v3318 = vld [vmem:[#allocation20 + $0xeb0] sm:$0xff]
        %v3319 = vld [vmem:[#allocation20 + $0xeb8] sm:$0xff]
        %v3320 = vld [vmem:[#allocation20 + $0xec0] sm:$0xff]
        %v3321 = vld [vmem:[#allocation20 + $0xec8] sm:$0xff]
        %v3322 = vld [vmem:[#allocation20 + $0xed0] sm:$0xff]
        %v3323 = vld [vmem:[#allocation20 + $0xed8] sm:$0xff]
        %v3324 = vld [vmem:[#allocation20 + $0xee0] sm:$0xff]
        %v3325 = vld [vmem:[#allocation20 + $0xee8] sm:$0xff]
        %v3326 = vld [vmem:[#allocation20 + $0xef0] sm:$0xff]
        %v3327 = vld [vmem:[#allocation20 + $0xef8] sm:$0xff]
        %v3328 = vld [vmem:[#allocation20 + $0xf00] sm:$0xff]
        %v3329 = vld [vmem:[#allocation20 + $0xf08] sm:$0xff]
        %v3330 = vld [vmem:[#allocation20 + $0xf10] sm:$0xff]
        %v3331 = vld [vmem:[#allocation20 + $0xf18] sm:$0xff]
        %v3332 = vld [vmem:[#allocation20 + $0xf20] sm:$0xff]
        %v3333 = vld [vmem:[#allocation20 + $0xf28] sm:$0xff]
        %v3334 = vld [vmem:[#allocation20 + $0xf30] sm:$0xff]
        %v3335 = vld [vmem:[#allocation20 + $0xf38] sm:$0xff]
        %v3336 = vld [vmem:[#allocation20 + $0xf40] sm:$0xff]
        %v3337 = vld [vmem:[#allocation20 + $0xf48] sm:$0xff]
        %v3338 = vld [vmem:[#allocation20 + $0xf50] sm:$0xff]
        %v3339 = vld [vmem:[#allocation20 + $0xf58] sm:$0xff]
        %v3340 = vld [vmem:[#allocation20 + $0xf60] sm:$0xff]
        %v3341 = vld [vmem:[#allocation20 + $0xf68] sm:$0xff]
        %v3342 = vld [vmem:[#allocation20 + $0xf70] sm:$0xff]
        %v3343 = vld [vmem:[#allocation20 + $0xf78] sm:$0xff]
        %v3344 = vld [vmem:[#allocation20 + $0xf80] sm:$0xff]
        %v3345 = vld [vmem:[#allocation20 + $0xf88] sm:$0xff]
        %v3346 = vld [vmem:[#allocation20 + $0xf90] sm:$0xff]
        %v3347 = vld [vmem:[#allocation20 + $0xf98] sm:$0xff]
        %v3348 = vld [vmem:[#allocation20 + $0xfa0] sm:$0xff]
        %v3349 = vld [vmem:[#allocation20 + $0xfa8] sm:$0xff]
        %v3350 = vld [vmem:[#allocation20 + $0xfb0] sm:$0xff]
        %v3351 = vld [vmem:[#allocation20 + $0xfb8] sm:$0xff]
        %v3352 = vld [vmem:[#allocation20 + $0xfc0] sm:$0xff]
        %v3353 = vld [vmem:[#allocation20 + $0xfc8] sm:$0xff]
        %v3354 = vld [vmem:[#allocation20 + $0xfd0] sm:$0xff]
        %v3355 = vld [vmem:[#allocation20 + $0xfd8] sm:$0xff]
        %v3356 = vld [vmem:[#allocation20 + $0xfe0] sm:$0xff]
        %v3357 = vld [vmem:[#allocation20 + $0xfe8] sm:$0xff]
        %v3358 = vld [vmem:[#allocation20 + $0xff0] sm:$0xff]
        %v3359 = vld [vmem:[#allocation20 + $0xff8] sm:$0xff]
        %v3360 = vld [vmem:[#allocation22] sm:$0xff]
        %v3362 = vperm.slane %v3360, 0
        %v3363 = vperm.slane %v3360, 1
        %v3364 = vperm.slane %v3360, 2
        %v3365 = vperm.slane %v3360, 3
        %v3366 = vperm.slane %v3360, 4
        %v3367 = vperm.slane %v3360, 5
        %v3368 = vperm.slane %v3360, 6
        %v3369 = vperm.slane %v3360, 7
        %3378 = vmatpush.msra.mxu0 %v2968
        %3379 = vmatpush.msra.mxu0 %v2960
        %3380 = vmatpush.msra.mxu0 %v2952
        %3381 = vmatpush.msra.mxu0 %v2944
        %3382 = vmatpush.msra.mxu0 %v2936
        %3383 = vmatpush.msra.mxu0 %v2928
        %3384 = vmatpush.msra.mxu0 %v2920
        %3385 = vmatpush.msra.mxu0 %v2912
        %3386 = vmatpush.msra.mxu0 %v2904
        %3387 = vmatpush.msra.mxu0 %v2896
        %3388 = vmatpush.msra.mxu0 %v2888
        %3389 = vmatpush.msra.mxu0 %v2880
        %3390 = vmatpush.msra.mxu0 %v2872
        %3391 = vmatpush.msra.mxu0 %v2864
        %3392 = vmatpush.msra.mxu0 %v2856
        %3393 = vmatpush.msra.mxu0 %v2848
        %3394 = vmatmul.f32.gmra.mxu0 %v2844
        %v3395 = vpop.f32.mrf.mxu0
        %v3396 = vadd.f32 %v3362, %v3395
        %3397 = vdwg.mxu0
        %3398 = vmatpush.msra.mxu0 %v3096
        %3399 = vmatpush.msra.mxu0 %v3088
        %3400 = vmatpush.msra.mxu0 %v3080
        %3401 = vmatpush.msra.mxu0 %v3072
        %3402 = vmatpush.msra.mxu0 %v3064
        %3403 = vmatpush.msra.mxu0 %v3056
        %3404 = vmatpush.msra.mxu0 %v3048
        %3405 = vmatpush.msra.mxu0 %v3040
        %3406 = vmatpush.msra.mxu0 %v3032
        %3407 = vmatpush.msra.mxu0 %v3024
        %3408 = vmatpush.msra.mxu0 %v3016
        %3409 = vmatpush.msra.mxu0 %v3008
        %3410 = vmatpush.msra.mxu0 %v3000
        %3411 = vmatpush.msra.mxu0 %v2992
        %3412 = vmatpush.msra.mxu0 %v2984
        %3413 = vmatpush.msra.mxu0 %v2976
        %3414 = vmatmul.f32.gmra.mxu0 %v2845
        %v3415 = vpop.f32.mrf.mxu0
        %v3416 = vadd.f32 %v3396, %v3415
        %3417 = vdwg.mxu0
        %3418 = vmatpush.msra.mxu0 %v3224
        %3419 = vmatpush.msra.mxu0 %v3216
        %3420 = vmatpush.msra.mxu0 %v3208
        %3421 = vmatpush.msra.mxu0 %v3200
        %3422 = vmatpush.msra.mxu0 %v3192
        %3423 = vmatpush.msra.mxu0 %v3184
        %3424 = vmatpush.msra.mxu0 %v3176
        %3425 = vmatpush.msra.mxu0 %v3168
        %3426 = vmatpush.msra.mxu0 %v3160
        %3427 = vmatpush.msra.mxu0 %v3152
        %3428 = vmatpush.msra.mxu0 %v3144
        %3429 = vmatpush.msra.mxu0 %v3136
        %3430 = vmatpush.msra.mxu0 %v3128
        %3431 = vmatpush.msra.mxu0 %v3120
        %3432 = vmatpush.msra.mxu0 %v3112
        %3433 = vmatpush.msra.mxu0 %v3104
        %3434 = vmatmul.f32.gmra.mxu0 %v2846
        %v3435 = vpop.f32.mrf.mxu0
        %v3436 = vadd.f32 %v3416, %v3435
        %3437 = vdwg.mxu0
        %3438 = vmatpush.msra.mxu0 %v3352
        %3439 = vmatpush.msra.mxu0 %v3344
        %3440 = vmatpush.msra.mxu0 %v3336
        %3441 = vmatpush.msra.mxu0 %v3328
        %3442 = vmatpush.msra.mxu0 %v3320
        %3443 = vmatpush.msra.mxu0 %v3312
        %3444 = vmatpush.msra.mxu0 %v3304
        %3445 = vmatpush.msra.mxu0 %v3296
        %3446 = vmatpush.msra.mxu0 %v3288
        %3447 = vmatpush.msra.mxu0 %v3280
        %3448 = vmatpush.msra.mxu0 %v3272
        %3449 = vmatpush.msra.mxu0 %v3264
        %3450 = vmatpush.msra.mxu0 %v3256
        %3451 = vmatpush.msra.mxu0 %v3248
        %3452 = vmatpush.msra.mxu0 %v3240
        %3453 = vmatpush.msra.mxu0 %v3232
        %3454 = vmatmul.f32.gmra.mxu0 %v2847
        %v3455 = vpop.f32.mrf.mxu0
        %v3456 = vadd.f32 %v3436, %v3455
        %3457 = vdwg.mxu0
        %3458 = vmatpush.msra.mxu0 %v2969
        %3459 = vmatpush.msra.mxu0 %v2961
        %3460 = vmatpush.msra.mxu0 %v2953
        %3461 = vmatpush.msra.mxu0 %v2945
        %3462 = vmatpush.msra.mxu0 %v2937
        %3463 = vmatpush.msra.mxu0 %v2929
        %3464 = vmatpush.msra.mxu0 %v2921
        %3465 = vmatpush.msra.mxu0 %v2913
        %3466 = vmatpush.msra.mxu0 %v2905
        %3467 = vmatpush.msra.mxu0 %v2897
        %3468 = vmatpush.msra.mxu0 %v2889
        %3469 = vmatpush.msra.mxu0 %v2881
        %3470 = vmatpush.msra.mxu0 %v2873
        %3471 = vmatpush.msra.mxu0 %v2865
        %3472 = vmatpush.msra.mxu0 %v2857
        %3473 = vmatpush.msra.mxu0 %v2849
        %3474 = vmatmul.f32.gmra.mxu0 %v2844
        %v3475 = vpop.f32.mrf.mxu0
        %v3476 = vadd.f32 %v3363, %v3475
        %3477 = vdwg.mxu0
        %3478 = vmatpush.msra.mxu0 %v3097
        %3479 = vmatpush.msra.mxu0 %v3089
        %3480 = vmatpush.msra.mxu0 %v3081
        %3481 = vmatpush.msra.mxu0 %v3073
        %3482 = vmatpush.msra.mxu0 %v3065
        %3483 = vmatpush.msra.mxu0 %v3057
        %3484 = vmatpush.msra.mxu0 %v3049
        %3485 = vmatpush.msra.mxu0 %v3041
        %3486 = vmatpush.msra.mxu0 %v3033
        %3487 = vmatpush.msra.mxu0 %v3025
        %3488 = vmatpush.msra.mxu0 %v3017
        %3489 = vmatpush.msra.mxu0 %v3009
        %3490 = vmatpush.msra.mxu0 %v3001
        %3491 = vmatpush.msra.mxu0 %v2993
        %3492 = vmatpush.msra.mxu0 %v2985
        %3493 = vmatpush.msra.mxu0 %v2977
        %3494 = vmatmul.f32.gmra.mxu0 %v2845
        %v3495 = vpop.f32.mrf.mxu0
        %v3496 = vadd.f32 %v3476, %v3495
        %3497 = vdwg.mxu0
        %3498 = vmatpush.msra.mxu0 %v3225
        %3499 = vmatpush.msra.mxu0 %v3217
        %3500 = vmatpush.msra.mxu0 %v3209
        %3501 = vmatpush.msra.mxu0 %v3201
        %3502 = vmatpush.msra.mxu0 %v3193
        %3503 = vmatpush.msra.mxu0 %v3185
        %3504 = vmatpush.msra.mxu0 %v3177
        %3505 = vmatpush.msra.mxu0 %v3169
        %3506 = vmatpush.msra.mxu0 %v3161
        %3507 = vmatpush.msra.mxu0 %v3153
        %3508 = vmatpush.msra.mxu0 %v3145
        %3509 = vmatpush.msra.mxu0 %v3137
        %3510 = vmatpush.msra.mxu0 %v3129
        %3511 = vmatpush.msra.mxu0 %v3121
        %3512 = vmatpush.msra.mxu0 %v3113
        %3513 = vmatpush.msra.mxu0 %v3105
        %3514 = vmatmul.f32.gmra.mxu0 %v2846
        %v3515 = vpop.f32.mrf.mxu0
        %v3516 = vadd.f32 %v3496, %v3515
        %3517 = vdwg.mxu0
        %3518 = vmatpush.msra.mxu0 %v3353
        %3519 = vmatpush.msra.mxu0 %v3345
        %3520 = vmatpush.msra.mxu0 %v3337
        %3521 = vmatpush.msra.mxu0 %v3329
        %3522 = vmatpush.msra.mxu0 %v3321
        %3523 = vmatpush.msra.mxu0 %v3313
        %3524 = vmatpush.msra.mxu0 %v3305
        %3525 = vmatpush.msra.mxu0 %v3297
        %3526 = vmatpush.msra.mxu0 %v3289
        %3527 = vmatpush.msra.mxu0 %v3281
        %3528 = vmatpush.msra.mxu0 %v3273
        %3529 = vmatpush.msra.mxu0 %v3265
        %3530 = vmatpush.msra.mxu0 %v3257
        %3531 = vmatpush.msra.mxu0 %v3249
        %3532 = vmatpush.msra.mxu0 %v3241
        %3533 = vmatpush.msra.mxu0 %v3233
        %3534 = vmatmul.f32.gmra.mxu0 %v2847
        %v3535 = vpop.f32.mrf.mxu0
        %v3536 = vadd.f32 %v3516, %v3535
        %3537 = vdwg.mxu0
        %3538 = vmatpush.msra.mxu0 %v2970
        %3539 = vmatpush.msra.mxu0 %v2962
        %3540 = vmatpush.msra.mxu0 %v2954
        %3541 = vmatpush.msra.mxu0 %v2946
        %3542 = vmatpush.msra.mxu0 %v2938
        %3543 = vmatpush.msra.mxu0 %v2930
        %3544 = vmatpush.msra.mxu0 %v2922
        %3545 = vmatpush.msra.mxu0 %v2914
        %3546 = vmatpush.msra.mxu0 %v2906
        %3547 = vmatpush.msra.mxu0 %v2898
        %3548 = vmatpush.msra.mxu0 %v2890
        %3549 = vmatpush.msra.mxu0 %v2882
        %3550 = vmatpush.msra.mxu0 %v2874
        %3551 = vmatpush.msra.mxu0 %v2866
        %3552 = vmatpush.msra.mxu0 %v2858
        %3553 = vmatpush.msra.mxu0 %v2850
        %3554 = vmatmul.f32.gmra.mxu0 %v2844
        %v3555 = vpop.f32.mrf.mxu0
        %v3556 = vadd.f32 %v3364, %v3555
        %3557 = vdwg.mxu0
        %3558 = vmatpush.msra.mxu0 %v3098
        %3559 = vmatpush.msra.mxu0 %v3090
        %3560 = vmatpush.msra.mxu0 %v3082
        %3561 = vmatpush.msra.mxu0 %v3074
        %3562 = vmatpush.msra.mxu0 %v3066
        %3563 = vmatpush.msra.mxu0 %v3058
        %3564 = vmatpush.msra.mxu0 %v3050
        %3565 = vmatpush.msra.mxu0 %v3042
        %3566 = vmatpush.msra.mxu0 %v3034
        %3567 = vmatpush.msra.mxu0 %v3026
        %3568 = vmatpush.msra.mxu0 %v3018
        %3569 = vmatpush.msra.mxu0 %v3010
        %3570 = vmatpush.msra.mxu0 %v3002
        %3571 = vmatpush.msra.mxu0 %v2994
        %3572 = vmatpush.msra.mxu0 %v2986
        %3573 = vmatpush.msra.mxu0 %v2978
        %3574 = vmatmul.f32.gmra.mxu0 %v2845
        %v3575 = vpop.f32.mrf.mxu0
        %v3576 = vadd.f32 %v3556, %v3575
        %3577 = vdwg.mxu0
        %3578 = vmatpush.msra.mxu0 %v3226
        %3579 = vmatpush.msra.mxu0 %v3218
        %3580 = vmatpush.msra.mxu0 %v3210
        %3581 = vmatpush.msra.mxu0 %v3202
        %3582 = vmatpush.msra.mxu0 %v3194
        %3583 = vmatpush.msra.mxu0 %v3186
        %3584 = vmatpush.msra.mxu0 %v3178
        %3585 = vmatpush.msra.mxu0 %v3170
        %3586 = vmatpush.msra.mxu0 %v3162
        %3587 = vmatpush.msra.mxu0 %v3154
        %3588 = vmatpush.msra.mxu0 %v3146
        %3589 = vmatpush.msra.mxu0 %v3138
        %3590 = vmatpush.msra.mxu0 %v3130
        %3591 = vmatpush.msra.mxu0 %v3122
        %3592 = vmatpush.msra.mxu0 %v3114
        %3593 = vmatpush.msra.mxu0 %v3106
        %3594 = vmatmul.f32.gmra.mxu0 %v2846
        %v3595 = vpop.f32.mrf.mxu0
        %v3596 = vadd.f32 %v3576, %v3595
        %3597 = vdwg.mxu0
        %3598 = vmatpush.msra.mxu0 %v3354
        %3599 = vmatpush.msra.mxu0 %v3346
        %3600 = vmatpush.msra.mxu0 %v3338
        %3601 = vmatpush.msra.mxu0 %v3330
        %3602 = vmatpush.msra.mxu0 %v3322
        %3603 = vmatpush.msra.mxu0 %v3314
        %3604 = vmatpush.msra.mxu0 %v3306
        %3605 = vmatpush.msra.mxu0 %v3298
        %3606 = vmatpush.msra.mxu0 %v3290
        %3607 = vmatpush.msra.mxu0 %v3282
        %3608 = vmatpush.msra.mxu0 %v3274
        %3609 = vmatpush.msra.mxu0 %v3266
        %3610 = vmatpush.msra.mxu0 %v3258
        %3611 = vmatpush.msra.mxu0 %v3250
        %3612 = vmatpush.msra.mxu0 %v3242
        %3613 = vmatpush.msra.mxu0 %v3234
        %3614 = vmatmul.f32.gmra.mxu0 %v2847
        %v3615 = vpop.f32.mrf.mxu0
        %v3616 = vadd.f32 %v3596, %v3615
        %3617 = vdwg.mxu0
        %3618 = vmatpush.msra.mxu0 %v2971
        %3619 = vmatpush.msra.mxu0 %v2963
        %3620 = vmatpush.msra.mxu0 %v2955
        %3621 = vmatpush.msra.mxu0 %v2947
        %3622 = vmatpush.msra.mxu0 %v2939
        %3623 = vmatpush.msra.mxu0 %v2931
        %3624 = vmatpush.msra.mxu0 %v2923
        %3625 = vmatpush.msra.mxu0 %v2915
        %3626 = vmatpush.msra.mxu0 %v2907
        %3627 = vmatpush.msra.mxu0 %v2899
        %3628 = vmatpush.msra.mxu0 %v2891
        %3629 = vmatpush.msra.mxu0 %v2883
        %3630 = vmatpush.msra.mxu0 %v2875
        %3631 = vmatpush.msra.mxu0 %v2867
        %3632 = vmatpush.msra.mxu0 %v2859
        %3633 = vmatpush.msra.mxu0 %v2851
        %3634 = vmatmul.f32.gmra.mxu0 %v2844
        %v3635 = vpop.f32.mrf.mxu0
        %v3636 = vadd.f32 %v3365, %v3635
        %3637 = vdwg.mxu0
        %3638 = vmatpush.msra.mxu0 %v3099
        %3639 = vmatpush.msra.mxu0 %v3091
        %3640 = vmatpush.msra.mxu0 %v3083
        %3641 = vmatpush.msra.mxu0 %v3075
        %3642 = vmatpush.msra.mxu0 %v3067
        %3643 = vmatpush.msra.mxu0 %v3059
        %3644 = vmatpush.msra.mxu0 %v3051
        %3645 = vmatpush.msra.mxu0 %v3043
        %3646 = vmatpush.msra.mxu0 %v3035
        %3647 = vmatpush.msra.mxu0 %v3027
        %3648 = vmatpush.msra.mxu0 %v3019
        %3649 = vmatpush.msra.mxu0 %v3011
        %3650 = vmatpush.msra.mxu0 %v3003
        %3651 = vmatpush.msra.mxu0 %v2995
        %3652 = vmatpush.msra.mxu0 %v2987
        %3653 = vmatpush.msra.mxu0 %v2979
        %3654 = vmatmul.f32.gmra.mxu0 %v2845
        %v3655 = vpop.f32.mrf.mxu0
        %v3656 = vadd.f32 %v3636, %v3655
        %3657 = vdwg.mxu0
        %3658 = vmatpush.msra.mxu0 %v3227
        %3659 = vmatpush.msra.mxu0 %v3219
        %3660 = vmatpush.msra.mxu0 %v3211
        %3661 = vmatpush.msra.mxu0 %v3203
        %3662 = vmatpush.msra.mxu0 %v3195
        %3663 = vmatpush.msra.mxu0 %v3187
        %3664 = vmatpush.msra.mxu0 %v3179
        %3665 = vmatpush.msra.mxu0 %v3171
        %3666 = vmatpush.msra.mxu0 %v3163
        %3667 = vmatpush.msra.mxu0 %v3155
        %3668 = vmatpush.msra.mxu0 %v3147
        %3669 = vmatpush.msra.mxu0 %v3139
        %3670 = vmatpush.msra.mxu0 %v3131
        %3671 = vmatpush.msra.mxu0 %v3123
        %3672 = vmatpush.msra.mxu0 %v3115
        %3673 = vmatpush.msra.mxu0 %v3107
        %3674 = vmatmul.f32.gmra.mxu0 %v2846
        %v3675 = vpop.f32.mrf.mxu0
        %v3676 = vadd.f32 %v3656, %v3675
        %3677 = vdwg.mxu0
        %3678 = vmatpush.msra.mxu0 %v3355
        %3679 = vmatpush.msra.mxu0 %v3347
        %3680 = vmatpush.msra.mxu0 %v3339
        %3681 = vmatpush.msra.mxu0 %v3331
        %3682 = vmatpush.msra.mxu0 %v3323
        %3683 = vmatpush.msra.mxu0 %v3315
        %3684 = vmatpush.msra.mxu0 %v3307
        %3685 = vmatpush.msra.mxu0 %v3299
        %3686 = vmatpush.msra.mxu0 %v3291
        %3687 = vmatpush.msra.mxu0 %v3283
        %3688 = vmatpush.msra.mxu0 %v3275
        %3689 = vmatpush.msra.mxu0 %v3267
        %3690 = vmatpush.msra.mxu0 %v3259
        %3691 = vmatpush.msra.mxu0 %v3251
        %3692 = vmatpush.msra.mxu0 %v3243
        %3693 = vmatpush.msra.mxu0 %v3235
        %3694 = vmatmul.f32.gmra.mxu0 %v2847
        %v3695 = vpop.f32.mrf.mxu0
        %v3696 = vadd.f32 %v3676, %v3695
        %3697 = vdwg.mxu0
        %3698 = vmatpush.msra.mxu0 %v2972
        %3699 = vmatpush.msra.mxu0 %v2964
        %3700 = vmatpush.msra.mxu0 %v2956
        %3701 = vmatpush.msra.mxu0 %v2948
        %3702 = vmatpush.msra.mxu0 %v2940
        %3703 = vmatpush.msra.mxu0 %v2932
        %3704 = vmatpush.msra.mxu0 %v2924
        %3705 = vmatpush.msra.mxu0 %v2916
        %3706 = vmatpush.msra.mxu0 %v2908
        %3707 = vmatpush.msra.mxu0 %v2900
        %3708 = vmatpush.msra.mxu0 %v2892
        %3709 = vmatpush.msra.mxu0 %v2884
        %3710 = vmatpush.msra.mxu0 %v2876
        %3711 = vmatpush.msra.mxu0 %v2868
        %3712 = vmatpush.msra.mxu0 %v2860
        %3713 = vmatpush.msra.mxu0 %v2852
        %3714 = vmatmul.f32.gmra.mxu0 %v2844
        %v3715 = vpop.f32.mrf.mxu0
        %v3716 = vadd.f32 %v3366, %v3715
        %3717 = vdwg.mxu0
        %3718 = vmatpush.msra.mxu0 %v3100
        %3719 = vmatpush.msra.mxu0 %v3092
        %3720 = vmatpush.msra.mxu0 %v3084
        %3721 = vmatpush.msra.mxu0 %v3076
        %3722 = vmatpush.msra.mxu0 %v3068
        %3723 = vmatpush.msra.mxu0 %v3060
        %3724 = vmatpush.msra.mxu0 %v3052
        %3725 = vmatpush.msra.mxu0 %v3044
        %3726 = vmatpush.msra.mxu0 %v3036
        %3727 = vmatpush.msra.mxu0 %v3028
        %3728 = vmatpush.msra.mxu0 %v3020
        %3729 = vmatpush.msra.mxu0 %v3012
        %3730 = vmatpush.msra.mxu0 %v3004
        %3731 = vmatpush.msra.mxu0 %v2996
        %3732 = vmatpush.msra.mxu0 %v2988
        %3733 = vmatpush.msra.mxu0 %v2980
        %3734 = vmatmul.f32.gmra.mxu0 %v2845
        %v3735 = vpop.f32.mrf.mxu0
        %v3736 = vadd.f32 %v3716, %v3735
        %3737 = vdwg.mxu0
        %3738 = vmatpush.msra.mxu0 %v3228
        %3739 = vmatpush.msra.mxu0 %v3220
        %3740 = vmatpush.msra.mxu0 %v3212
        %3741 = vmatpush.msra.mxu0 %v3204
        %3742 = vmatpush.msra.mxu0 %v3196
        %3743 = vmatpush.msra.mxu0 %v3188
        %3744 = vmatpush.msra.mxu0 %v3180
        %3745 = vmatpush.msra.mxu0 %v3172
        %3746 = vmatpush.msra.mxu0 %v3164
        %3747 = vmatpush.msra.mxu0 %v3156
        %3748 = vmatpush.msra.mxu0 %v3148
        %3749 = vmatpush.msra.mxu0 %v3140
        %3750 = vmatpush.msra.mxu0 %v3132
        %3751 = vmatpush.msra.mxu0 %v3124
        %3752 = vmatpush.msra.mxu0 %v3116
        %3753 = vmatpush.msra.mxu0 %v3108
        %3754 = vmatmul.f32.gmra.mxu0 %v2846
        %v3755 = vpop.f32.mrf.mxu0
        %v3756 = vadd.f32 %v3736, %v3755
        %3757 = vdwg.mxu0
        %3758 = vmatpush.msra.mxu0 %v3356
        %3759 = vmatpush.msra.mxu0 %v3348
        %3760 = vmatpush.msra.mxu0 %v3340
        %3761 = vmatpush.msra.mxu0 %v3332
        %3762 = vmatpush.msra.mxu0 %v3324
        %3763 = vmatpush.msra.mxu0 %v3316
        %3764 = vmatpush.msra.mxu0 %v3308
        %3765 = vmatpush.msra.mxu0 %v3300
        %3766 = vmatpush.msra.mxu0 %v3292
        %3767 = vmatpush.msra.mxu0 %v3284
        %3768 = vmatpush.msra.mxu0 %v3276
        %3769 = vmatpush.msra.mxu0 %v3268
        %3770 = vmatpush.msra.mxu0 %v3260
        %3771 = vmatpush.msra.mxu0 %v3252
        %3772 = vmatpush.msra.mxu0 %v3244
        %3773 = vmatpush.msra.mxu0 %v3236
        %3774 = vmatmul.f32.gmra.mxu0 %v2847
        %v3775 = vpop.f32.mrf.mxu0
        %v3776 = vadd.f32 %v3756, %v3775
        %3777 = vdwg.mxu0
        %3778 = vmatpush.msra.mxu0 %v2973
        %3779 = vmatpush.msra.mxu0 %v2965
        %3780 = vmatpush.msra.mxu0 %v2957
        %3781 = vmatpush.msra.mxu0 %v2949
        %3782 = vmatpush.msra.mxu0 %v2941
        %3783 = vmatpush.msra.mxu0 %v2933
        %3784 = vmatpush.msra.mxu0 %v2925
        %3785 = vmatpush.msra.mxu0 %v2917
        %3786 = vmatpush.msra.mxu0 %v2909
        %3787 = vmatpush.msra.mxu0 %v2901
        %3788 = vmatpush.msra.mxu0 %v2893
        %3789 = vmatpush.msra.mxu0 %v2885
        %3790 = vmatpush.msra.mxu0 %v2877
        %3791 = vmatpush.msra.mxu0 %v2869
        %3792 = vmatpush.msra.mxu0 %v2861
        %3793 = vmatpush.msra.mxu0 %v2853
        %3794 = vmatmul.f32.gmra.mxu0 %v2844
        %v3795 = vpop.f32.mrf.mxu0
        %v3796 = vadd.f32 %v3367, %v3795
        %3797 = vdwg.mxu0
        %3798 = vmatpush.msra.mxu0 %v3101
        %3799 = vmatpush.msra.mxu0 %v3093
        %3800 = vmatpush.msra.mxu0 %v3085
        %3801 = vmatpush.msra.mxu0 %v3077
        %3802 = vmatpush.msra.mxu0 %v3069
        %3803 = vmatpush.msra.mxu0 %v3061
        %3804 = vmatpush.msra.mxu0 %v3053
        %3805 = vmatpush.msra.mxu0 %v3045
        %3806 = vmatpush.msra.mxu0 %v3037
        %3807 = vmatpush.msra.mxu0 %v3029
        %3808 = vmatpush.msra.mxu0 %v3021
        %3809 = vmatpush.msra.mxu0 %v3013
        %3810 = vmatpush.msra.mxu0 %v3005
        %3811 = vmatpush.msra.mxu0 %v2997
        %3812 = vmatpush.msra.mxu0 %v2989
        %3813 = vmatpush.msra.mxu0 %v2981
        %3814 = vmatmul.f32.gmra.mxu0 %v2845
        %v3815 = vpop.f32.mrf.mxu0
        %v3816 = vadd.f32 %v3796, %v3815
        %3817 = vdwg.mxu0
        %3818 = vmatpush.msra.mxu0 %v3229
        %3819 = vmatpush.msra.mxu0 %v3221
        %3820 = vmatpush.msra.mxu0 %v3213
        %3821 = vmatpush.msra.mxu0 %v3205
        %3822 = vmatpush.msra.mxu0 %v3197
        %3823 = vmatpush.msra.mxu0 %v3189
        %3824 = vmatpush.msra.mxu0 %v3181
        %3825 = vmatpush.msra.mxu0 %v3173
        %3826 = vmatpush.msra.mxu0 %v3165
        %3827 = vmatpush.msra.mxu0 %v3157
        %3828 = vmatpush.msra.mxu0 %v3149
        %3829 = vmatpush.msra.mxu0 %v3141
        %3830 = vmatpush.msra.mxu0 %v3133
        %3831 = vmatpush.msra.mxu0 %v3125
        %3832 = vmatpush.msra.mxu0 %v3117
        %3833 = vmatpush.msra.mxu0 %v3109
        %3834 = vmatmul.f32.gmra.mxu0 %v2846
        %v3835 = vpop.f32.mrf.mxu0
        %v3836 = vadd.f32 %v3816, %v3835
        %3837 = vdwg.mxu0
        %3838 = vmatpush.msra.mxu0 %v3357
        %3839 = vmatpush.msra.mxu0 %v3349
        %3840 = vmatpush.msra.mxu0 %v3341
        %3841 = vmatpush.msra.mxu0 %v3333
        %3842 = vmatpush.msra.mxu0 %v3325
        %3843 = vmatpush.msra.mxu0 %v3317
        %3844 = vmatpush.msra.mxu0 %v3309
        %3845 = vmatpush.msra.mxu0 %v3301
        %3846 = vmatpush.msra.mxu0 %v3293
        %3847 = vmatpush.msra.mxu0 %v3285
        %3848 = vmatpush.msra.mxu0 %v3277
        %3849 = vmatpush.msra.mxu0 %v3269
        %3850 = vmatpush.msra.mxu0 %v3261
        %3851 = vmatpush.msra.mxu0 %v3253
        %3852 = vmatpush.msra.mxu0 %v3245
        %3853 = vmatpush.msra.mxu0 %v3237
        %3854 = vmatmul.f32.gmra.mxu0 %v2847
        %v3855 = vpop.f32.mrf.mxu0
        %v3856 = vadd.f32 %v3836, %v3855
        %3857 = vdwg.mxu0
        %3858 = vmatpush.msra.mxu0 %v2974
        %3859 = vmatpush.msra.mxu0 %v2966
        %3860 = vmatpush.msra.mxu0 %v2958
        %3861 = vmatpush.msra.mxu0 %v2950
        %3862 = vmatpush.msra.mxu0 %v2942
        %3863 = vmatpush.msra.mxu0 %v2934
        %3864 = vmatpush.msra.mxu0 %v2926
        %3865 = vmatpush.msra.mxu0 %v2918
        %3866 = vmatpush.msra.mxu0 %v2910
        %3867 = vmatpush.msra.mxu0 %v2902
        %3868 = vmatpush.msra.mxu0 %v2894
        %3869 = vmatpush.msra.mxu0 %v2886
        %3870 = vmatpush.msra.mxu0 %v2878
        %3871 = vmatpush.msra.mxu0 %v2870
        %3872 = vmatpush.msra.mxu0 %v2862
        %3873 = vmatpush.msra.mxu0 %v2854
        %3874 = vmatmul.f32.gmra.mxu0 %v2844
        %v3875 = vpop.f32.mrf.mxu0
        %v3876 = vadd.f32 %v3368, %v3875
        %3877 = vdwg.mxu0
        %3878 = vmatpush.msra.mxu0 %v3102
        %3879 = vmatpush.msra.mxu0 %v3094
        %3880 = vmatpush.msra.mxu0 %v3086
        %3881 = vmatpush.msra.mxu0 %v3078
        %3882 = vmatpush.msra.mxu0 %v3070
        %3883 = vmatpush.msra.mxu0 %v3062
        %3884 = vmatpush.msra.mxu0 %v3054
        %3885 = vmatpush.msra.mxu0 %v3046
        %3886 = vmatpush.msra.mxu0 %v3038
        %3887 = vmatpush.msra.mxu0 %v3030
        %3888 = vmatpush.msra.mxu0 %v3022
        %3889 = vmatpush.msra.mxu0 %v3014
        %3890 = vmatpush.msra.mxu0 %v3006
        %3891 = vmatpush.msra.mxu0 %v2998
        %3892 = vmatpush.msra.mxu0 %v2990
        %3893 = vmatpush.msra.mxu0 %v2982
        %3894 = vmatmul.f32.gmra.mxu0 %v2845
        %v3895 = vpop.f32.mrf.mxu0
        %v3896 = vadd.f32 %v3876, %v3895
        %3897 = vdwg.mxu0
        %3898 = vmatpush.msra.mxu0 %v3230
        %3899 = vmatpush.msra.mxu0 %v3222
        %3900 = vmatpush.msra.mxu0 %v3214
        %3901 = vmatpush.msra.mxu0 %v3206
        %3902 = vmatpush.msra.mxu0 %v3198
        %3903 = vmatpush.msra.mxu0 %v3190
        %3904 = vmatpush.msra.mxu0 %v3182
        %3905 = vmatpush.msra.mxu0 %v3174
        %3906 = vmatpush.msra.mxu0 %v3166
        %3907 = vmatpush.msra.mxu0 %v3158
        %3908 = vmatpush.msra.mxu0 %v3150
        %3909 = vmatpush.msra.mxu0 %v3142
        %3910 = vmatpush.msra.mxu0 %v3134
        %3911 = vmatpush.msra.mxu0 %v3126
        %3912 = vmatpush.msra.mxu0 %v3118
        %3913 = vmatpush.msra.mxu0 %v3110
        %3914 = vmatmul.f32.gmra.mxu0 %v2846
        %v3915 = vpop.f32.mrf.mxu0
        %v3916 = vadd.f32 %v3896, %v3915
        %3917 = vdwg.mxu0
        %3918 = vmatpush.msra.mxu0 %v3358
        %3919 = vmatpush.msra.mxu0 %v3350
        %3920 = vmatpush.msra.mxu0 %v3342
        %3921 = vmatpush.msra.mxu0 %v3334
        %3922 = vmatpush.msra.mxu0 %v3326
        %3923 = vmatpush.msra.mxu0 %v3318
        %3924 = vmatpush.msra.mxu0 %v3310
        %3925 = vmatpush.msra.mxu0 %v3302
        %3926 = vmatpush.msra.mxu0 %v3294
        %3927 = vmatpush.msra.mxu0 %v3286
        %3928 = vmatpush.msra.mxu0 %v3278
        %3929 = vmatpush.msra.mxu0 %v3270
        %3930 = vmatpush.msra.mxu0 %v3262
        %3931 = vmatpush.msra.mxu0 %v3254
        %3932 = vmatpush.msra.mxu0 %v3246
        %3933 = vmatpush.msra.mxu0 %v3238
        %3934 = vmatmul.f32.gmra.mxu0 %v2847
        %v3935 = vpop.f32.mrf.mxu0
        %v3936 = vadd.f32 %v3916, %v3935
        %3937 = vdwg.mxu0
        %3938 = vmatpush.msra.mxu0 %v2975
        %3939 = vmatpush.msra.mxu0 %v2967
        %3940 = vmatpush.msra.mxu0 %v2959
        %3941 = vmatpush.msra.mxu0 %v2951
        %3942 = vmatpush.msra.mxu0 %v2943
        %3943 = vmatpush.msra.mxu0 %v2935
        %3944 = vmatpush.msra.mxu0 %v2927
        %3945 = vmatpush.msra.mxu0 %v2919
        %3946 = vmatpush.msra.mxu0 %v2911
        %3947 = vmatpush.msra.mxu0 %v2903
        %3948 = vmatpush.msra.mxu0 %v2895
        %3949 = vmatpush.msra.mxu0 %v2887
        %3950 = vmatpush.msra.mxu0 %v2879
        %3951 = vmatpush.msra.mxu0 %v2871
        %3952 = vmatpush.msra.mxu0 %v2863
        %3953 = vmatpush.msra.mxu0 %v2855
        %3954 = vmatmul.f32.gmra.mxu0 %v2844
        %v3955 = vpop.f32.mrf.mxu0
        %v3956 = vadd.f32 %v3369, %v3955
        %3957 = vdwg.mxu0
        %3958 = vmatpush.msra.mxu0 %v3103
        %3959 = vmatpush.msra.mxu0 %v3095
        %3960 = vmatpush.msra.mxu0 %v3087
        %3961 = vmatpush.msra.mxu0 %v3079
        %3962 = vmatpush.msra.mxu0 %v3071
        %3963 = vmatpush.msra.mxu0 %v3063
        %3964 = vmatpush.msra.mxu0 %v3055
        %3965 = vmatpush.msra.mxu0 %v3047
        %3966 = vmatpush.msra.mxu0 %v3039
        %3967 = vmatpush.msra.mxu0 %v3031
        %3968 = vmatpush.msra.mxu0 %v3023
        %3969 = vmatpush.msra.mxu0 %v3015
        %3970 = vmatpush.msra.mxu0 %v3007
        %3971 = vmatpush.msra.mxu0 %v2999
        %3972 = vmatpush.msra.mxu0 %v2991
        %3973 = vmatpush.msra.mxu0 %v2983
        %3974 = vmatmul.f32.gmra.mxu0 %v2845
        %v3975 = vpop.f32.mrf.mxu0
        %v3976 = vadd.f32 %v3956, %v3975
        %3977 = vdwg.mxu0
        %3978 = vmatpush.msra.mxu0 %v3231
        %3979 = vmatpush.msra.mxu0 %v3223
        %3980 = vmatpush.msra.mxu0 %v3215
        %3981 = vmatpush.msra.mxu0 %v3207
        %3982 = vmatpush.msra.mxu0 %v3199
        %3983 = vmatpush.msra.mxu0 %v3191
        %3984 = vmatpush.msra.mxu0 %v3183
        %3985 = vmatpush.msra.mxu0 %v3175
        %3986 = vmatpush.msra.mxu0 %v3167
        %3987 = vmatpush.msra.mxu0 %v3159
        %3988 = vmatpush.msra.mxu0 %v3151
        %3989 = vmatpush.msra.mxu0 %v3143
        %3990 = vmatpush.msra.mxu0 %v3135
        %3991 = vmatpush.msra.mxu0 %v3127
        %3992 = vmatpush.msra.mxu0 %v3119
        %3993 = vmatpush.msra.mxu0 %v3111
        %3994 = vmatmul.f32.gmra.mxu0 %v2846
        %v3995 = vpop.f32.mrf.mxu0
        %v3996 = vadd.f32 %v3976, %v3995
        %3997 = vdwg.mxu0
        %3998 = vmatpush.msra.mxu0 %v3359
        %3999 = vmatpush.msra.mxu0 %v3351
        %4000 = vmatpush.msra.mxu0 %v3343
        %4001 = vmatpush.msra.mxu0 %v3335
        %4002 = vmatpush.msra.mxu0 %v3327
        %4003 = vmatpush.msra.mxu0 %v3319
        %4004 = vmatpush.msra.mxu0 %v3311
        %4005 = vmatpush.msra.mxu0 %v3303
        %4006 = vmatpush.msra.mxu0 %v3295
        %4007 = vmatpush.msra.mxu0 %v3287
        %4008 = vmatpush.msra.mxu0 %v3279
        %4009 = vmatpush.msra.mxu0 %v3271
        %4010 = vmatpush.msra.mxu0 %v3263
        %4011 = vmatpush.msra.mxu0 %v3255
        %4012 = vmatpush.msra.mxu0 %v3247
        %4013 = vmatpush.msra.mxu0 %v3239
        %4014 = vmatmul.f32.gmra.mxu0 %v2847
        %v4015 = vpop.f32.mrf.mxu0
        %v4016 = vadd.f32 %v3996, %v4015
        %4017 = vdwg.mxu0
        %v4018 = vtanh.pop %v3456
        %v4019 = vtanh.pop %v3536
        %v4020 = vtanh.pop %v3616
        %v4021 = vtanh.pop %v3696
        %v4022 = vtanh.pop %v3776
        %v4023 = vtanh.pop %v3856
        %v4024 = vtanh.pop %v3936
        %v4025 = vtanh.pop %v4016
        %v4034 = vrot.slane %v4019, 7
        %v4035 = vrot.slane %v4020, 6
        %v4036 = vrot.slane %v4021, 5
        %v4037 = vrot.slane %v4022, 4
        %v4038 = vrot.slane %v4023, 3
        %v4039 = vrot.slane %v4024, 2
        %v4040 = vrot.slane %v4025, 1
        %vm4041 = vcmask 1040384
        %v4042 = vsel %vm4041, %v4018, %v4034
        %vm4043 = vcmask 1042434
        %v4044 = vsel %vm4043, %v4035, %v4036
        %vm4045 = vcmask 1041408
        %v4046 = vsel %vm4045, %v4042, %v4044
        %vm4047 = vcmask 1044484
        %v4048 = vsel %vm4047, %v4037, %v4038
        %vm4049 = vcmask 1046534
        %v4050 = vsel %vm4049, %v4039, %v4040
        %vm4051 = vcmask 1045508
        %v4052 = vsel %vm4051, %v4048, %v4050
        %vm4053 = vcmask 1043456
        %v4054 = vsel %vm4053, %v4046, %v4052
        %4056 = vst [vmem:[%s841] sm:$0xff] %v4054
        %vm4057 = vcmask 253952
        %4058 = vst.msk [vmem:[%s821] sm:$0x1] %vm4057, %v2485
        %4059 = vst.msk [vmem:[%s827] sm:$0x1] %vm4057, %v2405
        %4060 = vst.msk [vmem:[%s833] sm:$0x1] %vm4057, %v2478
        %p4061 = scmp.lt.s32.totalorder %s46, 1
        %s4062 = scalar_select %p4061, %s46, 1
        %s4063 = smul.addr %s4062, 8
        %s4064 = scalar_lea.vmem %s16, %s4063
        %s4065 = sand.u32 %s426, 1
        %s4066 = scalar_lea.sflag [#allocation4], %s4065
        %s4067 = sand.u32 %s426, 1
        %s4068 = scalar_lea.vmem [#allocation23], %s4067
        %s4069 = sand.u32 %s46, 1
        %s4070 = scalar_lea.sflag [#allocation25], %s4069
        %s4071 = sand.u32 %s452, 1
        %s4072 = scalar_lea.vmem [#allocation24], %s4071
        %s4073 = sand.u32 %s46, 1
        %s4074 = scalar_lea.sflag [#allocation25], %s4073
        %s4075 = sand.u32 %s478, 1
        %s4076 = scalar_lea.vmem [#allocation26], %s4075
        // Predicated region
        $region137: #{generator_forward.1} parent=83 // pred_check
          %p4077 = pneg %p410
        $region138: #{generator_forward.1} parent=83 // pred_check_branch
          %4079 = sbr.rel (%p4077) target = $region140
        $region139: #{generator_forward.1} parent=83 // pred_region
          _
        $region140: #{generator_forward.1} parent=83 // pred_fallthru
          _
        // Predicated region
        $region141: #{generator_forward.1} parent=83 // pred_check
          %p4080 = pneg %p436
        $region142: #{generator_forward.1} parent=83 // pred_check_branch
          %4082 = sbr.rel (%p4080) target = $region144
        $region143: #{generator_forward.1} parent=83 // pred_region
          %4084 = vsyncadd %s4066, 0
          %s4085 = scalar_lea.hbm %s17, %s46
          %s4087 = sshll.u32 %s4068, 4
          %s4088 = int_to_ptr.vmem [resolvable:$true] %s4087
          %s4089 = sshll.u32 %s4085, 4
          %s4090 = int_to_ptr.hbm [resolvable:$true] %s4089
          %4092 = dma.vmem_to_hbm [thread:$0]  %s4088, 16, %s4090, %s4066
        $region144: #{generator_forward.1} parent=83 // pred_fallthru
          _
        // Predicated region
        $region145: #{generator_forward.1} parent=83 // pred_check
          %p4093 = pneg %p462
        $region146: #{generator_forward.1} parent=83 // pred_check_branch
          %4095 = sbr.rel (%p4093) target = $region148
        $region147: #{generator_forward.1} parent=83 // pred_region
          %4097 = vsyncadd %s4070, 0
          %s4098 = scalar_lea.hbm %s18, %s46
          %s4100 = sshll.u32 %s4072, 4
          %s4101 = int_to_ptr.vmem [resolvable:$true] %s4100
          %s4102 = sshll.u32 %s4098, 4
          %s4103 = int_to_ptr.hbm [resolvable:$true] %s4102
          %4105 = dma.vmem_to_hbm [thread:$0]  %s4101, 16, %s4103, %s4070
        $region148: #{generator_forward.1} parent=83 // pred_fallthru
          _
        // Predicated region
        $region149: #{generator_forward.1} parent=83 // pred_check
          %p4106 = pneg %p488
        $region150: #{generator_forward.1} parent=83 // pred_check_branch
          %4108 = sbr.rel (%p4106) target = $region152
        $region151: #{generator_forward.1} parent=83 // pred_region
          %4110 = vsyncadd %s4074, 0
          %s4111 = scalar_lea.hbm %s19, %s46
          %s4113 = sshll.u32 %s4076, 4
          %s4114 = int_to_ptr.vmem [resolvable:$true] %s4113
          %s4115 = sshll.u32 %s4111, 4
          %s4116 = int_to_ptr.hbm [resolvable:$true] %s4115
          %4118 = dma.vmem_to_hbm [thread:$0]  %s4114, 16, %s4116, %s4074
        $region152: #{generator_forward.1} parent=83 // pred_fallthru
          _
      $region84: #{generator_forward.1} parent=5 // pred_fallthru
        _
      %p4119 = scmp.le.s32.totalorder 2, %s41
      // Predicated region
      $region153: #{generator_forward.1} parent=5 // pred_check
        %p4120 = pneg %p4119
      $region154: #{generator_forward.1} parent=5 // pred_check_branch
        %4122 = sbr.rel (%p4120) target = $region156
      $region155: #{generator_forward.1} parent=5 // pred_region
        %s4123 = ssub.s32 %s41, 2
        // Predicated region
        $region157: #{generator_forward.1} parent=155 // pred_check
          %p4124 = pneg %p416
        $region158: #{generator_forward.1} parent=155 // pred_check_branch
          %4126 = sbr.rel (%p4124) target = $region160
        $region159: #{generator_forward.1} parent=155 // pred_region
          %p4127 = scmp.lt.s32.totalorder %s47, 1
          %s4128 = scalar_select %p4127, %s47, 1
          %s4129 = smul.addr %s4128, 8
          %s4130 = scalar_lea.vmem %s16, %s4129
        $region160: #{generator_forward.1} parent=155 // pred_fallthru
          _
        // Predicated region
        $region161: #{generator_forward.1} parent=155 // pred_check
          %p4131 = pneg %p442
        $region162: #{generator_forward.1} parent=155 // pred_check_branch
          %4133 = sbr.rel (%p4131) target = $region164
        $region163: #{generator_forward.1} parent=155 // pred_region
          %s4134 = sand.u32 %s427, 1
          %s4135 = scalar_lea.sflag [#allocation4], %s4134
          %s4136 = sand.u32 %s427, 1
          %s4137 = scalar_lea.vmem [#allocation23], %s4136
          %4139 = dma.done %s4135, 16
        $region164: #{generator_forward.1} parent=155 // pred_fallthru
          _
        // Predicated region
        $region165: #{generator_forward.1} parent=155 // pred_check
          %p4140 = pneg %p468
        $region166: #{generator_forward.1} parent=155 // pred_check_branch
          %4142 = sbr.rel (%p4140) target = $region168
        $region167: #{generator_forward.1} parent=155 // pred_region
          %s4143 = sand.u32 %s47, 1
          %s4144 = scalar_lea.sflag [#allocation25], %s4143
          %s4145 = sand.u32 %s453, 1
          %s4146 = scalar_lea.vmem [#allocation24], %s4145
          %4148 = dma.done %s4144, 16
        $region168: #{generator_forward.1} parent=155 // pred_fallthru
          _
        // Predicated region
        $region169: #{generator_forward.1} parent=155 // pred_check
          %p4149 = pneg %p494
        $region170: #{generator_forward.1} parent=155 // pred_check_branch
          %4151 = sbr.rel (%p4149) target = $region172
        $region171: #{generator_forward.1} parent=155 // pred_region
          %s4152 = sand.u32 %s47, 1
          %s4153 = scalar_lea.sflag [#allocation25], %s4152
          %s4154 = sand.u32 %s479, 1
          %s4155 = scalar_lea.vmem [#allocation26], %s4154
          %4157 = dma.done %s4153, 16
        $region172: #{generator_forward.1} parent=155 // pred_fallthru
          _
      $region156: #{generator_forward.1} parent=5 // pred_fallthru
        _
    $region6: #{generator_forward.1} parent=1 // loop_footer
      %s45 = sadd.s32 1, %s41
    $region7: #{generator_forward.1} parent=1 // loop_footer_branch
      %40 = sbr.rel target = $region3
    $region8: #{generator_forward.1} parent=1 // loop_exit
      _
    %4158 = vsyncpa [#allocation3], 1
    %s4159 = scalar_lea.sflag [#allocation3], 1
    %4160 = vsyncpa %s4159, 1
    %4161 = vsyncpa [#allocation6], 1
    %4162 = vsyncpa [#allocation9], 1
    %4163 = vsyncpa [#allocation12], 1
    %4164 = vsyncpa [#allocation15], 1
    %4165 = vsyncpa [#allocation18], 1
    %4166 = vsyncpa [#allocation21], 1
    %4167 = vsyncpa [#allocation4], 1
    %s4168 = scalar_lea.sflag [#allocation4], 1
    %4169 = vsyncpa %s4168, 1
    %4170 = vsyncpa [#allocation25], 1
    %s4171 = scalar_lea.sflag [#allocation25], 1
    %4172 = vsyncpa %s4171, 1

</llo_original>
